<compile_context>
chip_gen: v5e
topology: v5e:2x2
jax: 0.10.0
libtpu: 0.0.40
codegen_flags: <defaults>
</compile_context>

<pallas_src>
import functools

import jax
import jax.numpy as jnp
from jax import lax
from jax.experimental import pallas as pl
from jax.experimental.pallas import tpu as pltpu


def _head_kernel(x_ref, w1_ref, b1_ref, w2_ref, b2_ref, out_ref, *, H, W, Nb):
    # x_ref:   (Nb, (H+3)*(W+2), Cin)  bf16  flattened zero-padded NHWC images
    # w1_ref:  (9*Cin, Cmid)           bf16  3x3 conv weights, (dh,dw,cin)-major K
    # b1_ref:  (1, Cmid)               f32
    # w2_ref:  (Cmid, Ccls_pad)        bf16  1x1 conv weights, lane-padded
    # b2_ref:  (1, Ccls_pad)           f32
    # out_ref: (Nb, H*W, Ccls_pad)
    Wp = W + 2
    R = H * Wp                       # rows per image incl. the 2 garbage cols per row
    HW = H * W

    # ---- im2col in VMEM: (Nb*R, 9*Cin) patch from the 9 shifted row-slices ------------
    # patch[n*R + b, s*Cin:(s+1)*Cin] = x[n, b + off_s, :], off_s = dh*Wp + dw
    cols = []
    for dh in range(3):
        for dw in range(3):
            off = dh * Wp + dw
            col = jnp.concatenate(
                [x_ref[n, off:off + R, :] for n in range(Nb)], axis=0)   # (Nb*R, Cin)
            cols.append(col)
    patch = jnp.concatenate(cols, axis=-1)                               # (Nb*R, 9*Cin)

    # ---- 3x3 conv as ONE K = 9*Cin matmul, f32 accumulation on the MXU ----------------
    acc = jnp.dot(patch, w1_ref[...], preferred_element_type=jnp.float32)  # (Nb*R, Cmid)

    # bias + ReLU in f32 (v5e has no bf16 VPU; epilogue is cheap on all generations)
    h_full = jnp.maximum(acc + b1_ref[...], 0.0)

    # ---- compact away the 2 wrap-around garbage columns per row BEFORE the 1x1 --------
    rows = []
    for n in range(Nb):
        for oh in range(H):
            base = n * R + oh * Wp
            rows.append(h_full[base:base + W, :])
    h = jnp.concatenate(rows, axis=0).astype(jnp.bfloat16)               # (Nb*H*W, Cmid)

    # ---- 1x1 conv as a second matmul over valid pixels only, lane-dense store ---------
    o = jnp.dot(h, w2_ref[...], preferred_element_type=jnp.float32) + b2_ref[...]
    o = o.astype(out_ref.dtype)                                          # (Nb*H*W, Ccls_pad)
    for n in range(Nb):
        out_ref[n] = o[n * HW:(n + 1) * HW, :]


@jax.jit
def classification_head(x_nchw, w1, b1, w2, b2):
    """x_nchw: [N, Cin, H, W]   w1: [3,3,Cin,Cmid] (HWIO)   b1: [Cmid]
       w2: [Cmid, Ccls]         b2: [Ccls]
       returns logits in NCHW: [N, Ccls, H, W] (matches the PyTorch module)."""
    N, Cin, H, W = x_nchw.shape
    Cmid = w1.shape[-1]
    Ccls = w2.shape[-1]

    Wp = W + 2                      # width after pad=1 on both sides
    Pf = (H + 3) * Wp               # flat rows per image (extra bottom row keeps slices in-bounds)
    R = H * Wp                      # rows the first matmul computes per image
    HW = H * W
    Ccls_pad = pl.cdiv(Ccls, 128) * 128      # lane-dense output

    out_dtype = x_nchw.dtype
    itemsize = jnp.dtype(out_dtype).itemsize

    # ---- per-step VMEM footprint estimate (used for Nb choice and vmem_limit_bytes) ----
    def est_vmem(nb):
        return (2 * nb * Pf * Cin * 2                 # x block, bf16, double-buffered
                + 2 * nb * HW * Ccls_pad * itemsize   # out block, double-buffered
                + 9 * Cin * Cmid * 2                  # resident W1 (bf16)
                + Cmid * Ccls_pad * 2                 # resident W2 (bf16)
                + nb * R * 9 * Cin * 2                # im2col patch (bf16)
                + nb * R * Cmid * 4                   # f32 conv accumulator / ReLU
                + nb * HW * Cmid * 2                  # compacted bf16 hidden
                + nb * HW * Ccls_pad * 4)             # f32 logits before cast

    # batch enough images per step that M = Nb*R >= ~256 rows, but stay within a budget
    # that also fits v7x's 64 MiB VMEM (it is the smallest of v5e/v6e/v7x).
    Nb = min(max(1, pl.cdiv(256, R)), 8, N)
    while Nb > 1 and est_vmem(Nb) > (40 << 20):
        Nb -= 1
    N_pad = pl.cdiv(N, Nb) * Nb
    vmem_limit = int(min(max(int(1.5 * est_vmem(Nb)) + (1 << 20), 4 << 20), 96 << 20))

    # ---- layout glue (XLA): NCHW -> NHWC bf16, spatial zero-pad, flatten, batch-pad ----
    # TODO(synk): if the surrounding model can hand over / accept NHWC activations, drop
    # this transpose and the final one to save two full HBM passes over the activations.
    x = jnp.transpose(x_nchw, (0, 2, 3, 1)).astype(jnp.bfloat16)          # [N, H, W, Cin]
    x = jnp.pad(x, ((0, N_pad - N), (1, 2), (1, 1), (0, 0)))              # [N_pad, H+3, W+2, Cin]
    x_flat = x.reshape(N_pad, Pf, Cin)

    w1_flat = w1.reshape(9 * Cin, Cmid).astype(jnp.bfloat16)              # (dh,dw,cin)-major K
    b1_2d = b1.reshape(1, Cmid).astype(jnp.float32)
    w2_pad = jnp.pad(w2, ((0, 0), (0, Ccls_pad - Ccls))).astype(jnp.bfloat16)
    b2_2d = jnp.pad(b2, (0, Ccls_pad - Ccls)).reshape(1, Ccls_pad).astype(jnp.float32)

    flops = 2 * N_pad * R * (9 * Cin) * Cmid + 2 * N_pad * HW * Cmid * Ccls_pad
    bytes_accessed = (x_flat.size * 2 + w1_flat.size * 2 + w2_pad.size * 2
                      + b1_2d.size * 4 + b2_2d.size * 4
                      + N_pad * HW * Ccls_pad * itemsize)

    out = pl.pallas_call(
        functools.partial(_head_kernel, H=H, W=W, Nb=Nb),
        out_shape=jax.ShapeDtypeStruct((N_pad, HW, Ccls_pad), out_dtype),
        grid_spec=pltpu.PrefetchScalarGridSpec(
            num_scalar_prefetch=0,
            grid=(N_pad // Nb,),                                   # Nb images per step
            in_specs=[
                pl.BlockSpec((Nb, Pf, Cin), lambda g: (g, 0, 0)),        # activation stream
                pl.BlockSpec((9 * Cin, Cmid), lambda g: (0, 0)),         # W1 (resident)
                pl.BlockSpec((1, Cmid), lambda g: (0, 0)),               # b1 (resident)
                pl.BlockSpec((Cmid, Ccls_pad), lambda g: (0, 0)),        # W2 (resident)
                pl.BlockSpec((1, Ccls_pad), lambda g: (0, 0)),           # b2 (resident)
            ],
            out_specs=pl.BlockSpec((Nb, HW, Ccls_pad), lambda g: (g, 0, 0)),
        ),
        compiler_params=pltpu.CompilerParams(
            dimension_semantics=("parallel",),                     # megacore-shard over steps
            vmem_limit_bytes=vmem_limit,                           # right-sized per shape
        ),
        cost_estimate=pl.CostEstimate(
            flops=flops, transcendentals=0, bytes_accessed=bytes_accessed),
    )(x_flat, w1_flat, b1_2d, w2_pad, b2_2d)

    # valid images / classes only, back to the module's NCHW contract.
    out = out[:N, :, :Ccls].reshape(N, H, W, Ccls)
    return jnp.transpose(out, (0, 3, 1, 2))


def _reference(x_nchw, w1, b1, w2, b2):
    """Pure-JAX f32 reference (same semantics as the PyTorch module)."""
    x = jnp.transpose(x_nchw, (0, 2, 3, 1))                               # NHWC
    dn = lax.conv_dimension_numbers(x.shape, w1.shape, ("NHWC", "HWIO", "NHWC"))
    h = lax.conv_general_dilated(x, w1, window_strides=(1, 1),
                                 padding=((1, 1), (1, 1)), dimension_numbers=dn)
    h = jnp.maximum(h + b1, 0.0)
    o = jnp.einsum("nhwc,ck->nhwk", h, w2) + b2
    return jnp.transpose(o, (0, 3, 1, 2))


if __name__ == "__main__":
    # Small stand-ins for the real module (num_features=2048, hidden=512, num_classes=196):
    # batch=6 exercises both image batching (Nb=4 -> 2 grid steps) and batch padding.
    N, Cin, H, W = 6, 128, 8, 8
    Cmid, Ccls = 128, 24

    key = jax.random.PRNGKey(0)
    kx, k1, kb1, k2, kb2 = jax.random.split(key, 5)
    x = jax.random.normal(kx, (N, Cin, H, W), dtype=jnp.float32)
    w1 = jax.random.normal(k1, (3, 3, Cin, Cmid), dtype=jnp.float32) * 0.05   # HWIO
    b1 = jax.random.normal(kb1, (Cmid,), dtype=jnp.float32) * 0.05
    w2 = jax.random.normal(k2, (Cmid, Ccls), dtype=jnp.float32) * 0.05        # 1x1 conv as matmul
    b2 = jax.random.normal(kb2, (Ccls,), dtype=jnp.float32) * 0.05

    out = jax.block_until_ready(classification_head(x, w1, b1, w2, b2))
    ref = jax.block_until_ready(_reference(x, w1, b1, w2, b2))

    assert out.shape == (N, Ccls, H, W), out.shape
    # bf16 MXU operands (f32 accumulation) vs. f32 reference -> scale-relative tolerance.
    err = float(jnp.max(jnp.abs(out - ref)))
    ref_scale = float(jnp.max(jnp.abs(ref)))
    assert err <= 5e-2 * ref_scale + 5e-3, (err, ref_scale)

    print("KERNEL_OK")
</pallas_src>

<mosaic_0001>
module attributes {stable_mosaic.version = 11 : i64} {
  func.func @_head_kernel(%arg0: i32, %arg1: memref<4x110x128xbf16, #tpu.memory_space<vmem>>, %arg2: memref<1152x128xbf16, #tpu.memory_space<vmem>>, %arg3: memref<1x128xf32, #tpu.memory_space<vmem>>, %arg4: memref<128x128xbf16, #tpu.memory_space<vmem>>, %arg5: memref<1x128xf32, #tpu.memory_space<vmem>>, %arg6: memref<4x64x128xf32, #tpu.memory_space<vmem>>) attributes {dimension_semantics = [#tpu.dimension_semantics<parallel>], iteration_bounds = array<i64: 2>, scalar_prefetch = 0 : i64, scratch_operands = 0 : i64, tpu.core_type = #tpu.core_type<tc>, window_params = [{transform_indices = @transform_0, window_bounds = array<i64: 4, 110, 128>}, {pipeline_mode = #tpu.pipeline_mode<synchronous>, transform_indices = @transform_1, window_bounds = array<i64: 1152, 128>}, {pipeline_mode = #tpu.pipeline_mode<synchronous>, transform_indices = @transform_2, window_bounds = array<i64: 1, 128>}, {pipeline_mode = #tpu.pipeline_mode<synchronous>, transform_indices = @transform_3, window_bounds = array<i64: 128, 128>}, {pipeline_mode = #tpu.pipeline_mode<synchronous>, transform_indices = @transform_4, window_bounds = array<i64: 1, 128>}, {transform_indices = @transform_5, window_bounds = array<i64: 4, 64, 128>}]} {
    %c0 = arith.constant 0 : index
    %c0_0 = arith.constant 0 : index
    %c0_1 = arith.constant 0 : index
    %0 = vector.load %arg1[%c0, %c0_0, %c0_1] : memref<4x110x128xbf16, #tpu.memory_space<vmem>>, vector<1x80x128xbf16>
    %1 = vector.shape_cast %0 : vector<1x80x128xbf16> to vector<80x128xbf16>
    %c1 = arith.constant 1 : index
    %c0_2 = arith.constant 0 : index
    %c0_3 = arith.constant 0 : index
    %2 = vector.load %arg1[%c1, %c0_2, %c0_3] : memref<4x110x128xbf16, #tpu.memory_space<vmem>>, vector<1x80x128xbf16>
    %3 = vector.shape_cast %2 : vector<1x80x128xbf16> to vector<80x128xbf16>
    %c2 = arith.constant 2 : index
    %c0_4 = arith.constant 0 : index
    %c0_5 = arith.constant 0 : index
    %4 = vector.load %arg1[%c2, %c0_4, %c0_5] : memref<4x110x128xbf16, #tpu.memory_space<vmem>>, vector<1x80x128xbf16>
    %5 = vector.shape_cast %4 : vector<1x80x128xbf16> to vector<80x128xbf16>
    %c3 = arith.constant 3 : index
    %c0_6 = arith.constant 0 : index
    %c0_7 = arith.constant 0 : index
    %6 = vector.load %arg1[%c3, %c0_6, %c0_7] : memref<4x110x128xbf16, #tpu.memory_space<vmem>>, vector<1x80x128xbf16>
    %7 = vector.shape_cast %6 : vector<1x80x128xbf16> to vector<80x128xbf16>
    %8 = tpu.concatenate %1, %3, %5, %7 in 0 : vector<80x128xbf16>, vector<80x128xbf16>, vector<80x128xbf16>, vector<80x128xbf16> -> vector<320x128xbf16>
    %c0_8 = arith.constant 0 : index
    %c1_9 = arith.constant 1 : index
    %c0_10 = arith.constant 0 : index
    %9 = vector.load %arg1[%c0_8, %c1_9, %c0_10] : memref<4x110x128xbf16, #tpu.memory_space<vmem>>, vector<1x80x128xbf16>
    %10 = vector.shape_cast %9 : vector<1x80x128xbf16> to vector<80x128xbf16>
    %c1_11 = arith.constant 1 : index
    %c1_12 = arith.constant 1 : index
    %c0_13 = arith.constant 0 : index
    %11 = vector.load %arg1[%c1_11, %c1_12, %c0_13] : memref<4x110x128xbf16, #tpu.memory_space<vmem>>, vector<1x80x128xbf16>
    %12 = vector.shape_cast %11 : vector<1x80x128xbf16> to vector<80x128xbf16>
    %c2_14 = arith.constant 2 : index
    %c1_15 = arith.constant 1 : index
    %c0_16 = arith.constant 0 : index
    %13 = vector.load %arg1[%c2_14, %c1_15, %c0_16] : memref<4x110x128xbf16, #tpu.memory_space<vmem>>, vector<1x80x128xbf16>
    %14 = vector.shape_cast %13 : vector<1x80x128xbf16> to vector<80x128xbf16>
    %c3_17 = arith.constant 3 : index
    %c1_18 = arith.constant 1 : index
    %c0_19 = arith.constant 0 : index
    %15 = vector.load %arg1[%c3_17, %c1_18, %c0_19] : memref<4x110x128xbf16, #tpu.memory_space<vmem>>, vector<1x80x128xbf16>
    %16 = vector.shape_cast %15 : vector<1x80x128xbf16> to vector<80x128xbf16>
    %17 = tpu.concatenate %10, %12, %14, %16 in 0 : vector<80x128xbf16>, vector<80x128xbf16>, vector<80x128xbf16>, vector<80x128xbf16> -> vector<320x128xbf16>
    %c0_20 = arith.constant 0 : index
    %c2_21 = arith.constant 2 : index
    %c0_22 = arith.constant 0 : index
    %18 = vector.load %arg1[%c0_20, %c2_21, %c0_22] : memref<4x110x128xbf16, #tpu.memory_space<vmem>>, vector<1x80x128xbf16>
    %19 = vector.shape_cast %18 : vector<1x80x128xbf16> to vector<80x128xbf16>
    %c1_23 = arith.constant 1 : index
    %c2_24 = arith.constant 2 : index
    %c0_25 = arith.constant 0 : index
    %20 = vector.load %arg1[%c1_23, %c2_24, %c0_25] : memref<4x110x128xbf16, #tpu.memory_space<vmem>>, vector<1x80x128xbf16>
    %21 = vector.shape_cast %20 : vector<1x80x128xbf16> to vector<80x128xbf16>
    %c2_26 = arith.constant 2 : index
    %c2_27 = arith.constant 2 : index
    %c0_28 = arith.constant 0 : index
    %22 = vector.load %arg1[%c2_26, %c2_27, %c0_28] : memref<4x110x128xbf16, #tpu.memory_space<vmem>>, vector<1x80x128xbf16>
    %23 = vector.shape_cast %22 : vector<1x80x128xbf16> to vector<80x128xbf16>
    %c3_29 = arith.constant 3 : index
    %c2_30 = arith.constant 2 : index
    %c0_31 = arith.constant 0 : index
    %24 = vector.load %arg1[%c3_29, %c2_30, %c0_31] : memref<4x110x128xbf16, #tpu.memory_space<vmem>>, vector<1x80x128xbf16>
    %25 = vector.shape_cast %24 : vector<1x80x128xbf16> to vector<80x128xbf16>
    %26 = tpu.concatenate %19, %21, %23, %25 in 0 : vector<80x128xbf16>, vector<80x128xbf16>, vector<80x128xbf16>, vector<80x128xbf16> -> vector<320x128xbf16>
    %c0_32 = arith.constant 0 : index
    %c10 = arith.constant 10 : index
    %c0_33 = arith.constant 0 : index
    %27 = vector.load %arg1[%c0_32, %c10, %c0_33] : memref<4x110x128xbf16, #tpu.memory_space<vmem>>, vector<1x80x128xbf16>
    %28 = vector.shape_cast %27 : vector<1x80x128xbf16> to vector<80x128xbf16>
    %c1_34 = arith.constant 1 : index
    %c10_35 = arith.constant 10 : index
    %c0_36 = arith.constant 0 : index
    %29 = vector.load %arg1[%c1_34, %c10_35, %c0_36] : memref<4x110x128xbf16, #tpu.memory_space<vmem>>, vector<1x80x128xbf16>
    %30 = vector.shape_cast %29 : vector<1x80x128xbf16> to vector<80x128xbf16>
    %c2_37 = arith.constant 2 : index
    %c10_38 = arith.constant 10 : index
    %c0_39 = arith.constant 0 : index
    %31 = vector.load %arg1[%c2_37, %c10_38, %c0_39] : memref<4x110x128xbf16, #tpu.memory_space<vmem>>, vector<1x80x128xbf16>
    %32 = vector.shape_cast %31 : vector<1x80x128xbf16> to vector<80x128xbf16>
    %c3_40 = arith.constant 3 : index
    %c10_41 = arith.constant 10 : index
    %c0_42 = arith.constant 0 : index
    %33 = vector.load %arg1[%c3_40, %c10_41, %c0_42] : memref<4x110x128xbf16, #tpu.memory_space<vmem>>, vector<1x80x128xbf16>
    %34 = vector.shape_cast %33 : vector<1x80x128xbf16> to vector<80x128xbf16>
    %35 = tpu.concatenate %28, %30, %32, %34 in 0 : vector<80x128xbf16>, vector<80x128xbf16>, vector<80x128xbf16>, vector<80x128xbf16> -> vector<320x128xbf16>
    %c0_43 = arith.constant 0 : index
    %c11 = arith.constant 11 : index
    %c0_44 = arith.constant 0 : index
    %36 = vector.load %arg1[%c0_43, %c11, %c0_44] : memref<4x110x128xbf16, #tpu.memory_space<vmem>>, vector<1x80x128xbf16>
    %37 = vector.shape_cast %36 : vector<1x80x128xbf16> to vector<80x128xbf16>
    %c1_45 = arith.constant 1 : index
    %c11_46 = arith.constant 11 : index
    %c0_47 = arith.constant 0 : index
    %38 = vector.load %arg1[%c1_45, %c11_46, %c0_47] : memref<4x110x128xbf16, #tpu.memory_space<vmem>>, vector<1x80x128xbf16>
    %39 = vector.shape_cast %38 : vector<1x80x128xbf16> to vector<80x128xbf16>
    %c2_48 = arith.constant 2 : index
    %c11_49 = arith.constant 11 : index
    %c0_50 = arith.constant 0 : index
    %40 = vector.load %arg1[%c2_48, %c11_49, %c0_50] : memref<4x110x128xbf16, #tpu.memory_space<vmem>>, vector<1x80x128xbf16>
    %41 = vector.shape_cast %40 : vector<1x80x128xbf16> to vector<80x128xbf16>
    %c3_51 = arith.constant 3 : index
    %c11_52 = arith.constant 11 : index
    %c0_53 = arith.constant 0 : index
    %42 = vector.load %arg1[%c3_51, %c11_52, %c0_53] : memref<4x110x128xbf16, #tpu.memory_space<vmem>>, vector<1x80x128xbf16>
    %43 = vector.shape_cast %42 : vector<1x80x128xbf16> to vector<80x128xbf16>
    %44 = tpu.concatenate %37, %39, %41, %43 in 0 : vector<80x128xbf16>, vector<80x128xbf16>, vector<80x128xbf16>, vector<80x128xbf16> -> vector<320x128xbf16>
    %c0_54 = arith.constant 0 : index
    %c12 = arith.constant 12 : index
    %c0_55 = arith.constant 0 : index
    %45 = vector.load %arg1[%c0_54, %c12, %c0_55] : memref<4x110x128xbf16, #tpu.memory_space<vmem>>, vector<1x80x128xbf16>
    %46 = vector.shape_cast %45 : vector<1x80x128xbf16> to vector<80x128xbf16>
    %c1_56 = arith.constant 1 : index
    %c12_57 = arith.constant 12 : index
    %c0_58 = arith.constant 0 : index
    %47 = vector.load %arg1[%c1_56, %c12_57, %c0_58] : memref<4x110x128xbf16, #tpu.memory_space<vmem>>, vector<1x80x128xbf16>
    %48 = vector.shape_cast %47 : vector<1x80x128xbf16> to vector<80x128xbf16>
    %c2_59 = arith.constant 2 : index
    %c12_60 = arith.constant 12 : index
    %c0_61 = arith.constant 0 : index
    %49 = vector.load %arg1[%c2_59, %c12_60, %c0_61] : memref<4x110x128xbf16, #tpu.memory_space<vmem>>, vector<1x80x128xbf16>
    %50 = vector.shape_cast %49 : vector<1x80x128xbf16> to vector<80x128xbf16>
    %c3_62 = arith.constant 3 : index
    %c12_63 = arith.constant 12 : index
    %c0_64 = arith.constant 0 : index
    %51 = vector.load %arg1[%c3_62, %c12_63, %c0_64] : memref<4x110x128xbf16, #tpu.memory_space<vmem>>, vector<1x80x128xbf16>
    %52 = vector.shape_cast %51 : vector<1x80x128xbf16> to vector<80x128xbf16>
    %53 = tpu.concatenate %46, %48, %50, %52 in 0 : vector<80x128xbf16>, vector<80x128xbf16>, vector<80x128xbf16>, vector<80x128xbf16> -> vector<320x128xbf16>
    %c0_65 = arith.constant 0 : index
    %c20 = arith.constant 20 : index
    %c0_66 = arith.constant 0 : index
    %54 = vector.load %arg1[%c0_65, %c20, %c0_66] : memref<4x110x128xbf16, #tpu.memory_space<vmem>>, vector<1x80x128xbf16>
    %55 = vector.shape_cast %54 : vector<1x80x128xbf16> to vector<80x128xbf16>
    %c1_67 = arith.constant 1 : index
    %c20_68 = arith.constant 20 : index
    %c0_69 = arith.constant 0 : index
    %56 = vector.load %arg1[%c1_67, %c20_68, %c0_69] : memref<4x110x128xbf16, #tpu.memory_space<vmem>>, vector<1x80x128xbf16>
    %57 = vector.shape_cast %56 : vector<1x80x128xbf16> to vector<80x128xbf16>
    %c2_70 = arith.constant 2 : index
    %c20_71 = arith.constant 20 : index
    %c0_72 = arith.constant 0 : index
    %58 = vector.load %arg1[%c2_70, %c20_71, %c0_72] : memref<4x110x128xbf16, #tpu.memory_space<vmem>>, vector<1x80x128xbf16>
    %59 = vector.shape_cast %58 : vector<1x80x128xbf16> to vector<80x128xbf16>
    %c3_73 = arith.constant 3 : index
    %c20_74 = arith.constant 20 : index
    %c0_75 = arith.constant 0 : index
    %60 = vector.load %arg1[%c3_73, %c20_74, %c0_75] : memref<4x110x128xbf16, #tpu.memory_space<vmem>>, vector<1x80x128xbf16>
    %61 = vector.shape_cast %60 : vector<1x80x128xbf16> to vector<80x128xbf16>
    %62 = tpu.concatenate %55, %57, %59, %61 in 0 : vector<80x128xbf16>, vector<80x128xbf16>, vector<80x128xbf16>, vector<80x128xbf16> -> vector<320x128xbf16>
    %c0_76 = arith.constant 0 : index
    %c21 = arith.constant 21 : index
    %c0_77 = arith.constant 0 : index
    %63 = vector.load %arg1[%c0_76, %c21, %c0_77] : memref<4x110x128xbf16, #tpu.memory_space<vmem>>, vector<1x80x128xbf16>
    %64 = vector.shape_cast %63 : vector<1x80x128xbf16> to vector<80x128xbf16>
    %c1_78 = arith.constant 1 : index
    %c21_79 = arith.constant 21 : index
    %c0_80 = arith.constant 0 : index
    %65 = vector.load %arg1[%c1_78, %c21_79, %c0_80] : memref<4x110x128xbf16, #tpu.memory_space<vmem>>, vector<1x80x128xbf16>
    %66 = vector.shape_cast %65 : vector<1x80x128xbf16> to vector<80x128xbf16>
    %c2_81 = arith.constant 2 : index
    %c21_82 = arith.constant 21 : index
    %c0_83 = arith.constant 0 : index
    %67 = vector.load %arg1[%c2_81, %c21_82, %c0_83] : memref<4x110x128xbf16, #tpu.memory_space<vmem>>, vector<1x80x128xbf16>
    %68 = vector.shape_cast %67 : vector<1x80x128xbf16> to vector<80x128xbf16>
    %c3_84 = arith.constant 3 : index
    %c21_85 = arith.constant 21 : index
    %c0_86 = arith.constant 0 : index
    %69 = vector.load %arg1[%c3_84, %c21_85, %c0_86] : memref<4x110x128xbf16, #tpu.memory_space<vmem>>, vector<1x80x128xbf16>
    %70 = vector.shape_cast %69 : vector<1x80x128xbf16> to vector<80x128xbf16>
    %71 = tpu.concatenate %64, %66, %68, %70 in 0 : vector<80x128xbf16>, vector<80x128xbf16>, vector<80x128xbf16>, vector<80x128xbf16> -> vector<320x128xbf16>
    %c0_87 = arith.constant 0 : index
    %c22 = arith.constant 22 : index
    %c0_88 = arith.constant 0 : index
    %72 = vector.load %arg1[%c0_87, %c22, %c0_88] : memref<4x110x128xbf16, #tpu.memory_space<vmem>>, vector<1x80x128xbf16>
    %73 = vector.shape_cast %72 : vector<1x80x128xbf16> to vector<80x128xbf16>
    %c1_89 = arith.constant 1 : index
    %c22_90 = arith.constant 22 : index
    %c0_91 = arith.constant 0 : index
    %74 = vector.load %arg1[%c1_89, %c22_90, %c0_91] : memref<4x110x128xbf16, #tpu.memory_space<vmem>>, vector<1x80x128xbf16>
    %75 = vector.shape_cast %74 : vector<1x80x128xbf16> to vector<80x128xbf16>
    %c2_92 = arith.constant 2 : index
    %c22_93 = arith.constant 22 : index
    %c0_94 = arith.constant 0 : index
    %76 = vector.load %arg1[%c2_92, %c22_93, %c0_94] : memref<4x110x128xbf16, #tpu.memory_space<vmem>>, vector<1x80x128xbf16>
    %77 = vector.shape_cast %76 : vector<1x80x128xbf16> to vector<80x128xbf16>
    %c3_95 = arith.constant 3 : index
    %c22_96 = arith.constant 22 : index
    %c0_97 = arith.constant 0 : index
    %78 = vector.load %arg1[%c3_95, %c22_96, %c0_97] : memref<4x110x128xbf16, #tpu.memory_space<vmem>>, vector<1x80x128xbf16>
    %79 = vector.shape_cast %78 : vector<1x80x128xbf16> to vector<80x128xbf16>
    %80 = tpu.concatenate %73, %75, %77, %79 in 0 : vector<80x128xbf16>, vector<80x128xbf16>, vector<80x128xbf16>, vector<80x128xbf16> -> vector<320x128xbf16>
    %81 = tpu.concatenate %8, %17, %26, %35, %44, %53, %62, %71, %80 in 1 : vector<320x128xbf16>, vector<320x128xbf16>, vector<320x128xbf16>, vector<320x128xbf16>, vector<320x128xbf16>, vector<320x128xbf16>, vector<320x128xbf16>, vector<320x128xbf16>, vector<320x128xbf16> -> vector<320x1152xbf16>
    %c0_98 = arith.constant 0 : index
    %c0_99 = arith.constant 0 : index
    %82 = vector.load %arg2[%c0_98, %c0_99] : memref<1152x128xbf16, #tpu.memory_space<vmem>>, vector<1152x128xbf16>
    %cst = arith.constant dense<0.000000e+00> : vector<320x128xf32>
    %83 = tpu.matmul %81, %82, %cst {dimension_numbers = #tpu.dot_dimension_numbers<[1], [0], [0], [1], [0, 0, 1, 1], [], []>} : vector<320x1152xbf16>, vector<1152x128xbf16>, vector<320x128xf32> -> vector<320x128xf32>
    %c0_100 = arith.constant 0 : index
    %c0_101 = arith.constant 0 : index
    %84 = vector.load %arg3[%c0_100, %c0_101] : memref<1x128xf32, #tpu.memory_space<vmem>>, vector<1x128xf32>
    %85 = vector.broadcast %84 : vector<1x128xf32> to vector<320x128xf32>
    %86 = arith.addf %83, %85 : vector<320x128xf32>
    %cst_102 = arith.constant 0.000000e+00 : f32
    %87 = vector.broadcast %cst_102 : f32 to vector<320x128xf32>
    %88 = arith.maximumf %86, %87 : vector<320x128xf32>
    %89 = vector.extract_strided_slice %88 {offsets = [0, 0], sizes = [8, 128], strides = [1, 1]} : vector<320x128xf32> to vector<8x128xf32>
    %90 = vector.extract_strided_slice %88 {offsets = [10, 0], sizes = [8, 128], strides = [1, 1]} : vector<320x128xf32> to vector<8x128xf32>
    %91 = vector.extract_strided_slice %88 {offsets = [20, 0], sizes = [8, 128], strides = [1, 1]} : vector<320x128xf32> to vector<8x128xf32>
    %92 = vector.extract_strided_slice %88 {offsets = [30, 0], sizes = [8, 128], strides = [1, 1]} : vector<320x128xf32> to vector<8x128xf32>
    %93 = vector.extract_strided_slice %88 {offsets = [40, 0], sizes = [8, 128], strides = [1, 1]} : vector<320x128xf32> to vector<8x128xf32>
    %94 = vector.extract_strided_slice %88 {offsets = [50, 0], sizes = [8, 128], strides = [1, 1]} : vector<320x128xf32> to vector<8x128xf32>
    %95 = vector.extract_strided_slice %88 {offsets = [60, 0], sizes = [8, 128], strides = [1, 1]} : vector<320x128xf32> to vector<8x128xf32>
    %96 = vector.extract_strided_slice %88 {offsets = [70, 0], sizes = [8, 128], strides = [1, 1]} : vector<320x128xf32> to vector<8x128xf32>
    %97 = vector.extract_strided_slice %88 {offsets = [80, 0], sizes = [8, 128], strides = [1, 1]} : vector<320x128xf32> to vector<8x128xf32>
    %98 = vector.extract_strided_slice %88 {offsets = [90, 0], sizes = [8, 128], strides = [1, 1]} : vector<320x128xf32> to vector<8x128xf32>
    %99 = vector.extract_strided_slice %88 {offsets = [100, 0], sizes = [8, 128], strides = [1, 1]} : vector<320x128xf32> to vector<8x128xf32>
    %100 = vector.extract_strided_slice %88 {offsets = [110, 0], sizes = [8, 128], strides = [1, 1]} : vector<320x128xf32> to vector<8x128xf32>
    %101 = vector.extract_strided_slice %88 {offsets = [120, 0], sizes = [8, 128], strides = [1, 1]} : vector<320x128xf32> to vector<8x128xf32>
    %102 = vector.extract_strided_slice %88 {offsets = [130, 0], sizes = [8, 128], strides = [1, 1]} : vector<320x128xf32> to vector<8x128xf32>
    %103 = vector.extract_strided_slice %88 {offsets = [140, 0], sizes = [8, 128], strides = [1, 1]} : vector<320x128xf32> to vector<8x128xf32>
    %104 = vector.extract_strided_slice %88 {offsets = [150, 0], sizes = [8, 128], strides = [1, 1]} : vector<320x128xf32> to vector<8x128xf32>
    %105 = vector.extract_strided_slice %88 {offsets = [160, 0], sizes = [8, 128], strides = [1, 1]} : vector<320x128xf32> to vector<8x128xf32>
    %106 = vector.extract_strided_slice %88 {offsets = [170, 0], sizes = [8, 128], strides = [1, 1]} : vector<320x128xf32> to vector<8x128xf32>
    %107 = vector.extract_strided_slice %88 {offsets = [180, 0], sizes = [8, 128], strides = [1, 1]} : vector<320x128xf32> to vector<8x128xf32>
    %108 = vector.extract_strided_slice %88 {offsets = [190, 0], sizes = [8, 128], strides = [1, 1]} : vector<320x128xf32> to vector<8x128xf32>
    %109 = vector.extract_strided_slice %88 {offsets = [200, 0], sizes = [8, 128], strides = [1, 1]} : vector<320x128xf32> to vector<8x128xf32>
    %110 = vector.extract_strided_slice %88 {offsets = [210, 0], sizes = [8, 128], strides = [1, 1]} : vector<320x128xf32> to vector<8x128xf32>
    %111 = vector.extract_strided_slice %88 {offsets = [220, 0], sizes = [8, 128], strides = [1, 1]} : vector<320x128xf32> to vector<8x128xf32>
    %112 = vector.extract_strided_slice %88 {offsets = [230, 0], sizes = [8, 128], strides = [1, 1]} : vector<320x128xf32> to vector<8x128xf32>
    %113 = vector.extract_strided_slice %88 {offsets = [240, 0], sizes = [8, 128], strides = [1, 1]} : vector<320x128xf32> to vector<8x128xf32>
    %114 = vector.extract_strided_slice %88 {offsets = [250, 0], sizes = [8, 128], strides = [1, 1]} : vector<320x128xf32> to vector<8x128xf32>
    %115 = vector.extract_strided_slice %88 {offsets = [260, 0], sizes = [8, 128], strides = [1, 1]} : vector<320x128xf32> to vector<8x128xf32>
    %116 = vector.extract_strided_slice %88 {offsets = [270, 0], sizes = [8, 128], strides = [1, 1]} : vector<320x128xf32> to vector<8x128xf32>
    %117 = vector.extract_strided_slice %88 {offsets = [280, 0], sizes = [8, 128], strides = [1, 1]} : vector<320x128xf32> to vector<8x128xf32>
    %118 = vector.extract_strided_slice %88 {offsets = [290, 0], sizes = [8, 128], strides = [1, 1]} : vector<320x128xf32> to vector<8x128xf32>
    %119 = vector.extract_strided_slice %88 {offsets = [300, 0], sizes = [8, 128], strides = [1, 1]} : vector<320x128xf32> to vector<8x128xf32>
    %120 = vector.extract_strided_slice %88 {offsets = [310, 0], sizes = [8, 128], strides = [1, 1]} : vector<320x128xf32> to vector<8x128xf32>
    %121 = tpu.concatenate %89, %90, %91, %92, %93, %94, %95, %96, %97, %98, %99, %100, %101, %102, %103, %104 in 0 : vector<8x128xf32>, vector<8x128xf32>, vector<8x128xf32>, vector<8x128xf32>, vector<8x128xf32>, vector<8x128xf32>, vector<8x128xf32>, vector<8x128xf32>, vector<8x128xf32>, vector<8x128xf32>, vector<8x128xf32>, vector<8x128xf32>, vector<8x128xf32>, vector<8x128xf32>, vector<8x128xf32>, vector<8x128xf32> -> vector<128x128xf32>
    %122 = tpu.concatenate %105, %106, %107, %108, %109, %110, %111, %112, %113, %114, %115, %116, %117, %118, %119, %120 in 0 : vector<8x128xf32>, vector<8x128xf32>, vector<8x128xf32>, vector<8x128xf32>, vector<8x128xf32>, vector<8x128xf32>, vector<8x128xf32>, vector<8x128xf32>, vector<8x128xf32>, vector<8x128xf32>, vector<8x128xf32>, vector<8x128xf32>, vector<8x128xf32>, vector<8x128xf32>, vector<8x128xf32>, vector<8x128xf32> -> vector<128x128xf32>
    %123 = tpu.concatenate %121, %122 in 0 : vector<128x128xf32>, vector<128x128xf32> -> vector<256x128xf32>
    %124 = arith.truncf %123 : vector<256x128xf32> to vector<256x128xbf16>
    %c0_103 = arith.constant 0 : index
    %c0_104 = arith.constant 0 : index
    %125 = vector.load %arg4[%c0_103, %c0_104] : memref<128x128xbf16, #tpu.memory_space<vmem>>, vector<128x128xbf16>
    %cst_105 = arith.constant dense<0.000000e+00> : vector<256x128xf32>
    %126 = tpu.matmul %124, %125, %cst_105 {dimension_numbers = #tpu.dot_dimension_numbers<[1], [0], [0], [1], [0, 0, 1, 1], [], []>} : vector<256x128xbf16>, vector<128x128xbf16>, vector<256x128xf32> -> vector<256x128xf32>
    %c0_106 = arith.constant 0 : index
    %c0_107 = arith.constant 0 : index
    %127 = vector.load %arg5[%c0_106, %c0_107] : memref<1x128xf32, #tpu.memory_space<vmem>>, vector<1x128xf32>
    %128 = vector.broadcast %127 : vector<1x128xf32> to vector<256x128xf32>
    %129 = arith.addf %126, %128 : vector<256x128xf32>
    %130 = vector.extract_strided_slice %129 {offsets = [0, 0], sizes = [64, 128], strides = [1, 1]} : vector<256x128xf32> to vector<64x128xf32>
    %c0_108 = arith.constant 0 : index
    %c0_109 = arith.constant 0 : index
    %c0_110 = arith.constant 0 : index
    %131 = vector.load %arg6[%c0_108, %c0_109, %c0_110] : memref<4x64x128xf32, #tpu.memory_space<vmem>>, vector<1x64x128xf32>
    %132 = vector.shape_cast %131 : vector<1x64x128xf32> to vector<64x128xf32>
    %133 = vector.shape_cast %130 : vector<64x128xf32> to vector<1x64x128xf32>
    tpu.vector_store %arg6[%c0_108, %c0_109, %c0_110], %133 {strides = array<i32>} : memref<4x64x128xf32, #tpu.memory_space<vmem>>, vector<1x64x128xf32>,
    %134 = vector.extract_strided_slice %129 {offsets = [64, 0], sizes = [64, 128], strides = [1, 1]} : vector<256x128xf32> to vector<64x128xf32>
    %c1_111 = arith.constant 1 : index
    %c0_112 = arith.constant 0 : index
    %c0_113 = arith.constant 0 : index
    %135 = vector.load %arg6[%c1_111, %c0_112, %c0_113] : memref<4x64x128xf32, #tpu.memory_space<vmem>>, vector<1x64x128xf32>
    %136 = vector.shape_cast %135 : vector<1x64x128xf32> to vector<64x128xf32>
    %137 = vector.shape_cast %134 : vector<64x128xf32> to vector<1x64x128xf32>
    tpu.vector_store %arg6[%c1_111, %c0_112, %c0_113], %137 {strides = array<i32>} : memref<4x64x128xf32, #tpu.memory_space<vmem>>, vector<1x64x128xf32>,
    %138 = vector.extract_strided_slice %129 {offsets = [128, 0], sizes = [64, 128], strides = [1, 1]} : vector<256x128xf32> to vector<64x128xf32>
    %c2_114 = arith.constant 2 : index
    %c0_115 = arith.constant 0 : index
    %c0_116 = arith.constant 0 : index
    %139 = vector.load %arg6[%c2_114, %c0_115, %c0_116] : memref<4x64x128xf32, #tpu.memory_space<vmem>>, vector<1x64x128xf32>
    %140 = vector.shape_cast %139 : vector<1x64x128xf32> to vector<64x128xf32>
    %141 = vector.shape_cast %138 : vector<64x128xf32> to vector<1x64x128xf32>
    tpu.vector_store %arg6[%c2_114, %c0_115, %c0_116], %141 {strides = array<i32>} : memref<4x64x128xf32, #tpu.memory_space<vmem>>, vector<1x64x128xf32>,
    %142 = vector.extract_strided_slice %129 {offsets = [192, 0], sizes = [64, 128], strides = [1, 1]} : vector<256x128xf32> to vector<64x128xf32>
    %c3_117 = arith.constant 3 : index
    %c0_118 = arith.constant 0 : index
    %c0_119 = arith.constant 0 : index
    %143 = vector.load %arg6[%c3_117, %c0_118, %c0_119] : memref<4x64x128xf32, #tpu.memory_space<vmem>>, vector<1x64x128xf32>
    %144 = vector.shape_cast %143 : vector<1x64x128xf32> to vector<64x128xf32>
    %145 = vector.shape_cast %142 : vector<64x128xf32> to vector<1x64x128xf32>
    tpu.vector_store %arg6[%c3_117, %c0_118, %c0_119], %145 {strides = array<i32>} : memref<4x64x128xf32, #tpu.memory_space<vmem>>, vector<1x64x128xf32>,
    return
  }
  func.func @transform_0(%arg0: i32) -> (i32, i32, i32) {
    %c0_i32 = arith.constant 0 : i32
    %c0_i32_0 = arith.constant 0 : i32
    %c0_i32_1 = arith.constant 0 : i32
    return %arg0, %c0_i32, %c0_i32_0 : i32, i32, i32
  }
  func.func @transform_1(%arg0: i32) -> (i32, i32) {
    %c0_i32 = arith.constant 0 : i32
    %c0_i32_0 = arith.constant 0 : i32
    %c0_i32_1 = arith.constant 0 : i32
    return %c0_i32, %c0_i32_0 : i32, i32
  }
  func.func @transform_2(%arg0: i32) -> (i32, i32) {
    %c0_i32 = arith.constant 0 : i32
    %c0_i32_0 = arith.constant 0 : i32
    %c0_i32_1 = arith.constant 0 : i32
    return %c0_i32, %c0_i32_0 : i32, i32
  }
  func.func @transform_3(%arg0: i32) -> (i32, i32) {
    %c0_i32 = arith.constant 0 : i32
    %c0_i32_0 = arith.constant 0 : i32
    %c0_i32_1 = arith.constant 0 : i32
    return %c0_i32, %c0_i32_0 : i32, i32
  }
  func.func @transform_4(%arg0: i32) -> (i32, i32) {
    %c0_i32 = arith.constant 0 : i32
    %c0_i32_0 = arith.constant 0 : i32
    %c0_i32_1 = arith.constant 0 : i32
    return %c0_i32, %c0_i32_0 : i32, i32
  }
  func.func @transform_5(%arg0: i32) -> (i32, i32, i32) {
    %c0_i32 = arith.constant 0 : i32
    %c0_i32_0 = arith.constant 0 : i32
    %c0_i32_1 = arith.constant 0 : i32
    return %arg0, %c0_i32, %c0_i32_0 : i32, i32, i32
  }
}

</mosaic_0001>

<llo_original>
// kernel: classification_head.1
$region0: #{classification_head.1}
  #allocation0 [shape = 'u32[]', space=smem, size = 0x4, offset = 0x4, fixed_abs, tag = 'smem constant byte address 0x4 - core index']
  #allocation1 [shape = 'u32[72,128]{1,0:T(1,128)}', space=vmem, size = 0x9000, scoped, tag = 'internal scratch']
  %s0 = inlined_call_operand.vmem [shape: bf16[8,110,128], index: 0, kind: input, shape index: {}]
  %s1 = inlined_call_operand.vmem [shape: bf16[1152,128], index: 1, kind: input, shape index: {}]
  %s2 = inlined_call_operand.vmem [shape: f32[1,128], index: 2, kind: input, shape index: {}]
  %s3 = inlined_call_operand.vmem [shape: bf16[128,128], index: 3, kind: input, shape index: {}]
  %s4 = inlined_call_operand.vmem [shape: f32[1,128], index: 4, kind: input, shape index: {}]
  %s5 = inlined_call_operand.vmem [shape: f32[8,64,128], index: 5, kind: output, shape index: {}]
  %s6 = sld [smem:[#allocation0]]
  $region53: #{classification_head.1} parent=0
    _
  %s8 = ssub.s32 1, %s6
  %s9 = scalar_select 0, %s8, %s6
  loop: start=0, step=1, limit=4
  $region2: #{classification_head.1} parent=0 // loop_pre_header
    _
  $region3: #{classification_head.1} parent=0 // loop_header
    %s11 = sphi 0, %s15
    %p12 = scmp.ge.s32.totalorder %s11, 4
    %s21 = sphi 0, %s23
    %s24 = sphi 0, %s21
    %s25 = sphi 0, %s24
    %s41 = sphi 0, %s25
    %s45 = sphi 0, %s45
    %s47 = sphi 0, %s45
    %s48 = sphi 0, %s47
    %s62 = sphi 0, %s48
    %s66 = sphi 0, %s66
    %s68 = sphi 0, %s66
    %s69 = sphi 0, %s68
    %s83 = sphi 0, %s69
    %s87 = sphi 0, %s87
    %s89 = sphi 0, %s87
    %s90 = sphi 0, %s89
    %s104 = sphi 0, %s90
    %s108 = sphi 0, %s108
    %s110 = sphi 0, %s108
    %s111 = sphi 0, %s110
    %s125 = sphi 0, %s111
    %s131 = sphi 0, %s133
    %s134 = sphi 0, %s131
    %s135 = sphi 0, %s134
    %s151 = sphi 0, %s135
  $region4: #{classification_head.1} parent=0 // loop_header_branch
    %14 = sbr.rel (%p12) target = $region8
  $region5: #{classification_head.1} parent=0 // loop_body
    %s16 = ssub.s32 %s11, 1
    %s17 = ssub.s32 %s11, 2
    %s18 = sadd.s32 %s11, 1
    %s19 = ssub.s32 %s11, %s18
    %p20 = scmp.eq.s32.totalorder %s19, 0
    %s22 = sadd.s32 %s21, 1
    %s23 = scalar_select %p20, %s21, %s22
    %p26 = pneg %p20
    %p27 = scmp.eq.s32.totalorder %s11, 1
    %p28 = por %p26, %p27
    %p29 = scmp.ne.s32.totalorder %s21, %s24
    %p30 = scmp.eq.s32.totalorder %s11, 0
    %p31 = por %p29, %p30
    %p32 = scmp.ne.s32.totalorder %s21, %s24
    %p33 = scmp.eq.s32.totalorder %s16, 1
    %p34 = por %p32, %p33
    %p35 = scmp.ne.s32.totalorder %s24, %s25
    %p36 = scmp.eq.s32.totalorder %s16, 0
    %p37 = por %p35, %p36
    %p38 = scmp.ne.s32.totalorder %s24, %s25
    %p39 = scmp.eq.s32.totalorder %s17, 1
    %p40 = por %p38, %p39
    %p42 = scmp.ne.s32.totalorder %s25, %s41
    %p43 = scmp.eq.s32.totalorder %s17, 0
    %p44 = por %p42, %p43
    %s46 = sadd.s32 %s45, 1
    %p49 = scmp.eq.s32.totalorder %s11, 1
    %p50 = scmp.ne.s32.totalorder %s45, %s47
    %p51 = scmp.eq.s32.totalorder %s11, 0
    %p52 = por %p50, %p51
    %p53 = scmp.ne.s32.totalorder %s45, %s47
    %p54 = scmp.eq.s32.totalorder %s16, 1
    %p55 = por %p53, %p54
    %p56 = scmp.ne.s32.totalorder %s47, %s48
    %p57 = scmp.eq.s32.totalorder %s16, 0
    %p58 = por %p56, %p57
    %p59 = scmp.ne.s32.totalorder %s47, %s48
    %p60 = scmp.eq.s32.totalorder %s17, 1
    %p61 = por %p59, %p60
    %p63 = scmp.ne.s32.totalorder %s48, %s62
    %p64 = scmp.eq.s32.totalorder %s17, 0
    %p65 = por %p63, %p64
    %s67 = sadd.s32 %s66, 1
    %p70 = scmp.eq.s32.totalorder %s11, 1
    %p71 = scmp.ne.s32.totalorder %s66, %s68
    %p72 = scmp.eq.s32.totalorder %s11, 0
    %p73 = por %p71, %p72
    %p74 = scmp.ne.s32.totalorder %s66, %s68
    %p75 = scmp.eq.s32.totalorder %s16, 1
    %p76 = por %p74, %p75
    %p77 = scmp.ne.s32.totalorder %s68, %s69
    %p78 = scmp.eq.s32.totalorder %s16, 0
    %p79 = por %p77, %p78
    %p80 = scmp.ne.s32.totalorder %s68, %s69
    %p81 = scmp.eq.s32.totalorder %s17, 1
    %p82 = por %p80, %p81
    %p84 = scmp.ne.s32.totalorder %s69, %s83
    %p85 = scmp.eq.s32.totalorder %s17, 0
    %p86 = por %p84, %p85
    %s88 = sadd.s32 %s87, 1
    %p91 = scmp.eq.s32.totalorder %s11, 1
    %p92 = scmp.ne.s32.totalorder %s87, %s89
    %p93 = scmp.eq.s32.totalorder %s11, 0
    %p94 = por %p92, %p93
    %p95 = scmp.ne.s32.totalorder %s87, %s89
    %p96 = scmp.eq.s32.totalorder %s16, 1
    %p97 = por %p95, %p96
    %p98 = scmp.ne.s32.totalorder %s89, %s90
    %p99 = scmp.eq.s32.totalorder %s16, 0
    %p100 = por %p98, %p99
    %p101 = scmp.ne.s32.totalorder %s89, %s90
    %p102 = scmp.eq.s32.totalorder %s17, 1
    %p103 = por %p101, %p102
    %p105 = scmp.ne.s32.totalorder %s90, %s104
    %p106 = scmp.eq.s32.totalorder %s17, 0
    %p107 = por %p105, %p106
    %s109 = sadd.s32 %s108, 1
    %p112 = scmp.eq.s32.totalorder %s11, 1
    %p113 = scmp.ne.s32.totalorder %s108, %s110
    %p114 = scmp.eq.s32.totalorder %s11, 0
    %p115 = por %p113, %p114
    %p116 = scmp.ne.s32.totalorder %s108, %s110
    %p117 = scmp.eq.s32.totalorder %s16, 1
    %p118 = por %p116, %p117
    %p119 = scmp.ne.s32.totalorder %s110, %s111
    %p120 = scmp.eq.s32.totalorder %s16, 0
    %p121 = por %p119, %p120
    %p122 = scmp.ne.s32.totalorder %s110, %s111
    %p123 = scmp.eq.s32.totalorder %s17, 1
    %p124 = por %p122, %p123
    %p126 = scmp.ne.s32.totalorder %s111, %s125
    %p127 = scmp.eq.s32.totalorder %s17, 0
    %p128 = por %p126, %p127
    %s129 = ssub.s32 %s11, %s18
    %p130 = scmp.eq.s32.totalorder %s129, 0
    %s132 = sadd.s32 %s131, 1
    %s133 = scalar_select %p130, %s131, %s132
    %p136 = pneg %p130
    %p137 = scmp.eq.s32.totalorder %s11, 1
    %p138 = por %p136, %p137
    %p139 = scmp.ne.s32.totalorder %s131, %s134
    %p140 = scmp.eq.s32.totalorder %s11, 0
    %p141 = por %p139, %p140
    %p142 = scmp.ne.s32.totalorder %s131, %s134
    %p143 = scmp.eq.s32.totalorder %s16, 1
    %p144 = por %p142, %p143
    %p145 = scmp.ne.s32.totalorder %s134, %s135
    %p146 = scmp.eq.s32.totalorder %s16, 0
    %p147 = por %p145, %p146
    %p148 = scmp.ne.s32.totalorder %s134, %s135
    %p149 = scmp.eq.s32.totalorder %s17, 1
    %p150 = por %p148, %p149
    %p152 = scmp.ne.s32.totalorder %s135, %s151
    %p153 = scmp.eq.s32.totalorder %s17, 0
    %p154 = por %p152, %p153
    %p155 = scmp.le.s32.totalorder 1, %s11
    %p156 = scmp.lt.s32.totalorder %s11, 3
    %p157 = pnand %p155, %p156
    %p158 = pneg %p157
    // Predicated region
    $region9: #{classification_head.1} parent=5 // pred_check
      _
    $region10: #{classification_head.1} parent=5 // pred_check_branch
      %160 = sbr.rel (%p157) target = $region12
    $region11: #{classification_head.1} parent=5 // pred_region
      %s161 = ssub.s32 %s11, 1
      // Predicated region
      $region13: #{classification_head.1} parent=11 // pred_check
        %p162 = pneg %p58
      $region14: #{classification_head.1} parent=11 // pred_check_branch
        %164 = sbr.rel (%p162) target = $region16
      $region15: #{classification_head.1} parent=11 // pred_region
        _
      $region16: #{classification_head.1} parent=11 // pred_fallthru
        _
      // Predicated region
      $region17: #{classification_head.1} parent=11 // pred_check
        %p165 = pneg %p79
      $region18: #{classification_head.1} parent=11 // pred_check_branch
        %167 = sbr.rel (%p165) target = $region20
      $region19: #{classification_head.1} parent=11 // pred_region
        _
      $region20: #{classification_head.1} parent=11 // pred_fallthru
        _
      // Predicated region
      $region21: #{classification_head.1} parent=11 // pred_check
        %p168 = pneg %p100
      $region22: #{classification_head.1} parent=11 // pred_check_branch
        %170 = sbr.rel (%p168) target = $region24
      $region23: #{classification_head.1} parent=11 // pred_region
        _
      $region24: #{classification_head.1} parent=11 // pred_fallthru
        _
      // Predicated region
      $region25: #{classification_head.1} parent=11 // pred_check
        %p171 = pneg %p121
      $region26: #{classification_head.1} parent=11 // pred_check_branch
        %173 = sbr.rel (%p171) target = $region28
      $region27: #{classification_head.1} parent=11 // pred_region
        _
      $region28: #{classification_head.1} parent=11 // pred_fallthru
        _
    $region12: #{classification_head.1} parent=5 // pred_fallthru
      _
    %p174 = scmp.lt.s32.totalorder %s11, 2
    // Predicated region
    $region29: #{classification_head.1} parent=5 // pred_check
      %p175 = pneg %p174
    $region30: #{classification_head.1} parent=5 // pred_check_branch
      %177 = sbr.rel (%p175) target = $region32
    $region31: #{classification_head.1} parent=5 // pred_region
      // Predicated region
      $region33: #{classification_head.1} parent=31 // pred_check
        %p178 = pneg %p31
      $region34: #{classification_head.1} parent=31 // pred_check_branch
        %180 = sbr.rel (%p178) target = $region36
      $region35: #{classification_head.1} parent=31 // pred_region
        %s181 = smul.u32 4, %s11
        %p182 = scmp.lt.s32.totalorder %s181, 7
        %s183 = scalar_select %p182, %s181, 7
        %s184 = smul.addr %s183, 14
        %s185 = smul.addr %s184, 4
        %s186 = scalar_lea.vmem %s0, %s185
        %s187 = smul.u32 4, %s11
      $region36: #{classification_head.1} parent=31 // pred_fallthru
        _
    $region32: #{classification_head.1} parent=5 // pred_fallthru
      _
    %p188 = scmp.le.s32.totalorder 1, %s11
    %p189 = scmp.lt.s32.totalorder %s11, 3
    %p190 = pnand %p188, %p189
    %p191 = pneg %p190
    // Predicated region
    $region37: #{classification_head.1} parent=5 // pred_check
      _
    $region38: #{classification_head.1} parent=5 // pred_check_branch
      %193 = sbr.rel (%p190) target = $region40
    $region39: #{classification_head.1} parent=5 // pred_region
      %s194 = ssub.s32 %s11, 1
      %s195 = smul.u32 4, %s16
      %p196 = scmp.lt.s32.totalorder %s195, 7
      %s197 = scalar_select %p196, %s195, 7
      %s198 = smul.addr %s197, 14
      %s199 = smul.addr %s198, 4
      %s200 = scalar_lea.vmem %s0, %s199
      %p201 = pneg %p37
      %p202 = pneg %p34
      %p203 = pneg %p58
      %p204 = pneg %p55
      %p205 = pneg %p79
      %p206 = pneg %p76
      %p207 = pneg %p100
      %p208 = pneg %p97
      %p209 = pneg %p121
      %p210 = pneg %p118
      %p211 = pneg %p147
      %p212 = pneg %p144
      %s213 = smul.u32 4, %s16
      %p214 = scmp.lt.s32.totalorder %s213, 7
      %s215 = scalar_select %p214, %s213, 7
      %s216 = smul.addr %s215, 8
      %s217 = smul.addr %s216, 8
      %s218 = scalar_lea.vmem %s5, %s217
      %s219 = smul.u32 4, %s16
      %p220 = scmp.lt.s32.totalorder %s219, 7
      %s221 = scalar_select %p220, %s219, 7
      %s222 = smul.addr %s221, 14
      %s223 = smul.addr %s222, 4
      %s224 = scalar_lea.vmem %s0, %s223
      %s225 = smul.u32 4, %s16
      %s226 = smul.u32 4, %s16
      %p227 = scmp.lt.s32.totalorder %s226, 7
      %s228 = scalar_select %p227, %s226, 7
      %s229 = smul.addr %s228, 8
      %s230 = smul.addr %s229, 8
      %s231 = scalar_lea.vmem %s5, %s230
      %s232 = smul.u32 4, %s16
      %v233 = vld [vmem:[%s224] sm:$0xf]
      %v234 = vld [vmem:[%s224 + $0x4] sm:$0xf]
      %v235 = vld [vmem:[%s224 + $0x8] sm:$0xf]
      %v236 = vld [vmem:[%s224 + $0xc] sm:$0xf]
      %v237 = vld [vmem:[%s224 + $0x10] sm:$0xf]
      %v238 = vld [vmem:[%s224 + $0x14] sm:$0xf]
      %v239 = vld [vmem:[%s224 + $0x18] sm:$0xf]
      %v240 = vld [vmem:[%s224 + $0x1c] sm:$0xf]
      %v241 = vld [vmem:[%s224 + $0x20] sm:$0xf]
      %v242 = vld [vmem:[%s224 + $0x24] sm:$0xf]
      %s243 = scalar_lea.vmem %s224, 56
      %v244 = vld [vmem:[%s243] sm:$0xf]
      %v245 = vld [vmem:[%s243 + $0x4] sm:$0xf]
      %v246 = vld [vmem:[%s243 + $0x8] sm:$0xf]
      %v247 = vld [vmem:[%s243 + $0xc] sm:$0xf]
      %v248 = vld [vmem:[%s243 + $0x10] sm:$0xf]
      %v249 = vld [vmem:[%s243 + $0x14] sm:$0xf]
      %v250 = vld [vmem:[%s243 + $0x18] sm:$0xf]
      %v251 = vld [vmem:[%s243 + $0x1c] sm:$0xf]
      %v252 = vld [vmem:[%s243 + $0x20] sm:$0xf]
      %v253 = vld [vmem:[%s243 + $0x24] sm:$0xf]
      %s254 = scalar_lea.vmem %s224, 112
      %v255 = vld [vmem:[%s254] sm:$0xf]
      %v256 = vld [vmem:[%s254 + $0x4] sm:$0xf]
      %v257 = vld [vmem:[%s254 + $0x8] sm:$0xf]
      %v258 = vld [vmem:[%s254 + $0xc] sm:$0xf]
      %v259 = vld [vmem:[%s254 + $0x10] sm:$0xf]
      %v260 = vld [vmem:[%s254 + $0x14] sm:$0xf]
      %v261 = vld [vmem:[%s254 + $0x18] sm:$0xf]
      %v262 = vld [vmem:[%s254 + $0x1c] sm:$0xf]
      %v263 = vld [vmem:[%s254 + $0x20] sm:$0xf]
      %v264 = vld [vmem:[%s254 + $0x24] sm:$0xf]
      %s265 = scalar_lea.vmem %s224, 168
      %v266 = vld [vmem:[%s265] sm:$0xf]
      %v267 = vld [vmem:[%s265 + $0x4] sm:$0xf]
      %v268 = vld [vmem:[%s265 + $0x8] sm:$0xf]
      %v269 = vld [vmem:[%s265 + $0xc] sm:$0xf]
      %v270 = vld [vmem:[%s265 + $0x10] sm:$0xf]
      %v271 = vld [vmem:[%s265 + $0x14] sm:$0xf]
      %v272 = vld [vmem:[%s265 + $0x18] sm:$0xf]
      %v273 = vld [vmem:[%s265 + $0x1c] sm:$0xf]
      %v274 = vld [vmem:[%s265 + $0x20] sm:$0xf]
      %v275 = vld [vmem:[%s265 + $0x24] sm:$0xf]
      %v286 = vunpack.c.l.b16 %v233
      %v287 = vunpack.c.l.b16 %v234
      %v288 = vunpack.c.l.b16 %v235
      %v289 = vunpack.c.l.b16 %v236
      %v290 = vunpack.c.l.b16 %v237
      %v291 = vunpack.c.l.b16 %v238
      %v292 = vunpack.c.l.b16 %v239
      %v293 = vunpack.c.l.b16 %v240
      %v294 = vunpack.c.l.b16 %v241
      %v295 = vunpack.c.l.b16 %v242
      %v296 = vpack.c.b16 %v287, %v286
      %v297 = vpack.c.b16 %v289, %v288
      %v298 = vpack.c.b16 %v291, %v290
      %v299 = vpack.c.b16 %v293, %v292
      %v300 = vpack.c.b16 %v295, %v294
      %v316 = vunpack.c.l.b16 %v244
      %v317 = vunpack.c.l.b16 %v245
      %v318 = vunpack.c.l.b16 %v246
      %v319 = vunpack.c.l.b16 %v247
      %v320 = vunpack.c.l.b16 %v248
      %v321 = vunpack.c.l.b16 %v249
      %v322 = vunpack.c.l.b16 %v250
      %v323 = vunpack.c.l.b16 %v251
      %v324 = vunpack.c.l.b16 %v252
      %v325 = vunpack.c.l.b16 %v253
      %v326 = vpack.c.b16 %v317, %v316
      %v327 = vpack.c.b16 %v319, %v318
      %v328 = vpack.c.b16 %v321, %v320
      %v329 = vpack.c.b16 %v323, %v322
      %v330 = vpack.c.b16 %v325, %v324
      %v346 = vunpack.c.l.b16 %v255
      %v347 = vunpack.c.l.b16 %v256
      %v348 = vunpack.c.l.b16 %v257
      %v349 = vunpack.c.l.b16 %v258
      %v350 = vunpack.c.l.b16 %v259
      %v351 = vunpack.c.l.b16 %v260
      %v352 = vunpack.c.l.b16 %v261
      %v353 = vunpack.c.l.b16 %v262
      %v354 = vunpack.c.l.b16 %v263
      %v355 = vunpack.c.l.b16 %v264
      %v356 = vpack.c.b16 %v347, %v346
      %v357 = vpack.c.b16 %v349, %v348
      %v358 = vpack.c.b16 %v351, %v350
      %v359 = vpack.c.b16 %v353, %v352
      %v360 = vpack.c.b16 %v355, %v354
      %v376 = vunpack.c.l.b16 %v266
      %v377 = vunpack.c.l.b16 %v267
      %v378 = vunpack.c.l.b16 %v268
      %v379 = vunpack.c.l.b16 %v269
      %v380 = vunpack.c.l.b16 %v270
      %v381 = vunpack.c.l.b16 %v271
      %v382 = vunpack.c.l.b16 %v272
      %v383 = vunpack.c.l.b16 %v273
      %v384 = vunpack.c.l.b16 %v274
      %v385 = vunpack.c.l.b16 %v275
      %v386 = vpack.c.b16 %v377, %v376
      %v387 = vpack.c.b16 %v379, %v378
      %v388 = vpack.c.b16 %v381, %v380
      %v389 = vpack.c.b16 %v383, %v382
      %v390 = vpack.c.b16 %v385, %v384
      %v396 = vld [vmem:[%s224 + $0x28] sm:$0x1]
      %v397 = vld [vmem:[%s243 + $0x28] sm:$0x1]
      %v398 = vld [vmem:[%s254 + $0x28] sm:$0x1]
      %v399 = vld [vmem:[%s265 + $0x28] sm:$0x1]
      %v401 = vunpack.c.l.b16 %v396
      %v402 = vpack.c.b16 %v401, %v401
      %vm403 = vsmask.f32 7424
      %v405 = vshrl.u32 %v296, 16
      %v407 = vshll.u32 %v296, 16
      %v409 = vrot.slane %v407, 1
      %v410 = vor.u32 %v405, %v409
      %v412 = vshll.u32 %v297, 16
      %v414 = vrot.slane %v412, 1
      %v415 = vsel %vm403, %v410, %v414
      %v416 = vshrl.u32 %v297, 16
      %v418 = vor.u32 %v416, %v414
      %v420 = vshll.u32 %v298, 16
      %v422 = vrot.slane %v420, 1
      %v423 = vsel %vm403, %v418, %v422
      %v424 = vshrl.u32 %v298, 16
      %v426 = vor.u32 %v424, %v422
      %v428 = vshll.u32 %v299, 16
      %v430 = vrot.slane %v428, 1
      %v431 = vsel %vm403, %v426, %v430
      %v432 = vshrl.u32 %v299, 16
      %v434 = vor.u32 %v432, %v430
      %v436 = vshll.u32 %v300, 16
      %v438 = vrot.slane %v436, 1
      %v439 = vsel %vm403, %v434, %v438
      %v440 = vshrl.u32 %v300, 16
      %v442 = vor.u32 %v440, %v438
      %v444 = vshll.u32 %v402, 16
      %v446 = vrot.slane %v444, 1
      %v447 = vsel %vm403, %v442, %v446
      %v454 = vunpack.c.l.b16 %v397
      %v455 = vpack.c.b16 %v454, %v454
      %v457 = vshrl.u32 %v326, 16
      %v459 = vshll.u32 %v326, 16
      %v461 = vrot.slane %v459, 1
      %v462 = vor.u32 %v457, %v461
      %v464 = vshll.u32 %v327, 16
      %v466 = vrot.slane %v464, 1
      %v467 = vsel %vm403, %v462, %v466
      %v468 = vshrl.u32 %v327, 16
      %v470 = vor.u32 %v468, %v466
      %v472 = vshll.u32 %v328, 16
      %v474 = vrot.slane %v472, 1
      %v475 = vsel %vm403, %v470, %v474
      %v476 = vshrl.u32 %v328, 16
      %v478 = vor.u32 %v476, %v474
      %v480 = vshll.u32 %v329, 16
      %v482 = vrot.slane %v480, 1
      %v483 = vsel %vm403, %v478, %v482
      %v484 = vshrl.u32 %v329, 16
      %v486 = vor.u32 %v484, %v482
      %v488 = vshll.u32 %v330, 16
      %v490 = vrot.slane %v488, 1
      %v491 = vsel %vm403, %v486, %v490
      %v492 = vshrl.u32 %v330, 16
      %v494 = vor.u32 %v492, %v490
      %v496 = vshll.u32 %v455, 16
      %v498 = vrot.slane %v496, 1
      %v499 = vsel %vm403, %v494, %v498
      %v506 = vunpack.c.l.b16 %v398
      %v507 = vpack.c.b16 %v506, %v506
      %v509 = vshrl.u32 %v356, 16
      %v511 = vshll.u32 %v356, 16
      %v513 = vrot.slane %v511, 1
      %v514 = vor.u32 %v509, %v513
      %v516 = vshll.u32 %v357, 16
      %v518 = vrot.slane %v516, 1
      %v519 = vsel %vm403, %v514, %v518
      %v520 = vshrl.u32 %v357, 16
      %v522 = vor.u32 %v520, %v518
      %v524 = vshll.u32 %v358, 16
      %v526 = vrot.slane %v524, 1
      %v527 = vsel %vm403, %v522, %v526
      %v528 = vshrl.u32 %v358, 16
      %v530 = vor.u32 %v528, %v526
      %v532 = vshll.u32 %v359, 16
      %v534 = vrot.slane %v532, 1
      %v535 = vsel %vm403, %v530, %v534
      %v536 = vshrl.u32 %v359, 16
      %v538 = vor.u32 %v536, %v534
      %v540 = vshll.u32 %v360, 16
      %v542 = vrot.slane %v540, 1
      %v543 = vsel %vm403, %v538, %v542
      %v544 = vshrl.u32 %v360, 16
      %v546 = vor.u32 %v544, %v542
      %v548 = vshll.u32 %v507, 16
      %v550 = vrot.slane %v548, 1
      %v551 = vsel %vm403, %v546, %v550
      %v558 = vunpack.c.l.b16 %v399
      %v559 = vpack.c.b16 %v558, %v558
      %v561 = vshrl.u32 %v386, 16
      %v563 = vshll.u32 %v386, 16
      %v565 = vrot.slane %v563, 1
      %v566 = vor.u32 %v561, %v565
      %v568 = vshll.u32 %v387, 16
      %v570 = vrot.slane %v568, 1
      %v571 = vsel %vm403, %v566, %v570
      %v572 = vshrl.u32 %v387, 16
      %v574 = vor.u32 %v572, %v570
      %v576 = vshll.u32 %v388, 16
      %v578 = vrot.slane %v576, 1
      %v579 = vsel %vm403, %v574, %v578
      %v580 = vshrl.u32 %v388, 16
      %v582 = vor.u32 %v580, %v578
      %v584 = vshll.u32 %v389, 16
      %v586 = vrot.slane %v584, 1
      %v587 = vsel %vm403, %v582, %v586
      %v588 = vshrl.u32 %v389, 16
      %v590 = vor.u32 %v588, %v586
      %v592 = vshll.u32 %v390, 16
      %v594 = vrot.slane %v592, 1
      %v595 = vsel %vm403, %v590, %v594
      %v596 = vshrl.u32 %v390, 16
      %v598 = vor.u32 %v596, %v594
      %v600 = vshll.u32 %v559, 16
      %v602 = vrot.slane %v600, 1
      %v603 = vsel %vm403, %v598, %v602
      %v609 = vld [vmem:[%s224] sm:$0xe]
      %v610 = vld [vmem:[%s243] sm:$0xe]
      %v611 = vld [vmem:[%s254] sm:$0xe]
      %v612 = vld [vmem:[%s265] sm:$0xe]
      %v614 = vunpack.c.l.b16 %v609
      %v615 = vpack.c.b16 %v287, %v614
      %vm616 = vcmask 1046528
      %v617 = vrot.slane %v615, 1
      %v618 = vrot.slane %v297, 1
      %v619 = vsel %vm616, %v617, %v618
      %v620 = vrot.slane %v298, 1
      %v621 = vsel %vm616, %v618, %v620
      %v622 = vrot.slane %v299, 1
      %v623 = vsel %vm616, %v620, %v622
      %v624 = vrot.slane %v300, 1
      %v625 = vsel %vm616, %v622, %v624
      %v626 = vrot.slane %v402, 1
      %v627 = vsel %vm616, %v624, %v626
      %v634 = vunpack.c.l.b16 %v610
      %v635 = vpack.c.b16 %v317, %v634
      %v636 = vrot.slane %v635, 1
      %v637 = vrot.slane %v327, 1
      %v638 = vsel %vm616, %v636, %v637
      %v639 = vrot.slane %v328, 1
      %v640 = vsel %vm616, %v637, %v639
      %v641 = vrot.slane %v329, 1
      %v642 = vsel %vm616, %v639, %v641
      %v643 = vrot.slane %v330, 1
      %v644 = vsel %vm616, %v641, %v643
      %v645 = vrot.slane %v455, 1
      %v646 = vsel %vm616, %v643, %v645
      %v653 = vunpack.c.l.b16 %v611
      %v654 = vpack.c.b16 %v347, %v653
      %v655 = vrot.slane %v654, 1
      %v656 = vrot.slane %v357, 1
      %v657 = vsel %vm616, %v655, %v656
      %v658 = vrot.slane %v358, 1
      %v659 = vsel %vm616, %v656, %v658
      %v660 = vrot.slane %v359, 1
      %v661 = vsel %vm616, %v658, %v660
      %v662 = vrot.slane %v360, 1
      %v663 = vsel %vm616, %v660, %v662
      %v664 = vrot.slane %v507, 1
      %v665 = vsel %vm616, %v662, %v664
      %v672 = vunpack.c.l.b16 %v612
      %v673 = vpack.c.b16 %v377, %v672
      %v674 = vrot.slane %v673, 1
      %v675 = vrot.slane %v387, 1
      %v676 = vsel %vm616, %v674, %v675
      %v677 = vrot.slane %v388, 1
      %v678 = vsel %vm616, %v675, %v677
      %v679 = vrot.slane %v389, 1
      %v680 = vsel %vm616, %v677, %v679
      %v681 = vrot.slane %v390, 1
      %v682 = vsel %vm616, %v679, %v681
      %v683 = vrot.slane %v559, 1
      %v684 = vsel %vm616, %v681, %v683
      %v690 = vld [vmem:[%s224 + $0x4] sm:$0xe]
      %v691 = vld [vmem:[%s224 + $0x28] sm:$0xf]
      %v692 = vld [vmem:[%s224 + $0x2c] sm:$0x1]
      %v693 = vld [vmem:[%s243 + $0x4] sm:$0xe]
      %v694 = vld [vmem:[%s243 + $0x28] sm:$0xf]
      %v695 = vld [vmem:[%s243 + $0x2c] sm:$0x1]
      %v696 = vld [vmem:[%s254 + $0x4] sm:$0xe]
      %v697 = vld [vmem:[%s254 + $0x28] sm:$0xf]
      %v698 = vld [vmem:[%s254 + $0x2c] sm:$0x1]
      %v699 = vld [vmem:[%s265 + $0x4] sm:$0xe]
      %v700 = vld [vmem:[%s265 + $0x28] sm:$0xf]
      %v701 = vld [vmem:[%s265 + $0x2c] sm:$0x1]
      %v705 = vunpack.c.l.b16 %v690
      %v706 = vunpack.c.l.b16 %v691
      %v707 = vunpack.c.l.b16 %v692
      %v708 = vpack.c.b16 %v288, %v705
      %v709 = vpack.c.b16 %v290, %v289
      %v710 = vpack.c.b16 %v292, %v291
      %v711 = vpack.c.b16 %v294, %v293
      %v712 = vpack.c.b16 %v706, %v295
      %v713 = vpack.c.b16 %v707, %v707
      %v714 = vrot.slane %v708, 1
      %v715 = vrot.slane %v709, 1
      %v716 = vsel %vm616, %v714, %v715
      %v717 = vrot.slane %v710, 1
      %v718 = vsel %vm616, %v715, %v717
      %v719 = vrot.slane %v711, 1
      %v720 = vsel %vm616, %v717, %v719
      %v721 = vrot.slane %v712, 1
      %v722 = vsel %vm616, %v719, %v721
      %v723 = vrot.slane %v713, 1
      %v724 = vsel %vm616, %v721, %v723
      %v733 = vunpack.c.l.b16 %v693
      %v734 = vunpack.c.l.b16 %v694
      %v735 = vunpack.c.l.b16 %v695
      %v736 = vpack.c.b16 %v318, %v733
      %v737 = vpack.c.b16 %v320, %v319
      %v738 = vpack.c.b16 %v322, %v321
      %v739 = vpack.c.b16 %v324, %v323
      %v740 = vpack.c.b16 %v734, %v325
      %v741 = vpack.c.b16 %v735, %v735
      %v742 = vrot.slane %v736, 1
      %v743 = vrot.slane %v737, 1
      %v744 = vsel %vm616, %v742, %v743
      %v745 = vrot.slane %v738, 1
      %v746 = vsel %vm616, %v743, %v745
      %v747 = vrot.slane %v739, 1
      %v748 = vsel %vm616, %v745, %v747
      %v749 = vrot.slane %v740, 1
      %v750 = vsel %vm616, %v747, %v749
      %v751 = vrot.slane %v741, 1
      %v752 = vsel %vm616, %v749, %v751
      %v761 = vunpack.c.l.b16 %v696
      %v762 = vunpack.c.l.b16 %v697
      %v763 = vunpack.c.l.b16 %v698
      %v764 = vpack.c.b16 %v348, %v761
      %v765 = vpack.c.b16 %v350, %v349
      %v766 = vpack.c.b16 %v352, %v351
      %v767 = vpack.c.b16 %v354, %v353
      %v768 = vpack.c.b16 %v762, %v355
      %v769 = vpack.c.b16 %v763, %v763
      %v770 = vrot.slane %v764, 1
      %v771 = vrot.slane %v765, 1
      %v772 = vsel %vm616, %v770, %v771
      %v773 = vrot.slane %v766, 1
      %v774 = vsel %vm616, %v771, %v773
      %v775 = vrot.slane %v767, 1
      %v776 = vsel %vm616, %v773, %v775
      %v777 = vrot.slane %v768, 1
      %v778 = vsel %vm616, %v775, %v777
      %v779 = vrot.slane %v769, 1
      %v780 = vsel %vm616, %v777, %v779
      %v789 = vunpack.c.l.b16 %v699
      %v790 = vunpack.c.l.b16 %v700
      %v791 = vunpack.c.l.b16 %v701
      %v792 = vpack.c.b16 %v378, %v789
      %v793 = vpack.c.b16 %v380, %v379
      %v794 = vpack.c.b16 %v382, %v381
      %v795 = vpack.c.b16 %v384, %v383
      %v796 = vpack.c.b16 %v790, %v385
      %v797 = vpack.c.b16 %v791, %v791
      %v798 = vrot.slane %v792, 1
      %v799 = vrot.slane %v793, 1
      %v800 = vsel %vm616, %v798, %v799
      %v801 = vrot.slane %v794, 1
      %v802 = vsel %vm616, %v799, %v801
      %v803 = vrot.slane %v795, 1
      %v804 = vsel %vm616, %v801, %v803
      %v805 = vrot.slane %v796, 1
      %v806 = vsel %vm616, %v803, %v805
      %v807 = vrot.slane %v797, 1
      %v808 = vsel %vm616, %v805, %v807
      %v814 = vld [vmem:[%s224 + $0x2c] sm:$0x3]
      %v815 = vld [vmem:[%s243 + $0x2c] sm:$0x3]
      %v816 = vld [vmem:[%s254 + $0x2c] sm:$0x3]
      %v817 = vld [vmem:[%s265 + $0x2c] sm:$0x3]
      %v819 = vunpack.c.l.b16 %v814
      %v820 = vpack.c.b16 %v819, %v819
      %vm821 = vsmask.f32 6400
      %v823 = vshrl.u32 %v708, 16
      %v825 = vrot.slane %v823, 1
      %v826 = vshll.u32 %v708, 16
      %v828 = vrot.slane %v826, 2
      %v829 = vor.u32 %v825, %v828
      %v831 = vshrl.u32 %v709, 16
      %v833 = vrot.slane %v831, 1
      %v834 = vshll.u32 %v709, 16
      %v836 = vrot.slane %v834, 2
      %v837 = vor.u32 %v833, %v836
      %v838 = vsel %vm821, %v829, %v837
      %v840 = vshrl.u32 %v710, 16
      %v842 = vrot.slane %v840, 1
      %v843 = vshll.u32 %v710, 16
      %v845 = vrot.slane %v843, 2
      %v846 = vor.u32 %v842, %v845
      %v847 = vsel %vm821, %v837, %v846
      %v849 = vshrl.u32 %v711, 16
      %v851 = vrot.slane %v849, 1
      %v852 = vshll.u32 %v711, 16
      %v854 = vrot.slane %v852, 2
      %v855 = vor.u32 %v851, %v854
      %v856 = vsel %vm821, %v846, %v855
      %v858 = vshrl.u32 %v712, 16
      %v860 = vrot.slane %v858, 1
      %v861 = vshll.u32 %v712, 16
      %v863 = vrot.slane %v861, 2
      %v864 = vor.u32 %v860, %v863
      %v865 = vsel %vm821, %v855, %v864
      %v867 = vshrl.u32 %v820, 16
      %v869 = vrot.slane %v867, 1
      %v870 = vshll.u32 %v820, 16
      %v872 = vrot.slane %v870, 2
      %v873 = vor.u32 %v869, %v872
      %v874 = vsel %vm821, %v864, %v873
      %v881 = vunpack.c.l.b16 %v815
      %v882 = vpack.c.b16 %v881, %v881
      %v884 = vshrl.u32 %v736, 16
      %v886 = vrot.slane %v884, 1
      %v887 = vshll.u32 %v736, 16
      %v889 = vrot.slane %v887, 2
      %v890 = vor.u32 %v886, %v889
      %v892 = vshrl.u32 %v737, 16
      %v894 = vrot.slane %v892, 1
      %v895 = vshll.u32 %v737, 16
      %v897 = vrot.slane %v895, 2
      %v898 = vor.u32 %v894, %v897
      %v899 = vsel %vm821, %v890, %v898
      %v901 = vshrl.u32 %v738, 16
      %v903 = vrot.slane %v901, 1
      %v904 = vshll.u32 %v738, 16
      %v906 = vrot.slane %v904, 2
      %v907 = vor.u32 %v903, %v906
      %v908 = vsel %vm821, %v898, %v907
      %v910 = vshrl.u32 %v739, 16
      %v912 = vrot.slane %v910, 1
      %v913 = vshll.u32 %v739, 16
      %v915 = vrot.slane %v913, 2
      %v916 = vor.u32 %v912, %v915
      %v917 = vsel %vm821, %v907, %v916
      %v919 = vshrl.u32 %v740, 16
      %v921 = vrot.slane %v919, 1
      %v922 = vshll.u32 %v740, 16
      %v924 = vrot.slane %v922, 2
      %v925 = vor.u32 %v921, %v924
      %v926 = vsel %vm821, %v916, %v925
      %v928 = vshrl.u32 %v882, 16
      %v930 = vrot.slane %v928, 1
      %v931 = vshll.u32 %v882, 16
      %v933 = vrot.slane %v931, 2
      %v934 = vor.u32 %v930, %v933
      %v935 = vsel %vm821, %v925, %v934
      %v942 = vunpack.c.l.b16 %v816
      %v943 = vpack.c.b16 %v942, %v942
      %v945 = vshrl.u32 %v764, 16
      %v947 = vrot.slane %v945, 1
      %v948 = vshll.u32 %v764, 16
      %v950 = vrot.slane %v948, 2
      %v951 = vor.u32 %v947, %v950
      %v953 = vshrl.u32 %v765, 16
      %v955 = vrot.slane %v953, 1
      %v956 = vshll.u32 %v765, 16
      %v958 = vrot.slane %v956, 2
      %v959 = vor.u32 %v955, %v958
      %v960 = vsel %vm821, %v951, %v959
      %v962 = vshrl.u32 %v766, 16
      %v964 = vrot.slane %v962, 1
      %v965 = vshll.u32 %v766, 16
      %v967 = vrot.slane %v965, 2
      %v968 = vor.u32 %v964, %v967
      %v969 = vsel %vm821, %v959, %v968
      %v971 = vshrl.u32 %v767, 16
      %v973 = vrot.slane %v971, 1
      %v974 = vshll.u32 %v767, 16
      %v976 = vrot.slane %v974, 2
      %v977 = vor.u32 %v973, %v976
      %v978 = vsel %vm821, %v968, %v977
      %v980 = vshrl.u32 %v768, 16
      %v982 = vrot.slane %v980, 1
      %v983 = vshll.u32 %v768, 16
      %v985 = vrot.slane %v983, 2
      %v986 = vor.u32 %v982, %v985
      %v987 = vsel %vm821, %v977, %v986
      %v989 = vshrl.u32 %v943, 16
      %v991 = vrot.slane %v989, 1
      %v992 = vshll.u32 %v943, 16
      %v994 = vrot.slane %v992, 2
      %v995 = vor.u32 %v991, %v994
      %v996 = vsel %vm821, %v986, %v995
      %v1003 = vunpack.c.l.b16 %v817
      %v1004 = vpack.c.b16 %v1003, %v1003
      %v1006 = vshrl.u32 %v792, 16
      %v1008 = vrot.slane %v1006, 1
      %v1009 = vshll.u32 %v792, 16
      %v1011 = vrot.slane %v1009, 2
      %v1012 = vor.u32 %v1008, %v1011
      %v1014 = vshrl.u32 %v793, 16
      %v1016 = vrot.slane %v1014, 1
      %v1017 = vshll.u32 %v793, 16
      %v1019 = vrot.slane %v1017, 2
      %v1020 = vor.u32 %v1016, %v1019
      %v1021 = vsel %vm821, %v1012, %v1020
      %v1023 = vshrl.u32 %v794, 16
      %v1025 = vrot.slane %v1023, 1
      %v1026 = vshll.u32 %v794, 16
      %v1028 = vrot.slane %v1026, 2
      %v1029 = vor.u32 %v1025, %v1028
      %v1030 = vsel %vm821, %v1020, %v1029
      %v1032 = vshrl.u32 %v795, 16
      %v1034 = vrot.slane %v1032, 1
      %v1035 = vshll.u32 %v795, 16
      %v1037 = vrot.slane %v1035, 2
      %v1038 = vor.u32 %v1034, %v1037
      %v1039 = vsel %vm821, %v1029, %v1038
      %v1041 = vshrl.u32 %v796, 16
      %v1043 = vrot.slane %v1041, 1
      %v1044 = vshll.u32 %v796, 16
      %v1046 = vrot.slane %v1044, 2
      %v1047 = vor.u32 %v1043, %v1046
      %v1048 = vsel %vm821, %v1038, %v1047
      %v1050 = vshrl.u32 %v1004, 16
      %v1052 = vrot.slane %v1050, 1
      %v1053 = vshll.u32 %v1004, 16
      %v1055 = vrot.slane %v1053, 2
      %v1056 = vor.u32 %v1052, %v1055
      %v1057 = vsel %vm821, %v1047, %v1056
      %v1063 = vld [vmem:[%s224 + $0x4] sm:$0xc]
      %v1064 = vld [vmem:[%s243 + $0x4] sm:$0xc]
      %v1065 = vld [vmem:[%s254 + $0x4] sm:$0xc]
      %v1066 = vld [vmem:[%s265 + $0x4] sm:$0xc]
      %v1068 = vunpack.c.l.b16 %v1063
      %v1069 = vpack.c.b16 %v288, %v1068
      %vm1070 = vcmask 1045504
      %v1071 = vrot.slane %v1069, 2
      %v1072 = vrot.slane %v709, 2
      %v1073 = vsel %vm1070, %v1071, %v1072
      %v1074 = vrot.slane %v710, 2
      %v1075 = vsel %vm1070, %v1072, %v1074
      %v1076 = vrot.slane %v711, 2
      %v1077 = vsel %vm1070, %v1074, %v1076
      %v1078 = vrot.slane %v712, 2
      %v1079 = vsel %vm1070, %v1076, %v1078
      %v1080 = vrot.slane %v820, 2
      %v1081 = vsel %vm1070, %v1078, %v1080
      %v1088 = vunpack.c.l.b16 %v1064
      %v1089 = vpack.c.b16 %v318, %v1088
      %v1090 = vrot.slane %v1089, 2
      %v1091 = vrot.slane %v737, 2
      %v1092 = vsel %vm1070, %v1090, %v1091
      %v1093 = vrot.slane %v738, 2
      %v1094 = vsel %vm1070, %v1091, %v1093
      %v1095 = vrot.slane %v739, 2
      %v1096 = vsel %vm1070, %v1093, %v1095
      %v1097 = vrot.slane %v740, 2
      %v1098 = vsel %vm1070, %v1095, %v1097
      %v1099 = vrot.slane %v882, 2
      %v1100 = vsel %vm1070, %v1097, %v1099
      %v1107 = vunpack.c.l.b16 %v1065
      %v1108 = vpack.c.b16 %v348, %v1107
      %v1109 = vrot.slane %v1108, 2
      %v1110 = vrot.slane %v765, 2
      %v1111 = vsel %vm1070, %v1109, %v1110
      %v1112 = vrot.slane %v766, 2
      %v1113 = vsel %vm1070, %v1110, %v1112
      %v1114 = vrot.slane %v767, 2
      %v1115 = vsel %vm1070, %v1112, %v1114
      %v1116 = vrot.slane %v768, 2
      %v1117 = vsel %vm1070, %v1114, %v1116
      %v1118 = vrot.slane %v943, 2
      %v1119 = vsel %vm1070, %v1116, %v1118
      %v1126 = vunpack.c.l.b16 %v1066
      %v1127 = vpack.c.b16 %v378, %v1126
      %v1128 = vrot.slane %v1127, 2
      %v1129 = vrot.slane %v793, 2
      %v1130 = vsel %vm1070, %v1128, %v1129
      %v1131 = vrot.slane %v794, 2
      %v1132 = vsel %vm1070, %v1129, %v1131
      %v1133 = vrot.slane %v795, 2
      %v1134 = vsel %vm1070, %v1131, %v1133
      %v1135 = vrot.slane %v796, 2
      %v1136 = vsel %vm1070, %v1133, %v1135
      %v1137 = vrot.slane %v1004, 2
      %v1138 = vsel %vm1070, %v1135, %v1137
      %v1144 = vld [vmem:[%s224 + $0x8] sm:$0xc]
      %v1145 = vld [vmem:[%s224 + $0x2c] sm:$0xf]
      %v1146 = vld [vmem:[%s224 + $0x30] sm:$0x3]
      %v1147 = vld [vmem:[%s243 + $0x8] sm:$0xc]
      %v1148 = vld [vmem:[%s243 + $0x2c] sm:$0xf]
      %v1149 = vld [vmem:[%s243 + $0x30] sm:$0x3]
      %v1150 = vld [vmem:[%s254 + $0x8] sm:$0xc]
      %v1151 = vld [vmem:[%s254 + $0x2c] sm:$0xf]
      %v1152 = vld [vmem:[%s254 + $0x30] sm:$0x3]
      %v1153 = vld [vmem:[%s265 + $0x8] sm:$0xc]
      %v1154 = vld [vmem:[%s265 + $0x2c] sm:$0xf]
      %v1155 = vld [vmem:[%s265 + $0x30] sm:$0x3]
      %v1159 = vunpack.c.l.b16 %v1144
      %v1160 = vunpack.c.l.b16 %v1145
      %v1161 = vunpack.c.l.b16 %v1146
      %v1162 = vpack.c.b16 %v289, %v1159
      %v1163 = vpack.c.b16 %v1160, %v706
      %v1164 = vpack.c.b16 %v1161, %v1161
      %v1165 = vrot.slane %v1162, 2
      %v1166 = vrot.slane %v298, 2
      %v1167 = vsel %vm1070, %v1165, %v1166
      %v1168 = vrot.slane %v299, 2
      %v1169 = vsel %vm1070, %v1166, %v1168
      %v1170 = vrot.slane %v300, 2
      %v1171 = vsel %vm1070, %v1168, %v1170
      %v1172 = vrot.slane %v1163, 2
      %v1173 = vsel %vm1070, %v1170, %v1172
      %v1174 = vrot.slane %v1164, 2
      %v1175 = vsel %vm1070, %v1172, %v1174
      %v1184 = vunpack.c.l.b16 %v1147
      %v1185 = vunpack.c.l.b16 %v1148
      %v1186 = vunpack.c.l.b16 %v1149
      %v1187 = vpack.c.b16 %v319, %v1184
      %v1188 = vpack.c.b16 %v1185, %v734
      %v1189 = vpack.c.b16 %v1186, %v1186
      %v1190 = vrot.slane %v1187, 2
      %v1191 = vrot.slane %v328, 2
      %v1192 = vsel %vm1070, %v1190, %v1191
      %v1193 = vrot.slane %v329, 2
      %v1194 = vsel %vm1070, %v1191, %v1193
      %v1195 = vrot.slane %v330, 2
      %v1196 = vsel %vm1070, %v1193, %v1195
      %v1197 = vrot.slane %v1188, 2
      %v1198 = vsel %vm1070, %v1195, %v1197
      %v1199 = vrot.slane %v1189, 2
      %v1200 = vsel %vm1070, %v1197, %v1199
      %v1209 = vunpack.c.l.b16 %v1150
      %v1210 = vunpack.c.l.b16 %v1151
      %v1211 = vunpack.c.l.b16 %v1152
      %v1212 = vpack.c.b16 %v349, %v1209
      %v1213 = vpack.c.b16 %v1210, %v762
      %v1214 = vpack.c.b16 %v1211, %v1211
      %v1215 = vrot.slane %v1212, 2
      %v1216 = vrot.slane %v358, 2
      %v1217 = vsel %vm1070, %v1215, %v1216
      %v1218 = vrot.slane %v359, 2
      %v1219 = vsel %vm1070, %v1216, %v1218
      %v1220 = vrot.slane %v360, 2
      %v1221 = vsel %vm1070, %v1218, %v1220
      %v1222 = vrot.slane %v1213, 2
      %v1223 = vsel %vm1070, %v1220, %v1222
      %v1224 = vrot.slane %v1214, 2
      %v1225 = vsel %vm1070, %v1222, %v1224
      %v1234 = vunpack.c.l.b16 %v1153
      %v1235 = vunpack.c.l.b16 %v1154
      %v1236 = vunpack.c.l.b16 %v1155
      %v1237 = vpack.c.b16 %v379, %v1234
      %v1238 = vpack.c.b16 %v1235, %v790
      %v1239 = vpack.c.b16 %v1236, %v1236
      %v1240 = vrot.slane %v1237, 2
      %v1241 = vrot.slane %v388, 2
      %v1242 = vsel %vm1070, %v1240, %v1241
      %v1243 = vrot.slane %v389, 2
      %v1244 = vsel %vm1070, %v1241, %v1243
      %v1245 = vrot.slane %v390, 2
      %v1246 = vsel %vm1070, %v1243, %v1245
      %v1247 = vrot.slane %v1238, 2
      %v1248 = vsel %vm1070, %v1245, %v1247
      %v1249 = vrot.slane %v1239, 2
      %v1250 = vsel %vm1070, %v1247, %v1249
      %v1256 = vld [vmem:[%s224 + $0x30] sm:$0x7]
      %v1257 = vld [vmem:[%s243 + $0x30] sm:$0x7]
      %v1258 = vld [vmem:[%s254 + $0x30] sm:$0x7]
      %v1259 = vld [vmem:[%s265 + $0x30] sm:$0x7]
      %v1261 = vunpack.c.l.b16 %v1256
      %v1262 = vpack.c.b16 %v1261, %v1261
      %vm1263 = vsmask.f32 5376
      %v1265 = vshrl.u32 %v1162, 16
      %v1267 = vrot.slane %v1265, 2
      %v1268 = vshll.u32 %v1162, 16
      %v1270 = vrot.slane %v1268, 3
      %v1271 = vor.u32 %v1267, %v1270
      %v1272 = vrot.slane %v424, 2
      %v1273 = vrot.slane %v420, 3
      %v1274 = vor.u32 %v1272, %v1273
      %v1275 = vsel %vm1263, %v1271, %v1274
      %v1276 = vrot.slane %v432, 2
      %v1277 = vrot.slane %v428, 3
      %v1278 = vor.u32 %v1276, %v1277
      %v1279 = vsel %vm1263, %v1274, %v1278
      %v1280 = vrot.slane %v440, 2
      %v1281 = vrot.slane %v436, 3
      %v1282 = vor.u32 %v1280, %v1281
      %v1283 = vsel %vm1263, %v1278, %v1282
      %v1285 = vshrl.u32 %v1163, 16
      %v1287 = vrot.slane %v1285, 2
      %v1288 = vshll.u32 %v1163, 16
      %v1290 = vrot.slane %v1288, 3
      %v1291 = vor.u32 %v1287, %v1290
      %v1292 = vsel %vm1263, %v1282, %v1291
      %v1294 = vshrl.u32 %v1262, 16
      %v1296 = vrot.slane %v1294, 2
      %v1297 = vshll.u32 %v1262, 16
      %v1299 = vrot.slane %v1297, 3
      %v1300 = vor.u32 %v1296, %v1299
      %v1301 = vsel %vm1263, %v1291, %v1300
      %v1308 = vunpack.c.l.b16 %v1257
      %v1309 = vpack.c.b16 %v1308, %v1308
      %v1311 = vshrl.u32 %v1187, 16
      %v1313 = vrot.slane %v1311, 2
      %v1314 = vshll.u32 %v1187, 16
      %v1316 = vrot.slane %v1314, 3
      %v1317 = vor.u32 %v1313, %v1316
      %v1318 = vrot.slane %v476, 2
      %v1319 = vrot.slane %v472, 3
      %v1320 = vor.u32 %v1318, %v1319
      %v1321 = vsel %vm1263, %v1317, %v1320
      %v1322 = vrot.slane %v484, 2
      %v1323 = vrot.slane %v480, 3
      %v1324 = vor.u32 %v1322, %v1323
      %v1325 = vsel %vm1263, %v1320, %v1324
      %v1326 = vrot.slane %v492, 2
      %v1327 = vrot.slane %v488, 3
      %v1328 = vor.u32 %v1326, %v1327
      %v1329 = vsel %vm1263, %v1324, %v1328
      %v1331 = vshrl.u32 %v1188, 16
      %v1333 = vrot.slane %v1331, 2
      %v1334 = vshll.u32 %v1188, 16
      %v1336 = vrot.slane %v1334, 3
      %v1337 = vor.u32 %v1333, %v1336
      %v1338 = vsel %vm1263, %v1328, %v1337
      %v1340 = vshrl.u32 %v1309, 16
      %v1342 = vrot.slane %v1340, 2
      %v1343 = vshll.u32 %v1309, 16
      %v1345 = vrot.slane %v1343, 3
      %v1346 = vor.u32 %v1342, %v1345
      %v1347 = vsel %vm1263, %v1337, %v1346
      %v1354 = vunpack.c.l.b16 %v1258
      %v1355 = vpack.c.b16 %v1354, %v1354
      %v1357 = vshrl.u32 %v1212, 16
      %v1359 = vrot.slane %v1357, 2
      %v1360 = vshll.u32 %v1212, 16
      %v1362 = vrot.slane %v1360, 3
      %v1363 = vor.u32 %v1359, %v1362
      %v1364 = vrot.slane %v528, 2
      %v1365 = vrot.slane %v524, 3
      %v1366 = vor.u32 %v1364, %v1365
      %v1367 = vsel %vm1263, %v1363, %v1366
      %v1368 = vrot.slane %v536, 2
      %v1369 = vrot.slane %v532, 3
      %v1370 = vor.u32 %v1368, %v1369
      %v1371 = vsel %vm1263, %v1366, %v1370
      %v1372 = vrot.slane %v544, 2
      %v1373 = vrot.slane %v540, 3
      %v1374 = vor.u32 %v1372, %v1373
      %v1375 = vsel %vm1263, %v1370, %v1374
      %v1377 = vshrl.u32 %v1213, 16
      %v1379 = vrot.slane %v1377, 2
      %v1380 = vshll.u32 %v1213, 16
      %v1382 = vrot.slane %v1380, 3
      %v1383 = vor.u32 %v1379, %v1382
      %v1384 = vsel %vm1263, %v1374, %v1383
      %v1386 = vshrl.u32 %v1355, 16
      %v1388 = vrot.slane %v1386, 2
      %v1389 = vshll.u32 %v1355, 16
      %v1391 = vrot.slane %v1389, 3
      %v1392 = vor.u32 %v1388, %v1391
      %v1393 = vsel %vm1263, %v1383, %v1392
      %v1400 = vunpack.c.l.b16 %v1259
      %v1401 = vpack.c.b16 %v1400, %v1400
      %v1403 = vshrl.u32 %v1237, 16
      %v1405 = vrot.slane %v1403, 2
      %v1406 = vshll.u32 %v1237, 16
      %v1408 = vrot.slane %v1406, 3
      %v1409 = vor.u32 %v1405, %v1408
      %v1410 = vrot.slane %v580, 2
      %v1411 = vrot.slane %v576, 3
      %v1412 = vor.u32 %v1410, %v1411
      %v1413 = vsel %vm1263, %v1409, %v1412
      %v1414 = vrot.slane %v588, 2
      %v1415 = vrot.slane %v584, 3
      %v1416 = vor.u32 %v1414, %v1415
      %v1417 = vsel %vm1263, %v1412, %v1416
      %v1418 = vrot.slane %v596, 2
      %v1419 = vrot.slane %v592, 3
      %v1420 = vor.u32 %v1418, %v1419
      %v1421 = vsel %vm1263, %v1416, %v1420
      %v1423 = vshrl.u32 %v1238, 16
      %v1425 = vrot.slane %v1423, 2
      %v1426 = vshll.u32 %v1238, 16
      %v1428 = vrot.slane %v1426, 3
      %v1429 = vor.u32 %v1425, %v1428
      %v1430 = vsel %vm1263, %v1420, %v1429
      %v1432 = vshrl.u32 %v1401, 16
      %v1434 = vrot.slane %v1432, 2
      %v1435 = vshll.u32 %v1401, 16
      %v1437 = vrot.slane %v1435, 3
      %v1438 = vor.u32 %v1434, %v1437
      %v1439 = vsel %vm1263, %v1429, %v1438
      %v1445 = vld [vmem:[%s224 + $0x8] sm:$0x8]
      %v1446 = vld [vmem:[%s243 + $0x8] sm:$0x8]
      %v1447 = vld [vmem:[%s254 + $0x8] sm:$0x8]
      %v1448 = vld [vmem:[%s265 + $0x8] sm:$0x8]
      %v1450 = vunpack.c.l.b16 %v1445
      %v1451 = vpack.c.b16 %v289, %v1450
      %vm1452 = vcmask 1044480
      %v1453 = vrot.slane %v1451, 3
      %v1454 = vrot.slane %v298, 3
      %v1455 = vsel %vm1452, %v1453, %v1454
      %v1456 = vrot.slane %v299, 3
      %v1457 = vsel %vm1452, %v1454, %v1456
      %v1458 = vrot.slane %v300, 3
      %v1459 = vsel %vm1452, %v1456, %v1458
      %v1460 = vrot.slane %v1163, 3
      %v1461 = vsel %vm1452, %v1458, %v1460
      %v1462 = vrot.slane %v1262, 3
      %v1463 = vsel %vm1452, %v1460, %v1462
      %v1470 = vunpack.c.l.b16 %v1446
      %v1471 = vpack.c.b16 %v319, %v1470
      %v1472 = vrot.slane %v1471, 3
      %v1473 = vrot.slane %v328, 3
      %v1474 = vsel %vm1452, %v1472, %v1473
      %v1475 = vrot.slane %v329, 3
      %v1476 = vsel %vm1452, %v1473, %v1475
      %v1477 = vrot.slane %v330, 3
      %v1478 = vsel %vm1452, %v1475, %v1477
      %v1479 = vrot.slane %v1188, 3
      %v1480 = vsel %vm1452, %v1477, %v1479
      %v1481 = vrot.slane %v1309, 3
      %v1482 = vsel %vm1452, %v1479, %v1481
      %v1489 = vunpack.c.l.b16 %v1447
      %v1490 = vpack.c.b16 %v349, %v1489
      %v1491 = vrot.slane %v1490, 3
      %v1492 = vrot.slane %v358, 3
      %v1493 = vsel %vm1452, %v1491, %v1492
      %v1494 = vrot.slane %v359, 3
      %v1495 = vsel %vm1452, %v1492, %v1494
      %v1496 = vrot.slane %v360, 3
      %v1497 = vsel %vm1452, %v1494, %v1496
      %v1498 = vrot.slane %v1213, 3
      %v1499 = vsel %vm1452, %v1496, %v1498
      %v1500 = vrot.slane %v1355, 3
      %v1501 = vsel %vm1452, %v1498, %v1500
      %v1508 = vunpack.c.l.b16 %v1448
      %v1509 = vpack.c.b16 %v379, %v1508
      %v1510 = vrot.slane %v1509, 3
      %v1511 = vrot.slane %v388, 3
      %v1512 = vsel %vm1452, %v1510, %v1511
      %v1513 = vrot.slane %v389, 3
      %v1514 = vsel %vm1452, %v1511, %v1513
      %v1515 = vrot.slane %v390, 3
      %v1516 = vsel %vm1452, %v1513, %v1515
      %v1517 = vrot.slane %v1238, 3
      %v1518 = vsel %vm1452, %v1515, %v1517
      %v1519 = vrot.slane %v1401, 3
      %v1520 = vsel %vm1452, %v1517, %v1519
      %v1526 = vld [vmem:[%s1] sm:$0xf]
      %v1527 = vld [vmem:[%s1 + $0x4] sm:$0xf]
      %v1528 = vld [vmem:[%s1 + $0x8] sm:$0xf]
      %v1529 = vld [vmem:[%s1 + $0xc] sm:$0xf]
      %v1530 = vld [vmem:[%s1 + $0x10] sm:$0xf]
      %v1531 = vld [vmem:[%s1 + $0x14] sm:$0xf]
      %v1532 = vld [vmem:[%s1 + $0x18] sm:$0xf]
      %v1533 = vld [vmem:[%s1 + $0x1c] sm:$0xf]
      %v1534 = vld [vmem:[%s1 + $0x20] sm:$0xf]
      %v1535 = vld [vmem:[%s1 + $0x24] sm:$0xf]
      %v1536 = vld [vmem:[%s1 + $0x28] sm:$0xf]
      %v1537 = vld [vmem:[%s1 + $0x2c] sm:$0xf]
      %v1538 = vld [vmem:[%s1 + $0x30] sm:$0xf]
      %v1539 = vld [vmem:[%s1 + $0x34] sm:$0xf]
      %v1540 = vld [vmem:[%s1 + $0x38] sm:$0xf]
      %v1541 = vld [vmem:[%s1 + $0x3c] sm:$0xf]
      %v1542 = vld [vmem:[%s1 + $0x40] sm:$0xf]
      %v1543 = vld [vmem:[%s1 + $0x44] sm:$0xf]
      %v1544 = vld [vmem:[%s1 + $0x48] sm:$0xf]
      %v1545 = vld [vmem:[%s1 + $0x4c] sm:$0xf]
      %v1546 = vld [vmem:[%s1 + $0x50] sm:$0xf]
      %v1547 = vld [vmem:[%s1 + $0x54] sm:$0xf]
      %v1548 = vld [vmem:[%s1 + $0x58] sm:$0xf]
      %v1549 = vld [vmem:[%s1 + $0x5c] sm:$0xf]
      %v1550 = vld [vmem:[%s1 + $0x60] sm:$0xf]
      %v1551 = vld [vmem:[%s1 + $0x64] sm:$0xf]
      %v1552 = vld [vmem:[%s1 + $0x68] sm:$0xf]
      %v1553 = vld [vmem:[%s1 + $0x6c] sm:$0xf]
      %v1554 = vld [vmem:[%s1 + $0x70] sm:$0xf]
      %v1555 = vld [vmem:[%s1 + $0x74] sm:$0xf]
      %v1556 = vld [vmem:[%s1 + $0x78] sm:$0xf]
      %v1557 = vld [vmem:[%s1 + $0x7c] sm:$0xf]
      %v1558 = vld [vmem:[%s1 + $0x80] sm:$0xf]
      %v1559 = vld [vmem:[%s1 + $0x84] sm:$0xf]
      %v1560 = vld [vmem:[%s1 + $0x88] sm:$0xf]
      %v1561 = vld [vmem:[%s1 + $0x8c] sm:$0xf]
      %v1562 = vld [vmem:[%s1 + $0x90] sm:$0xf]
      %v1563 = vld [vmem:[%s1 + $0x94] sm:$0xf]
      %v1564 = vld [vmem:[%s1 + $0x98] sm:$0xf]
      %v1565 = vld [vmem:[%s1 + $0x9c] sm:$0xf]
      %v1566 = vld [vmem:[%s1 + $0xa0] sm:$0xf]
      %v1567 = vld [vmem:[%s1 + $0xa4] sm:$0xf]
      %v1568 = vld [vmem:[%s1 + $0xa8] sm:$0xf]
      %v1569 = vld [vmem:[%s1 + $0xac] sm:$0xf]
      %v1570 = vld [vmem:[%s1 + $0xb0] sm:$0xf]
      %v1571 = vld [vmem:[%s1 + $0xb4] sm:$0xf]
      %v1572 = vld [vmem:[%s1 + $0xb8] sm:$0xf]
      %v1573 = vld [vmem:[%s1 + $0xbc] sm:$0xf]
      %v1574 = vld [vmem:[%s1 + $0xc0] sm:$0xf]
      %v1575 = vld [vmem:[%s1 + $0xc4] sm:$0xf]
      %v1576 = vld [vmem:[%s1 + $0xc8] sm:$0xf]
      %v1577 = vld [vmem:[%s1 + $0xcc] sm:$0xf]
      %v1578 = vld [vmem:[%s1 + $0xd0] sm:$0xf]
      %v1579 = vld [vmem:[%s1 + $0xd4] sm:$0xf]
      %v1580 = vld [vmem:[%s1 + $0xd8] sm:$0xf]
      %v1581 = vld [vmem:[%s1 + $0xdc] sm:$0xf]
      %v1582 = vld [vmem:[%s1 + $0xe0] sm:$0xf]
      %v1583 = vld [vmem:[%s1 + $0xe4] sm:$0xf]
      %v1584 = vld [vmem:[%s1 + $0xe8] sm:$0xf]
      %v1585 = vld [vmem:[%s1 + $0xec] sm:$0xf]
      %v1586 = vld [vmem:[%s1 + $0xf0] sm:$0xf]
      %v1587 = vld [vmem:[%s1 + $0xf4] sm:$0xf]
      %v1588 = vld [vmem:[%s1 + $0xf8] sm:$0xf]
      %v1589 = vld [vmem:[%s1 + $0xfc] sm:$0xf]
      %v1590 = vld [vmem:[%s1 + $0x100] sm:$0xf]
      %v1591 = vld [vmem:[%s1 + $0x104] sm:$0xf]
      %v1592 = vld [vmem:[%s1 + $0x108] sm:$0xf]
      %v1593 = vld [vmem:[%s1 + $0x10c] sm:$0xf]
      %v1594 = vld [vmem:[%s1 + $0x110] sm:$0xf]
      %v1595 = vld [vmem:[%s1 + $0x114] sm:$0xf]
      %v1596 = vld [vmem:[%s1 + $0x118] sm:$0xf]
      %v1597 = vld [vmem:[%s1 + $0x11c] sm:$0xf]
      %v1598 = vld [vmem:[%s1 + $0x120] sm:$0xf]
      %v1599 = vld [vmem:[%s1 + $0x124] sm:$0xf]
      %v1600 = vld [vmem:[%s1 + $0x128] sm:$0xf]
      %v1601 = vld [vmem:[%s1 + $0x12c] sm:$0xf]
      %v1602 = vld [vmem:[%s1 + $0x130] sm:$0xf]
      %v1603 = vld [vmem:[%s1 + $0x134] sm:$0xf]
      %v1604 = vld [vmem:[%s1 + $0x138] sm:$0xf]
      %v1605 = vld [vmem:[%s1 + $0x13c] sm:$0xf]
      %v1606 = vld [vmem:[%s1 + $0x140] sm:$0xf]
      %v1607 = vld [vmem:[%s1 + $0x144] sm:$0xf]
      %v1608 = vld [vmem:[%s1 + $0x148] sm:$0xf]
      %v1609 = vld [vmem:[%s1 + $0x14c] sm:$0xf]
      %v1610 = vld [vmem:[%s1 + $0x150] sm:$0xf]
      %v1611 = vld [vmem:[%s1 + $0x154] sm:$0xf]
      %v1612 = vld [vmem:[%s1 + $0x158] sm:$0xf]
      %v1613 = vld [vmem:[%s1 + $0x15c] sm:$0xf]
      %v1614 = vld [vmem:[%s1 + $0x160] sm:$0xf]
      %v1615 = vld [vmem:[%s1 + $0x164] sm:$0xf]
      %v1616 = vld [vmem:[%s1 + $0x168] sm:$0xf]
      %v1617 = vld [vmem:[%s1 + $0x16c] sm:$0xf]
      %v1618 = vld [vmem:[%s1 + $0x170] sm:$0xf]
      %v1619 = vld [vmem:[%s1 + $0x174] sm:$0xf]
      %v1620 = vld [vmem:[%s1 + $0x178] sm:$0xf]
      %v1621 = vld [vmem:[%s1 + $0x17c] sm:$0xf]
      %v1622 = vld [vmem:[%s1 + $0x180] sm:$0xf]
      %v1623 = vld [vmem:[%s1 + $0x184] sm:$0xf]
      %v1624 = vld [vmem:[%s1 + $0x188] sm:$0xf]
      %v1625 = vld [vmem:[%s1 + $0x18c] sm:$0xf]
      %v1626 = vld [vmem:[%s1 + $0x190] sm:$0xf]
      %v1627 = vld [vmem:[%s1 + $0x194] sm:$0xf]
      %v1628 = vld [vmem:[%s1 + $0x198] sm:$0xf]
      %v1629 = vld [vmem:[%s1 + $0x19c] sm:$0xf]
      %v1630 = vld [vmem:[%s1 + $0x1a0] sm:$0xf]
      %v1631 = vld [vmem:[%s1 + $0x1a4] sm:$0xf]
      %v1632 = vld [vmem:[%s1 + $0x1a8] sm:$0xf]
      %v1633 = vld [vmem:[%s1 + $0x1ac] sm:$0xf]
      %v1634 = vld [vmem:[%s1 + $0x1b0] sm:$0xf]
      %v1635 = vld [vmem:[%s1 + $0x1b4] sm:$0xf]
      %v1636 = vld [vmem:[%s1 + $0x1b8] sm:$0xf]
      %v1637 = vld [vmem:[%s1 + $0x1bc] sm:$0xf]
      %v1638 = vld [vmem:[%s1 + $0x1c0] sm:$0xf]
      %v1639 = vld [vmem:[%s1 + $0x1c4] sm:$0xf]
      %v1640 = vld [vmem:[%s1 + $0x1c8] sm:$0xf]
      %v1641 = vld [vmem:[%s1 + $0x1cc] sm:$0xf]
      %v1642 = vld [vmem:[%s1 + $0x1d0] sm:$0xf]
      %v1643 = vld [vmem:[%s1 + $0x1d4] sm:$0xf]
      %v1644 = vld [vmem:[%s1 + $0x1d8] sm:$0xf]
      %v1645 = vld [vmem:[%s1 + $0x1dc] sm:$0xf]
      %v1646 = vld [vmem:[%s1 + $0x1e0] sm:$0xf]
      %v1647 = vld [vmem:[%s1 + $0x1e4] sm:$0xf]
      %v1648 = vld [vmem:[%s1 + $0x1e8] sm:$0xf]
      %v1649 = vld [vmem:[%s1 + $0x1ec] sm:$0xf]
      %v1650 = vld [vmem:[%s1 + $0x1f0] sm:$0xf]
      %v1651 = vld [vmem:[%s1 + $0x1f4] sm:$0xf]
      %v1652 = vld [vmem:[%s1 + $0x1f8] sm:$0xf]
      %v1653 = vld [vmem:[%s1 + $0x1fc] sm:$0xf]
      %v1654 = vld [vmem:[%s1 + $0x200] sm:$0xf]
      %v1655 = vld [vmem:[%s1 + $0x204] sm:$0xf]
      %v1656 = vld [vmem:[%s1 + $0x208] sm:$0xf]
      %v1657 = vld [vmem:[%s1 + $0x20c] sm:$0xf]
      %v1658 = vld [vmem:[%s1 + $0x210] sm:$0xf]
      %v1659 = vld [vmem:[%s1 + $0x214] sm:$0xf]
      %v1660 = vld [vmem:[%s1 + $0x218] sm:$0xf]
      %v1661 = vld [vmem:[%s1 + $0x21c] sm:$0xf]
      %v1662 = vld [vmem:[%s1 + $0x220] sm:$0xf]
      %v1663 = vld [vmem:[%s1 + $0x224] sm:$0xf]
      %v1664 = vld [vmem:[%s1 + $0x228] sm:$0xf]
      %v1665 = vld [vmem:[%s1 + $0x22c] sm:$0xf]
      %v1666 = vld [vmem:[%s1 + $0x230] sm:$0xf]
      %v1667 = vld [vmem:[%s1 + $0x234] sm:$0xf]
      %v1668 = vld [vmem:[%s1 + $0x238] sm:$0xf]
      %v1669 = vld [vmem:[%s1 + $0x23c] sm:$0xf]
      %v1670 = vld [vmem:[%s2] sm:$0x1]
      %v1672 = vperm.slane %v1670, 0
      %v1818 = vunpack.c.l.b16 %v1526
      %v1819 = vunpack.c.l.b16 %v1527
      %v1820 = vunpack.c.l.b16 %v1528
      %v1821 = vunpack.c.l.b16 %v1529
      %v1822 = vunpack.c.l.b16 %v1530
      %v1823 = vunpack.c.l.b16 %v1531
      %v1824 = vunpack.c.l.b16 %v1532
      %v1825 = vunpack.c.l.b16 %v1533
      %v1826 = vunpack.c.l.b16 %v1534
      %v1827 = vunpack.c.l.b16 %v1535
      %v1828 = vunpack.c.l.b16 %v1536
      %v1829 = vunpack.c.l.b16 %v1537
      %v1830 = vunpack.c.l.b16 %v1538
      %v1831 = vunpack.c.l.b16 %v1539
      %v1832 = vunpack.c.l.b16 %v1540
      %v1833 = vunpack.c.l.b16 %v1541
      %v1834 = vunpack.c.l.b16 %v1542
      %v1835 = vunpack.c.l.b16 %v1543
      %v1836 = vunpack.c.l.b16 %v1544
      %v1837 = vunpack.c.l.b16 %v1545
      %v1838 = vunpack.c.l.b16 %v1546
      %v1839 = vunpack.c.l.b16 %v1547
      %v1840 = vunpack.c.l.b16 %v1548
      %v1841 = vunpack.c.l.b16 %v1549
      %v1842 = vunpack.c.l.b16 %v1550
      %v1843 = vunpack.c.l.b16 %v1551
      %v1844 = vunpack.c.l.b16 %v1552
      %v1845 = vunpack.c.l.b16 %v1553
      %v1846 = vunpack.c.l.b16 %v1554
      %v1847 = vunpack.c.l.b16 %v1555
      %v1848 = vunpack.c.l.b16 %v1556
      %v1849 = vunpack.c.l.b16 %v1557
      %v1850 = vunpack.c.l.b16 %v1558
      %v1851 = vunpack.c.l.b16 %v1559
      %v1852 = vunpack.c.l.b16 %v1560
      %v1853 = vunpack.c.l.b16 %v1561
      %v1854 = vunpack.c.l.b16 %v1562
      %v1855 = vunpack.c.l.b16 %v1563
      %v1856 = vunpack.c.l.b16 %v1564
      %v1857 = vunpack.c.l.b16 %v1565
      %v1858 = vunpack.c.l.b16 %v1566
      %v1859 = vunpack.c.l.b16 %v1567
      %v1860 = vunpack.c.l.b16 %v1568
      %v1861 = vunpack.c.l.b16 %v1569
      %v1862 = vunpack.c.l.b16 %v1570
      %v1863 = vunpack.c.l.b16 %v1571
      %v1864 = vunpack.c.l.b16 %v1572
      %v1865 = vunpack.c.l.b16 %v1573
      %v1866 = vunpack.c.l.b16 %v1574
      %v1867 = vunpack.c.l.b16 %v1575
      %v1868 = vunpack.c.l.b16 %v1576
      %v1869 = vunpack.c.l.b16 %v1577
      %v1870 = vunpack.c.l.b16 %v1578
      %v1871 = vunpack.c.l.b16 %v1579
      %v1872 = vunpack.c.l.b16 %v1580
      %v1873 = vunpack.c.l.b16 %v1581
      %v1874 = vunpack.c.l.b16 %v1582
      %v1875 = vunpack.c.l.b16 %v1583
      %v1876 = vunpack.c.l.b16 %v1584
      %v1877 = vunpack.c.l.b16 %v1585
      %v1878 = vunpack.c.l.b16 %v1586
      %v1879 = vunpack.c.l.b16 %v1587
      %v1880 = vunpack.c.l.b16 %v1588
      %v1881 = vunpack.c.l.b16 %v1589
      %v1882 = vunpack.c.l.b16 %v1590
      %v1883 = vunpack.c.l.b16 %v1591
      %v1884 = vunpack.c.l.b16 %v1592
      %v1885 = vunpack.c.l.b16 %v1593
      %v1886 = vunpack.c.l.b16 %v1594
      %v1887 = vunpack.c.l.b16 %v1595
      %v1888 = vunpack.c.l.b16 %v1596
      %v1889 = vunpack.c.l.b16 %v1597
      %v1890 = vunpack.c.l.b16 %v1598
      %v1891 = vunpack.c.l.b16 %v1599
      %v1892 = vunpack.c.l.b16 %v1600
      %v1893 = vunpack.c.l.b16 %v1601
      %v1894 = vunpack.c.l.b16 %v1602
      %v1895 = vunpack.c.l.b16 %v1603
      %v1896 = vunpack.c.l.b16 %v1604
      %v1897 = vunpack.c.l.b16 %v1605
      %v1898 = vunpack.c.l.b16 %v1606
      %v1899 = vunpack.c.l.b16 %v1607
      %v1900 = vunpack.c.l.b16 %v1608
      %v1901 = vunpack.c.l.b16 %v1609
      %v1902 = vunpack.c.l.b16 %v1610
      %v1903 = vunpack.c.l.b16 %v1611
      %v1904 = vunpack.c.l.b16 %v1612
      %v1905 = vunpack.c.l.b16 %v1613
      %v1906 = vunpack.c.l.b16 %v1614
      %v1907 = vunpack.c.l.b16 %v1615
      %v1908 = vunpack.c.l.b16 %v1616
      %v1909 = vunpack.c.l.b16 %v1617
      %v1910 = vunpack.c.l.b16 %v1618
      %v1911 = vunpack.c.l.b16 %v1619
      %v1912 = vunpack.c.l.b16 %v1620
      %v1913 = vunpack.c.l.b16 %v1621
      %v1914 = vunpack.c.l.b16 %v1622
      %v1915 = vunpack.c.l.b16 %v1623
      %v1916 = vunpack.c.l.b16 %v1624
      %v1917 = vunpack.c.l.b16 %v1625
      %v1918 = vunpack.c.l.b16 %v1626
      %v1919 = vunpack.c.l.b16 %v1627
      %v1920 = vunpack.c.l.b16 %v1628
      %v1921 = vunpack.c.l.b16 %v1629
      %v1922 = vunpack.c.l.b16 %v1630
      %v1923 = vunpack.c.l.b16 %v1631
      %v1924 = vunpack.c.l.b16 %v1632
      %v1925 = vunpack.c.l.b16 %v1633
      %v1926 = vunpack.c.l.b16 %v1634
      %v1927 = vunpack.c.l.b16 %v1635
      %v1928 = vunpack.c.l.b16 %v1636
      %v1929 = vunpack.c.l.b16 %v1637
      %v1930 = vunpack.c.l.b16 %v1638
      %v1931 = vunpack.c.l.b16 %v1639
      %v1932 = vunpack.c.l.b16 %v1640
      %v1933 = vunpack.c.l.b16 %v1641
      %v1934 = vunpack.c.l.b16 %v1642
      %v1935 = vunpack.c.l.b16 %v1643
      %v1936 = vunpack.c.l.b16 %v1644
      %v1937 = vunpack.c.l.b16 %v1645
      %v1938 = vunpack.c.l.b16 %v1646
      %v1939 = vunpack.c.l.b16 %v1647
      %v1940 = vunpack.c.l.b16 %v1648
      %v1941 = vunpack.c.l.b16 %v1649
      %v1942 = vunpack.c.l.b16 %v1650
      %v1943 = vunpack.c.l.b16 %v1651
      %v1944 = vunpack.c.l.b16 %v1652
      %v1945 = vunpack.c.l.b16 %v1653
      %v1946 = vunpack.c.l.b16 %v1654
      %v1947 = vunpack.c.l.b16 %v1655
      %v1948 = vunpack.c.l.b16 %v1656
      %v1949 = vunpack.c.l.b16 %v1657
      %v1950 = vunpack.c.l.b16 %v1658
      %v1951 = vunpack.c.l.b16 %v1659
      %v1952 = vunpack.c.l.b16 %v1660
      %v1953 = vunpack.c.l.b16 %v1661
      %v1954 = vunpack.c.l.b16 %v1662
      %v1955 = vunpack.c.l.b16 %v1663
      %v1956 = vunpack.c.l.b16 %v1664
      %v1957 = vunpack.c.l.b16 %v1665
      %v1958 = vunpack.c.l.b16 %v1666
      %v1959 = vunpack.c.l.b16 %v1667
      %v1960 = vunpack.c.l.b16 %v1668
      %v1961 = vunpack.c.l.b16 %v1669
      %v1962 = vpack.c.b16 %v1819, %v1818
      %v1963 = vpack.c.b16 %v1821, %v1820
      %v1964 = vpack.c.b16 %v1823, %v1822
      %v1965 = vpack.c.b16 %v1825, %v1824
      %v1966 = vpack.c.b16 %v1827, %v1826
      %v1967 = vpack.c.b16 %v1829, %v1828
      %v1968 = vpack.c.b16 %v1831, %v1830
      %v1969 = vpack.c.b16 %v1833, %v1832
      %v1970 = vpack.c.b16 %v1835, %v1834
      %v1971 = vpack.c.b16 %v1837, %v1836
      %v1972 = vpack.c.b16 %v1839, %v1838
      %v1973 = vpack.c.b16 %v1841, %v1840
      %v1974 = vpack.c.b16 %v1843, %v1842
      %v1975 = vpack.c.b16 %v1845, %v1844
      %v1976 = vpack.c.b16 %v1847, %v1846
      %v1977 = vpack.c.b16 %v1849, %v1848
      %v1978 = vpack.c.b16 %v1851, %v1850
      %v1979 = vpack.c.b16 %v1853, %v1852
      %v1980 = vpack.c.b16 %v1855, %v1854
      %v1981 = vpack.c.b16 %v1857, %v1856
      %v1982 = vpack.c.b16 %v1859, %v1858
      %v1983 = vpack.c.b16 %v1861, %v1860
      %v1984 = vpack.c.b16 %v1863, %v1862
      %v1985 = vpack.c.b16 %v1865, %v1864
      %v1986 = vpack.c.b16 %v1867, %v1866
      %v1987 = vpack.c.b16 %v1869, %v1868
      %v1988 = vpack.c.b16 %v1871, %v1870
      %v1989 = vpack.c.b16 %v1873, %v1872
      %v1990 = vpack.c.b16 %v1875, %v1874
      %v1991 = vpack.c.b16 %v1877, %v1876
      %v1992 = vpack.c.b16 %v1879, %v1878
      %v1993 = vpack.c.b16 %v1881, %v1880
      %v1994 = vpack.c.b16 %v1883, %v1882
      %v1995 = vpack.c.b16 %v1885, %v1884
      %v1996 = vpack.c.b16 %v1887, %v1886
      %v1997 = vpack.c.b16 %v1889, %v1888
      %v1998 = vpack.c.b16 %v1891, %v1890
      %v1999 = vpack.c.b16 %v1893, %v1892
      %v2000 = vpack.c.b16 %v1895, %v1894
      %v2001 = vpack.c.b16 %v1897, %v1896
      %v2002 = vpack.c.b16 %v1899, %v1898
      %v2003 = vpack.c.b16 %v1901, %v1900
      %v2004 = vpack.c.b16 %v1903, %v1902
      %v2005 = vpack.c.b16 %v1905, %v1904
      %v2006 = vpack.c.b16 %v1907, %v1906
      %v2007 = vpack.c.b16 %v1909, %v1908
      %v2008 = vpack.c.b16 %v1911, %v1910
      %v2009 = vpack.c.b16 %v1913, %v1912
      %v2010 = vpack.c.b16 %v1915, %v1914
      %v2011 = vpack.c.b16 %v1917, %v1916
      %v2012 = vpack.c.b16 %v1919, %v1918
      %v2013 = vpack.c.b16 %v1921, %v1920
      %v2014 = vpack.c.b16 %v1923, %v1922
      %v2015 = vpack.c.b16 %v1925, %v1924
      %v2016 = vpack.c.b16 %v1927, %v1926
      %v2017 = vpack.c.b16 %v1929, %v1928
      %v2018 = vpack.c.b16 %v1931, %v1930
      %v2019 = vpack.c.b16 %v1933, %v1932
      %v2020 = vpack.c.b16 %v1935, %v1934
      %v2021 = vpack.c.b16 %v1937, %v1936
      %v2022 = vpack.c.b16 %v1939, %v1938
      %v2023 = vpack.c.b16 %v1941, %v1940
      %v2024 = vpack.c.b16 %v1943, %v1942
      %v2025 = vpack.c.b16 %v1945, %v1944
      %v2026 = vpack.c.b16 %v1947, %v1946
      %v2027 = vpack.c.b16 %v1949, %v1948
      %v2028 = vpack.c.b16 %v1951, %v1950
      %v2029 = vpack.c.b16 %v1953, %v1952
      %v2030 = vpack.c.b16 %v1955, %v1954
      %v2031 = vpack.c.b16 %v1957, %v1956
      %v2032 = vpack.c.b16 %v1959, %v1958
      %v2033 = vpack.c.b16 %v1961, %v1960
      %2106 = vmatpush.bf16.msra.mxu0 %v1969
      %2107 = vmatpush.bf16.msra.mxu0 %v1968
      %2108 = vmatpush.bf16.msra.mxu0 %v1967
      %2109 = vmatpush.bf16.msra.mxu0 %v1966
      %2110 = vmatpush.bf16.msra.mxu0 %v1965
      %2111 = vmatpush.bf16.msra.mxu0 %v1964
      %2112 = vmatpush.bf16.msra.mxu0 %v1963
      %2113 = vmatpush.bf16.msra.mxu0 %v1962
      %2114 = vmatmul.bf16.gmra.mxu0 %v296
      %v2115 = vpop.f32.mrf.mxu0
      %v2116 = vadd.f32 %v1672, %v2115
      %v2117 = vpop.f32.mrf.mxu0
      %v2118 = vadd.f32 %v1672, %v2117
      %2119 = vmatmul.bf16.gmra.mxu0 %v297
      %v2120 = vpop.f32.mrf.mxu0
      %v2121 = vadd.f32 %v1672, %v2120
      %v2122 = vpop.f32.mrf.mxu0
      %v2123 = vadd.f32 %v1672, %v2122
      %2124 = vmatmul.bf16.gmra.mxu0 %v298
      %v2125 = vpop.f32.mrf.mxu0
      %v2126 = vadd.f32 %v1672, %v2125
      %v2127 = vpop.f32.mrf.mxu0
      %v2128 = vadd.f32 %v1672, %v2127
      %2129 = vmatmul.bf16.gmra.mxu0 %v299
      %v2130 = vpop.f32.mrf.mxu0
      %v2131 = vadd.f32 %v1672, %v2130
      %v2132 = vpop.f32.mrf.mxu0
      %v2133 = vadd.f32 %v1672, %v2132
      %2134 = vmatmul.bf16.gmra.mxu0 %v300
      %v2135 = vpop.f32.mrf.mxu0
      %v2136 = vadd.f32 %v1672, %v2135
      %v2137 = vpop.f32.mrf.mxu0
      %v2138 = vadd.f32 %v1672, %v2137
      %2139 = vmatmul.bf16.gmra.mxu0 %v326
      %v2140 = vpop.f32.mrf.mxu0
      %v2141 = vadd.f32 %v1672, %v2140
      %v2142 = vpop.f32.mrf.mxu0
      %v2143 = vadd.f32 %v1672, %v2142
      %2144 = vmatmul.bf16.gmra.mxu0 %v327
      %v2145 = vpop.f32.mrf.mxu0
      %v2146 = vadd.f32 %v1672, %v2145
      %v2147 = vpop.f32.mrf.mxu0
      %v2148 = vadd.f32 %v1672, %v2147
      %2149 = vmatmul.bf16.gmra.mxu0 %v328
      %v2150 = vpop.f32.mrf.mxu0
      %v2151 = vadd.f32 %v1672, %v2150
      %v2152 = vpop.f32.mrf.mxu0
      %v2153 = vadd.f32 %v1672, %v2152
      %2154 = vmatmul.bf16.gmra.mxu0 %v329
      %v2155 = vpop.f32.mrf.mxu0
      %v2156 = vadd.f32 %v1672, %v2155
      %v2157 = vpop.f32.mrf.mxu0
      %v2158 = vadd.f32 %v1672, %v2157
      %2159 = vmatmul.bf16.gmra.mxu0 %v330
      %v2160 = vpop.f32.mrf.mxu0
      %v2161 = vadd.f32 %v1672, %v2160
      %v2162 = vpop.f32.mrf.mxu0
      %v2163 = vadd.f32 %v1672, %v2162
      %2164 = vmatmul.bf16.gmra.mxu0 %v356
      %v2165 = vpop.f32.mrf.mxu0
      %v2166 = vadd.f32 %v1672, %v2165
      %v2167 = vpop.f32.mrf.mxu0
      %v2168 = vadd.f32 %v1672, %v2167
      %2169 = vmatmul.bf16.gmra.mxu0 %v357
      %v2170 = vpop.f32.mrf.mxu0
      %v2171 = vadd.f32 %v1672, %v2170
      %v2172 = vpop.f32.mrf.mxu0
      %v2173 = vadd.f32 %v1672, %v2172
      %2174 = vmatmul.bf16.gmra.mxu0 %v358
      %v2175 = vpop.f32.mrf.mxu0
      %v2176 = vadd.f32 %v1672, %v2175
      %v2177 = vpop.f32.mrf.mxu0
      %v2178 = vadd.f32 %v1672, %v2177
      %2179 = vmatmul.bf16.gmra.mxu0 %v359
      %v2180 = vpop.f32.mrf.mxu0
      %v2181 = vadd.f32 %v1672, %v2180
      %v2182 = vpop.f32.mrf.mxu0
      %v2183 = vadd.f32 %v1672, %v2182
      %2184 = vmatmul.bf16.gmra.mxu0 %v360
      %v2185 = vpop.f32.mrf.mxu0
      %v2186 = vadd.f32 %v1672, %v2185
      %v2187 = vpop.f32.mrf.mxu0
      %v2188 = vadd.f32 %v1672, %v2187
      %2189 = vmatmul.bf16.gmra.mxu0 %v386
      %v2190 = vpop.f32.mrf.mxu0
      %v2191 = vadd.f32 %v1672, %v2190
      %v2192 = vpop.f32.mrf.mxu0
      %v2193 = vadd.f32 %v1672, %v2192
      %2194 = vmatmul.bf16.gmra.mxu0 %v387
      %v2195 = vpop.f32.mrf.mxu0
      %v2196 = vadd.f32 %v1672, %v2195
      %v2197 = vpop.f32.mrf.mxu0
      %v2198 = vadd.f32 %v1672, %v2197
      %2199 = vmatmul.bf16.gmra.mxu0 %v388
      %v2200 = vpop.f32.mrf.mxu0
      %v2201 = vadd.f32 %v1672, %v2200
      %v2202 = vpop.f32.mrf.mxu0
      %v2203 = vadd.f32 %v1672, %v2202
      %2204 = vmatmul.bf16.gmra.mxu0 %v389
      %v2205 = vpop.f32.mrf.mxu0
      %v2206 = vadd.f32 %v1672, %v2205
      %v2207 = vpop.f32.mrf.mxu0
      %v2208 = vadd.f32 %v1672, %v2207
      %2209 = vmatmul.bf16.gmra.mxu0 %v390
      %v2210 = vpop.f32.mrf.mxu0
      %v2211 = vadd.f32 %v1672, %v2210
      %v2212 = vpop.f32.mrf.mxu0
      %v2213 = vadd.f32 %v1672, %v2212
      %2214 = vdwg.mxu0
      %2215 = vmatpush.bf16.msra.mxu0 %v1977
      %2216 = vmatpush.bf16.msra.mxu0 %v1976
      %2217 = vmatpush.bf16.msra.mxu0 %v1975
      %2218 = vmatpush.bf16.msra.mxu0 %v1974
      %2219 = vmatpush.bf16.msra.mxu0 %v1973
      %2220 = vmatpush.bf16.msra.mxu0 %v1972
      %2221 = vmatpush.bf16.msra.mxu0 %v1971
      %2222 = vmatpush.bf16.msra.mxu0 %v1970
      %2223 = vmatmul.bf16.gmra.mxu0 %v415
      %v2224 = vpop.f32.mrf.mxu0
      %v2225 = vadd.f32 %v2116, %v2224
      %v2226 = vpop.f32.mrf.mxu0
      %v2227 = vadd.f32 %v2118, %v2226
      %2228 = vmatmul.bf16.gmra.mxu0 %v423
      %v2229 = vpop.f32.mrf.mxu0
      %v2230 = vadd.f32 %v2121, %v2229
      %v2231 = vpop.f32.mrf.mxu0
      %v2232 = vadd.f32 %v2123, %v2231
      %2233 = vmatmul.bf16.gmra.mxu0 %v431
      %v2234 = vpop.f32.mrf.mxu0
      %v2235 = vadd.f32 %v2126, %v2234
      %v2236 = vpop.f32.mrf.mxu0
      %v2237 = vadd.f32 %v2128, %v2236
      %2238 = vmatmul.bf16.gmra.mxu0 %v439
      %v2239 = vpop.f32.mrf.mxu0
      %v2240 = vadd.f32 %v2131, %v2239
      %v2241 = vpop.f32.mrf.mxu0
      %v2242 = vadd.f32 %v2133, %v2241
      %2243 = vmatmul.bf16.gmra.mxu0 %v447
      %v2244 = vpop.f32.mrf.mxu0
      %v2245 = vadd.f32 %v2136, %v2244
      %v2246 = vpop.f32.mrf.mxu0
      %v2247 = vadd.f32 %v2138, %v2246
      %2248 = vmatmul.bf16.gmra.mxu0 %v467
      %v2249 = vpop.f32.mrf.mxu0
      %v2250 = vadd.f32 %v2141, %v2249
      %v2251 = vpop.f32.mrf.mxu0
      %v2252 = vadd.f32 %v2143, %v2251
      %2253 = vmatmul.bf16.gmra.mxu0 %v475
      %v2254 = vpop.f32.mrf.mxu0
      %v2255 = vadd.f32 %v2146, %v2254
      %v2256 = vpop.f32.mrf.mxu0
      %v2257 = vadd.f32 %v2148, %v2256
      %2258 = vmatmul.bf16.gmra.mxu0 %v483
      %v2259 = vpop.f32.mrf.mxu0
      %v2260 = vadd.f32 %v2151, %v2259
      %v2261 = vpop.f32.mrf.mxu0
      %v2262 = vadd.f32 %v2153, %v2261
      %2263 = vmatmul.bf16.gmra.mxu0 %v491
      %v2264 = vpop.f32.mrf.mxu0
      %v2265 = vadd.f32 %v2156, %v2264
      %v2266 = vpop.f32.mrf.mxu0
      %v2267 = vadd.f32 %v2158, %v2266
      %2268 = vmatmul.bf16.gmra.mxu0 %v499
      %v2269 = vpop.f32.mrf.mxu0
      %v2270 = vadd.f32 %v2161, %v2269
      %v2271 = vpop.f32.mrf.mxu0
      %v2272 = vadd.f32 %v2163, %v2271
      %2273 = vmatmul.bf16.gmra.mxu0 %v519
      %v2274 = vpop.f32.mrf.mxu0
      %v2275 = vadd.f32 %v2166, %v2274
      %v2276 = vpop.f32.mrf.mxu0
      %v2277 = vadd.f32 %v2168, %v2276
      %2278 = vmatmul.bf16.gmra.mxu0 %v527
      %v2279 = vpop.f32.mrf.mxu0
      %v2280 = vadd.f32 %v2171, %v2279
      %v2281 = vpop.f32.mrf.mxu0
      %v2282 = vadd.f32 %v2173, %v2281
      %2283 = vmatmul.bf16.gmra.mxu0 %v535
      %v2284 = vpop.f32.mrf.mxu0
      %v2285 = vadd.f32 %v2176, %v2284
      %v2286 = vpop.f32.mrf.mxu0
      %v2287 = vadd.f32 %v2178, %v2286
      %2288 = vmatmul.bf16.gmra.mxu0 %v543
      %v2289 = vpop.f32.mrf.mxu0
      %v2290 = vadd.f32 %v2181, %v2289
      %v2291 = vpop.f32.mrf.mxu0
      %v2292 = vadd.f32 %v2183, %v2291
      %2293 = vmatmul.bf16.gmra.mxu0 %v551
      %v2294 = vpop.f32.mrf.mxu0
      %v2295 = vadd.f32 %v2186, %v2294
      %v2296 = vpop.f32.mrf.mxu0
      %v2297 = vadd.f32 %v2188, %v2296
      %2298 = vmatmul.bf16.gmra.mxu0 %v571
      %v2299 = vpop.f32.mrf.mxu0
      %v2300 = vadd.f32 %v2191, %v2299
      %v2301 = vpop.f32.mrf.mxu0
      %v2302 = vadd.f32 %v2193, %v2301
      %2303 = vmatmul.bf16.gmra.mxu0 %v579
      %v2304 = vpop.f32.mrf.mxu0
      %v2305 = vadd.f32 %v2196, %v2304
      %v2306 = vpop.f32.mrf.mxu0
      %v2307 = vadd.f32 %v2198, %v2306
      %2308 = vmatmul.bf16.gmra.mxu0 %v587
      %v2309 = vpop.f32.mrf.mxu0
      %v2310 = vadd.f32 %v2201, %v2309
      %v2311 = vpop.f32.mrf.mxu0
      %v2312 = vadd.f32 %v2203, %v2311
      %2313 = vmatmul.bf16.gmra.mxu0 %v595
      %v2314 = vpop.f32.mrf.mxu0
      %v2315 = vadd.f32 %v2206, %v2314
      %v2316 = vpop.f32.mrf.mxu0
      %v2317 = vadd.f32 %v2208, %v2316
      %2318 = vmatmul.bf16.gmra.mxu0 %v603
      %v2319 = vpop.f32.mrf.mxu0
      %v2320 = vadd.f32 %v2211, %v2319
      %v2321 = vpop.f32.mrf.mxu0
      %v2322 = vadd.f32 %v2213, %v2321
      %2323 = vdwg.mxu0
      %2324 = vmatpush.bf16.msra.mxu0 %v1985
      %2325 = vmatpush.bf16.msra.mxu0 %v1984
      %2326 = vmatpush.bf16.msra.mxu0 %v1983
      %2327 = vmatpush.bf16.msra.mxu0 %v1982
      %2328 = vmatpush.bf16.msra.mxu0 %v1981
      %2329 = vmatpush.bf16.msra.mxu0 %v1980
      %2330 = vmatpush.bf16.msra.mxu0 %v1979
      %2331 = vmatpush.bf16.msra.mxu0 %v1978
      %2332 = vmatmul.bf16.gmra.mxu0 %v619
      %v2333 = vpop.f32.mrf.mxu0
      %v2334 = vadd.f32 %v2225, %v2333
      %v2335 = vpop.f32.mrf.mxu0
      %v2336 = vadd.f32 %v2227, %v2335
      %2337 = vmatmul.bf16.gmra.mxu0 %v621
      %v2338 = vpop.f32.mrf.mxu0
      %v2339 = vadd.f32 %v2230, %v2338
      %v2340 = vpop.f32.mrf.mxu0
      %v2341 = vadd.f32 %v2232, %v2340
      %2342 = vmatmul.bf16.gmra.mxu0 %v623
      %v2343 = vpop.f32.mrf.mxu0
      %v2344 = vadd.f32 %v2235, %v2343
      %v2345 = vpop.f32.mrf.mxu0
      %v2346 = vadd.f32 %v2237, %v2345
      %2347 = vmatmul.bf16.gmra.mxu0 %v625
      %v2348 = vpop.f32.mrf.mxu0
      %v2349 = vadd.f32 %v2240, %v2348
      %v2350 = vpop.f32.mrf.mxu0
      %v2351 = vadd.f32 %v2242, %v2350
      %2352 = vmatmul.bf16.gmra.mxu0 %v627
      %v2353 = vpop.f32.mrf.mxu0
      %v2354 = vadd.f32 %v2245, %v2353
      %v2355 = vpop.f32.mrf.mxu0
      %v2356 = vadd.f32 %v2247, %v2355
      %2357 = vmatmul.bf16.gmra.mxu0 %v638
      %v2358 = vpop.f32.mrf.mxu0
      %v2359 = vadd.f32 %v2250, %v2358
      %v2360 = vpop.f32.mrf.mxu0
      %v2361 = vadd.f32 %v2252, %v2360
      %2362 = vmatmul.bf16.gmra.mxu0 %v640
      %v2363 = vpop.f32.mrf.mxu0
      %v2364 = vadd.f32 %v2255, %v2363
      %v2365 = vpop.f32.mrf.mxu0
      %v2366 = vadd.f32 %v2257, %v2365
      %2367 = vmatmul.bf16.gmra.mxu0 %v642
      %v2368 = vpop.f32.mrf.mxu0
      %v2369 = vadd.f32 %v2260, %v2368
      %v2370 = vpop.f32.mrf.mxu0
      %v2371 = vadd.f32 %v2262, %v2370
      %2372 = vmatmul.bf16.gmra.mxu0 %v644
      %v2373 = vpop.f32.mrf.mxu0
      %v2374 = vadd.f32 %v2265, %v2373
      %v2375 = vpop.f32.mrf.mxu0
      %v2376 = vadd.f32 %v2267, %v2375
      %2377 = vmatmul.bf16.gmra.mxu0 %v646
      %v2378 = vpop.f32.mrf.mxu0
      %v2379 = vadd.f32 %v2270, %v2378
      %v2380 = vpop.f32.mrf.mxu0
      %v2381 = vadd.f32 %v2272, %v2380
      %2382 = vmatmul.bf16.gmra.mxu0 %v657
      %v2383 = vpop.f32.mrf.mxu0
      %v2384 = vadd.f32 %v2275, %v2383
      %v2385 = vpop.f32.mrf.mxu0
      %v2386 = vadd.f32 %v2277, %v2385
      %2387 = vmatmul.bf16.gmra.mxu0 %v659
      %v2388 = vpop.f32.mrf.mxu0
      %v2389 = vadd.f32 %v2280, %v2388
      %v2390 = vpop.f32.mrf.mxu0
      %v2391 = vadd.f32 %v2282, %v2390
      %2392 = vmatmul.bf16.gmra.mxu0 %v661
      %v2393 = vpop.f32.mrf.mxu0
      %v2394 = vadd.f32 %v2285, %v2393
      %v2395 = vpop.f32.mrf.mxu0
      %v2396 = vadd.f32 %v2287, %v2395
      %2397 = vmatmul.bf16.gmra.mxu0 %v663
      %v2398 = vpop.f32.mrf.mxu0
      %v2399 = vadd.f32 %v2290, %v2398
      %v2400 = vpop.f32.mrf.mxu0
      %v2401 = vadd.f32 %v2292, %v2400
      %2402 = vmatmul.bf16.gmra.mxu0 %v665
      %v2403 = vpop.f32.mrf.mxu0
      %v2404 = vadd.f32 %v2295, %v2403
      %v2405 = vpop.f32.mrf.mxu0
      %v2406 = vadd.f32 %v2297, %v2405
      %2407 = vmatmul.bf16.gmra.mxu0 %v676
      %v2408 = vpop.f32.mrf.mxu0
      %v2409 = vadd.f32 %v2300, %v2408
      %v2410 = vpop.f32.mrf.mxu0
      %v2411 = vadd.f32 %v2302, %v2410
      %2412 = vmatmul.bf16.gmra.mxu0 %v678
      %v2413 = vpop.f32.mrf.mxu0
      %v2414 = vadd.f32 %v2305, %v2413
      %v2415 = vpop.f32.mrf.mxu0
      %v2416 = vadd.f32 %v2307, %v2415
      %2417 = vmatmul.bf16.gmra.mxu0 %v680
      %v2418 = vpop.f32.mrf.mxu0
      %v2419 = vadd.f32 %v2310, %v2418
      %v2420 = vpop.f32.mrf.mxu0
      %v2421 = vadd.f32 %v2312, %v2420
      %2422 = vmatmul.bf16.gmra.mxu0 %v682
      %v2423 = vpop.f32.mrf.mxu0
      %v2424 = vadd.f32 %v2315, %v2423
      %v2425 = vpop.f32.mrf.mxu0
      %v2426 = vadd.f32 %v2317, %v2425
      %2427 = vmatmul.bf16.gmra.mxu0 %v684
      %v2428 = vpop.f32.mrf.mxu0
      %v2429 = vadd.f32 %v2320, %v2428
      %v2430 = vpop.f32.mrf.mxu0
      %v2431 = vadd.f32 %v2322, %v2430
      %2432 = vdwg.mxu0
      %2433 = vmatpush.bf16.msra.mxu0 %v1993
      %2434 = vmatpush.bf16.msra.mxu0 %v1992
      %2435 = vmatpush.bf16.msra.mxu0 %v1991
      %2436 = vmatpush.bf16.msra.mxu0 %v1990
      %2437 = vmatpush.bf16.msra.mxu0 %v1989
      %2438 = vmatpush.bf16.msra.mxu0 %v1988
      %2439 = vmatpush.bf16.msra.mxu0 %v1987
      %2440 = vmatpush.bf16.msra.mxu0 %v1986
      %2441 = vmatmul.bf16.gmra.mxu0 %v716
      %v2442 = vpop.f32.mrf.mxu0
      %v2443 = vadd.f32 %v2334, %v2442
      %v2444 = vpop.f32.mrf.mxu0
      %v2445 = vadd.f32 %v2336, %v2444
      %2446 = vmatmul.bf16.gmra.mxu0 %v718
      %v2447 = vpop.f32.mrf.mxu0
      %v2448 = vadd.f32 %v2339, %v2447
      %v2449 = vpop.f32.mrf.mxu0
      %v2450 = vadd.f32 %v2341, %v2449
      %2451 = vmatmul.bf16.gmra.mxu0 %v720
      %v2452 = vpop.f32.mrf.mxu0
      %v2453 = vadd.f32 %v2344, %v2452
      %v2454 = vpop.f32.mrf.mxu0
      %v2455 = vadd.f32 %v2346, %v2454
      %2456 = vmatmul.bf16.gmra.mxu0 %v722
      %v2457 = vpop.f32.mrf.mxu0
      %v2458 = vadd.f32 %v2349, %v2457
      %v2459 = vpop.f32.mrf.mxu0
      %v2460 = vadd.f32 %v2351, %v2459
      %2461 = vmatmul.bf16.gmra.mxu0 %v724
      %v2462 = vpop.f32.mrf.mxu0
      %v2463 = vadd.f32 %v2354, %v2462
      %v2464 = vpop.f32.mrf.mxu0
      %v2465 = vadd.f32 %v2356, %v2464
      %2466 = vmatmul.bf16.gmra.mxu0 %v744
      %v2467 = vpop.f32.mrf.mxu0
      %v2468 = vadd.f32 %v2359, %v2467
      %v2469 = vpop.f32.mrf.mxu0
      %v2470 = vadd.f32 %v2361, %v2469
      %2471 = vmatmul.bf16.gmra.mxu0 %v746
      %v2472 = vpop.f32.mrf.mxu0
      %v2473 = vadd.f32 %v2364, %v2472
      %v2474 = vpop.f32.mrf.mxu0
      %v2475 = vadd.f32 %v2366, %v2474
      %2476 = vmatmul.bf16.gmra.mxu0 %v748
      %v2477 = vpop.f32.mrf.mxu0
      %v2478 = vadd.f32 %v2369, %v2477
      %v2479 = vpop.f32.mrf.mxu0
      %v2480 = vadd.f32 %v2371, %v2479
      %2481 = vmatmul.bf16.gmra.mxu0 %v750
      %v2482 = vpop.f32.mrf.mxu0
      %v2483 = vadd.f32 %v2374, %v2482
      %v2484 = vpop.f32.mrf.mxu0
      %v2485 = vadd.f32 %v2376, %v2484
      %2486 = vmatmul.bf16.gmra.mxu0 %v752
      %v2487 = vpop.f32.mrf.mxu0
      %v2488 = vadd.f32 %v2379, %v2487
      %v2489 = vpop.f32.mrf.mxu0
      %v2490 = vadd.f32 %v2381, %v2489
      %2491 = vmatmul.bf16.gmra.mxu0 %v772
      %v2492 = vpop.f32.mrf.mxu0
      %v2493 = vadd.f32 %v2384, %v2492
      %v2494 = vpop.f32.mrf.mxu0
      %v2495 = vadd.f32 %v2386, %v2494
      %2496 = vmatmul.bf16.gmra.mxu0 %v774
      %v2497 = vpop.f32.mrf.mxu0
      %v2498 = vadd.f32 %v2389, %v2497
      %v2499 = vpop.f32.mrf.mxu0
      %v2500 = vadd.f32 %v2391, %v2499
      %2501 = vmatmul.bf16.gmra.mxu0 %v776
      %v2502 = vpop.f32.mrf.mxu0
      %v2503 = vadd.f32 %v2394, %v2502
      %v2504 = vpop.f32.mrf.mxu0
      %v2505 = vadd.f32 %v2396, %v2504
      %2506 = vmatmul.bf16.gmra.mxu0 %v778
      %v2507 = vpop.f32.mrf.mxu0
      %v2508 = vadd.f32 %v2399, %v2507
      %v2509 = vpop.f32.mrf.mxu0
      %v2510 = vadd.f32 %v2401, %v2509
      %2511 = vmatmul.bf16.gmra.mxu0 %v780
      %v2512 = vpop.f32.mrf.mxu0
      %v2513 = vadd.f32 %v2404, %v2512
      %v2514 = vpop.f32.mrf.mxu0
      %v2515 = vadd.f32 %v2406, %v2514
      %2516 = vmatmul.bf16.gmra.mxu0 %v800
      %v2517 = vpop.f32.mrf.mxu0
      %v2518 = vadd.f32 %v2409, %v2517
      %v2519 = vpop.f32.mrf.mxu0
      %v2520 = vadd.f32 %v2411, %v2519
      %2521 = vmatmul.bf16.gmra.mxu0 %v802
      %v2522 = vpop.f32.mrf.mxu0
      %v2523 = vadd.f32 %v2414, %v2522
      %v2524 = vpop.f32.mrf.mxu0
      %v2525 = vadd.f32 %v2416, %v2524
      %2526 = vmatmul.bf16.gmra.mxu0 %v804
      %v2527 = vpop.f32.mrf.mxu0
      %v2528 = vadd.f32 %v2419, %v2527
      %v2529 = vpop.f32.mrf.mxu0
      %v2530 = vadd.f32 %v2421, %v2529
      %2531 = vmatmul.bf16.gmra.mxu0 %v806
      %v2532 = vpop.f32.mrf.mxu0
      %v2533 = vadd.f32 %v2424, %v2532
      %v2534 = vpop.f32.mrf.mxu0
      %v2535 = vadd.f32 %v2426, %v2534
      %2536 = vmatmul.bf16.gmra.mxu0 %v808
      %v2537 = vpop.f32.mrf.mxu0
      %v2538 = vadd.f32 %v2429, %v2537
      %v2539 = vpop.f32.mrf.mxu0
      %v2540 = vadd.f32 %v2431, %v2539
      %2541 = vdwg.mxu0
      %2542 = vmatpush.bf16.msra.mxu0 %v2001
      %2543 = vmatpush.bf16.msra.mxu0 %v2000
      %2544 = vmatpush.bf16.msra.mxu0 %v1999
      %2545 = vmatpush.bf16.msra.mxu0 %v1998
      %2546 = vmatpush.bf16.msra.mxu0 %v1997
      %2547 = vmatpush.bf16.msra.mxu0 %v1996
      %2548 = vmatpush.bf16.msra.mxu0 %v1995
      %2549 = vmatpush.bf16.msra.mxu0 %v1994
      %2550 = vmatmul.bf16.gmra.mxu0 %v838
      %v2551 = vpop.f32.mrf.mxu0
      %v2552 = vadd.f32 %v2443, %v2551
      %v2553 = vpop.f32.mrf.mxu0
      %v2554 = vadd.f32 %v2445, %v2553
      %2555 = vmatmul.bf16.gmra.mxu0 %v847
      %v2556 = vpop.f32.mrf.mxu0
      %v2557 = vadd.f32 %v2448, %v2556
      %v2558 = vpop.f32.mrf.mxu0
      %v2559 = vadd.f32 %v2450, %v2558
      %2560 = vmatmul.bf16.gmra.mxu0 %v856
      %v2561 = vpop.f32.mrf.mxu0
      %v2562 = vadd.f32 %v2453, %v2561
      %v2563 = vpop.f32.mrf.mxu0
      %v2564 = vadd.f32 %v2455, %v2563
      %2565 = vmatmul.bf16.gmra.mxu0 %v865
      %v2566 = vpop.f32.mrf.mxu0
      %v2567 = vadd.f32 %v2458, %v2566
      %v2568 = vpop.f32.mrf.mxu0
      %v2569 = vadd.f32 %v2460, %v2568
      %2570 = vmatmul.bf16.gmra.mxu0 %v874
      %v2571 = vpop.f32.mrf.mxu0
      %v2572 = vadd.f32 %v2463, %v2571
      %v2573 = vpop.f32.mrf.mxu0
      %v2574 = vadd.f32 %v2465, %v2573
      %2575 = vmatmul.bf16.gmra.mxu0 %v899
      %v2576 = vpop.f32.mrf.mxu0
      %v2577 = vadd.f32 %v2468, %v2576
      %v2578 = vpop.f32.mrf.mxu0
      %v2579 = vadd.f32 %v2470, %v2578
      %2580 = vmatmul.bf16.gmra.mxu0 %v908
      %v2581 = vpop.f32.mrf.mxu0
      %v2582 = vadd.f32 %v2473, %v2581
      %v2583 = vpop.f32.mrf.mxu0
      %v2584 = vadd.f32 %v2475, %v2583
      %2585 = vmatmul.bf16.gmra.mxu0 %v917
      %v2586 = vpop.f32.mrf.mxu0
      %v2587 = vadd.f32 %v2478, %v2586
      %v2588 = vpop.f32.mrf.mxu0
      %v2589 = vadd.f32 %v2480, %v2588
      %2590 = vmatmul.bf16.gmra.mxu0 %v926
      %v2591 = vpop.f32.mrf.mxu0
      %v2592 = vadd.f32 %v2483, %v2591
      %v2593 = vpop.f32.mrf.mxu0
      %v2594 = vadd.f32 %v2485, %v2593
      %2595 = vmatmul.bf16.gmra.mxu0 %v935
      %v2596 = vpop.f32.mrf.mxu0
      %v2597 = vadd.f32 %v2488, %v2596
      %v2598 = vpop.f32.mrf.mxu0
      %v2599 = vadd.f32 %v2490, %v2598
      %2600 = vmatmul.bf16.gmra.mxu0 %v960
      %v2601 = vpop.f32.mrf.mxu0
      %v2602 = vadd.f32 %v2493, %v2601
      %v2603 = vpop.f32.mrf.mxu0
      %v2604 = vadd.f32 %v2495, %v2603
      %2605 = vmatmul.bf16.gmra.mxu0 %v969
      %v2606 = vpop.f32.mrf.mxu0
      %v2607 = vadd.f32 %v2498, %v2606
      %v2608 = vpop.f32.mrf.mxu0
      %v2609 = vadd.f32 %v2500, %v2608
      %2610 = vmatmul.bf16.gmra.mxu0 %v978
      %v2611 = vpop.f32.mrf.mxu0
      %v2612 = vadd.f32 %v2503, %v2611
      %v2613 = vpop.f32.mrf.mxu0
      %v2614 = vadd.f32 %v2505, %v2613
      %2615 = vmatmul.bf16.gmra.mxu0 %v987
      %v2616 = vpop.f32.mrf.mxu0
      %v2617 = vadd.f32 %v2508, %v2616
      %v2618 = vpop.f32.mrf.mxu0
      %v2619 = vadd.f32 %v2510, %v2618
      %2620 = vmatmul.bf16.gmra.mxu0 %v996
      %v2621 = vpop.f32.mrf.mxu0
      %v2622 = vadd.f32 %v2513, %v2621
      %v2623 = vpop.f32.mrf.mxu0
      %v2624 = vadd.f32 %v2515, %v2623
      %2625 = vmatmul.bf16.gmra.mxu0 %v1021
      %v2626 = vpop.f32.mrf.mxu0
      %v2627 = vadd.f32 %v2518, %v2626
      %v2628 = vpop.f32.mrf.mxu0
      %v2629 = vadd.f32 %v2520, %v2628
      %2630 = vmatmul.bf16.gmra.mxu0 %v1030
      %v2631 = vpop.f32.mrf.mxu0
      %v2632 = vadd.f32 %v2523, %v2631
      %v2633 = vpop.f32.mrf.mxu0
      %v2634 = vadd.f32 %v2525, %v2633
      %2635 = vmatmul.bf16.gmra.mxu0 %v1039
      %v2636 = vpop.f32.mrf.mxu0
      %v2637 = vadd.f32 %v2528, %v2636
      %v2638 = vpop.f32.mrf.mxu0
      %v2639 = vadd.f32 %v2530, %v2638
      %2640 = vmatmul.bf16.gmra.mxu0 %v1048
      %v2641 = vpop.f32.mrf.mxu0
      %v2642 = vadd.f32 %v2533, %v2641
      %v2643 = vpop.f32.mrf.mxu0
      %v2644 = vadd.f32 %v2535, %v2643
      %2645 = vmatmul.bf16.gmra.mxu0 %v1057
      %v2646 = vpop.f32.mrf.mxu0
      %v2647 = vadd.f32 %v2538, %v2646
      %v2648 = vpop.f32.mrf.mxu0
      %v2649 = vadd.f32 %v2540, %v2648
      %2650 = vdwg.mxu0
      %2651 = vmatpush.bf16.msra.mxu0 %v2009
      %2652 = vmatpush.bf16.msra.mxu0 %v2008
      %2653 = vmatpush.bf16.msra.mxu0 %v2007
      %2654 = vmatpush.bf16.msra.mxu0 %v2006
      %2655 = vmatpush.bf16.msra.mxu0 %v2005
      %2656 = vmatpush.bf16.msra.mxu0 %v2004
      %2657 = vmatpush.bf16.msra.mxu0 %v2003
      %2658 = vmatpush.bf16.msra.mxu0 %v2002
      %2659 = vmatmul.bf16.gmra.mxu0 %v1073
      %v2660 = vpop.f32.mrf.mxu0
      %v2661 = vadd.f32 %v2552, %v2660
      %v2662 = vpop.f32.mrf.mxu0
      %v2663 = vadd.f32 %v2554, %v2662
      %2664 = vmatmul.bf16.gmra.mxu0 %v1075
      %v2665 = vpop.f32.mrf.mxu0
      %v2666 = vadd.f32 %v2557, %v2665
      %v2667 = vpop.f32.mrf.mxu0
      %v2668 = vadd.f32 %v2559, %v2667
      %2669 = vmatmul.bf16.gmra.mxu0 %v1077
      %v2670 = vpop.f32.mrf.mxu0
      %v2671 = vadd.f32 %v2562, %v2670
      %v2672 = vpop.f32.mrf.mxu0
      %v2673 = vadd.f32 %v2564, %v2672
      %2674 = vmatmul.bf16.gmra.mxu0 %v1079
      %v2675 = vpop.f32.mrf.mxu0
      %v2676 = vadd.f32 %v2567, %v2675
      %v2677 = vpop.f32.mrf.mxu0
      %v2678 = vadd.f32 %v2569, %v2677
      %2679 = vmatmul.bf16.gmra.mxu0 %v1081
      %v2680 = vpop.f32.mrf.mxu0
      %v2681 = vadd.f32 %v2572, %v2680
      %v2682 = vpop.f32.mrf.mxu0
      %v2683 = vadd.f32 %v2574, %v2682
      %2684 = vmatmul.bf16.gmra.mxu0 %v1092
      %v2685 = vpop.f32.mrf.mxu0
      %v2686 = vadd.f32 %v2577, %v2685
      %v2687 = vpop.f32.mrf.mxu0
      %v2688 = vadd.f32 %v2579, %v2687
      %2689 = vmatmul.bf16.gmra.mxu0 %v1094
      %v2690 = vpop.f32.mrf.mxu0
      %v2691 = vadd.f32 %v2582, %v2690
      %v2692 = vpop.f32.mrf.mxu0
      %v2693 = vadd.f32 %v2584, %v2692
      %2694 = vmatmul.bf16.gmra.mxu0 %v1096
      %v2695 = vpop.f32.mrf.mxu0
      %v2696 = vadd.f32 %v2587, %v2695
      %v2697 = vpop.f32.mrf.mxu0
      %v2698 = vadd.f32 %v2589, %v2697
      %2699 = vmatmul.bf16.gmra.mxu0 %v1098
      %v2700 = vpop.f32.mrf.mxu0
      %v2701 = vadd.f32 %v2592, %v2700
      %v2702 = vpop.f32.mrf.mxu0
      %v2703 = vadd.f32 %v2594, %v2702
      %2704 = vmatmul.bf16.gmra.mxu0 %v1100
      %v2705 = vpop.f32.mrf.mxu0
      %v2706 = vadd.f32 %v2597, %v2705
      %v2707 = vpop.f32.mrf.mxu0
      %v2708 = vadd.f32 %v2599, %v2707
      %2709 = vmatmul.bf16.gmra.mxu0 %v1111
      %v2710 = vpop.f32.mrf.mxu0
      %v2711 = vadd.f32 %v2602, %v2710
      %v2712 = vpop.f32.mrf.mxu0
      %v2713 = vadd.f32 %v2604, %v2712
      %2714 = vmatmul.bf16.gmra.mxu0 %v1113
      %v2715 = vpop.f32.mrf.mxu0
      %v2716 = vadd.f32 %v2607, %v2715
      %v2717 = vpop.f32.mrf.mxu0
      %v2718 = vadd.f32 %v2609, %v2717
      %2719 = vmatmul.bf16.gmra.mxu0 %v1115
      %v2720 = vpop.f32.mrf.mxu0
      %v2721 = vadd.f32 %v2612, %v2720
      %v2722 = vpop.f32.mrf.mxu0
      %v2723 = vadd.f32 %v2614, %v2722
      %2724 = vmatmul.bf16.gmra.mxu0 %v1117
      %v2725 = vpop.f32.mrf.mxu0
      %v2726 = vadd.f32 %v2617, %v2725
      %v2727 = vpop.f32.mrf.mxu0
      %v2728 = vadd.f32 %v2619, %v2727
      %2729 = vmatmul.bf16.gmra.mxu0 %v1119
      %v2730 = vpop.f32.mrf.mxu0
      %v2731 = vadd.f32 %v2622, %v2730
      %v2732 = vpop.f32.mrf.mxu0
      %v2733 = vadd.f32 %v2624, %v2732
      %2734 = vmatmul.bf16.gmra.mxu0 %v1130
      %v2735 = vpop.f32.mrf.mxu0
      %v2736 = vadd.f32 %v2627, %v2735
      %v2737 = vpop.f32.mrf.mxu0
      %v2738 = vadd.f32 %v2629, %v2737
      %2739 = vmatmul.bf16.gmra.mxu0 %v1132
      %v2740 = vpop.f32.mrf.mxu0
      %v2741 = vadd.f32 %v2632, %v2740
      %v2742 = vpop.f32.mrf.mxu0
      %v2743 = vadd.f32 %v2634, %v2742
      %2744 = vmatmul.bf16.gmra.mxu0 %v1134
      %v2745 = vpop.f32.mrf.mxu0
      %v2746 = vadd.f32 %v2637, %v2745
      %v2747 = vpop.f32.mrf.mxu0
      %v2748 = vadd.f32 %v2639, %v2747
      %2749 = vmatmul.bf16.gmra.mxu0 %v1136
      %v2750 = vpop.f32.mrf.mxu0
      %v2751 = vadd.f32 %v2642, %v2750
      %v2752 = vpop.f32.mrf.mxu0
      %v2753 = vadd.f32 %v2644, %v2752
      %2754 = vmatmul.bf16.gmra.mxu0 %v1138
      %v2755 = vpop.f32.mrf.mxu0
      %v2756 = vadd.f32 %v2647, %v2755
      %v2757 = vpop.f32.mrf.mxu0
      %v2758 = vadd.f32 %v2649, %v2757
      %2759 = vdwg.mxu0
      %2760 = vmatpush.bf16.msra.mxu0 %v2017
      %2761 = vmatpush.bf16.msra.mxu0 %v2016
      %2762 = vmatpush.bf16.msra.mxu0 %v2015
      %2763 = vmatpush.bf16.msra.mxu0 %v2014
      %2764 = vmatpush.bf16.msra.mxu0 %v2013
      %2765 = vmatpush.bf16.msra.mxu0 %v2012
      %2766 = vmatpush.bf16.msra.mxu0 %v2011
      %2767 = vmatpush.bf16.msra.mxu0 %v2010
      %2768 = vmatmul.bf16.gmra.mxu0 %v1167
      %v2769 = vpop.f32.mrf.mxu0
      %v2770 = vadd.f32 %v2661, %v2769
      %v2771 = vpop.f32.mrf.mxu0
      %v2772 = vadd.f32 %v2663, %v2771
      %2773 = vmatmul.bf16.gmra.mxu0 %v1169
      %v2774 = vpop.f32.mrf.mxu0
      %v2775 = vadd.f32 %v2666, %v2774
      %v2776 = vpop.f32.mrf.mxu0
      %v2777 = vadd.f32 %v2668, %v2776
      %2778 = vmatmul.bf16.gmra.mxu0 %v1171
      %v2779 = vpop.f32.mrf.mxu0
      %v2780 = vadd.f32 %v2671, %v2779
      %v2781 = vpop.f32.mrf.mxu0
      %v2782 = vadd.f32 %v2673, %v2781
      %2783 = vmatmul.bf16.gmra.mxu0 %v1173
      %v2784 = vpop.f32.mrf.mxu0
      %v2785 = vadd.f32 %v2676, %v2784
      %v2786 = vpop.f32.mrf.mxu0
      %v2787 = vadd.f32 %v2678, %v2786
      %2788 = vmatmul.bf16.gmra.mxu0 %v1175
      %v2789 = vpop.f32.mrf.mxu0
      %v2790 = vadd.f32 %v2681, %v2789
      %v2791 = vpop.f32.mrf.mxu0
      %v2792 = vadd.f32 %v2683, %v2791
      %2793 = vmatmul.bf16.gmra.mxu0 %v1192
      %v2794 = vpop.f32.mrf.mxu0
      %v2795 = vadd.f32 %v2686, %v2794
      %v2796 = vpop.f32.mrf.mxu0
      %v2797 = vadd.f32 %v2688, %v2796
      %2798 = vmatmul.bf16.gmra.mxu0 %v1194
      %v2799 = vpop.f32.mrf.mxu0
      %v2800 = vadd.f32 %v2691, %v2799
      %v2801 = vpop.f32.mrf.mxu0
      %v2802 = vadd.f32 %v2693, %v2801
      %2803 = vmatmul.bf16.gmra.mxu0 %v1196
      %v2804 = vpop.f32.mrf.mxu0
      %v2805 = vadd.f32 %v2696, %v2804
      %v2806 = vpop.f32.mrf.mxu0
      %v2807 = vadd.f32 %v2698, %v2806
      %2808 = vmatmul.bf16.gmra.mxu0 %v1198
      %v2809 = vpop.f32.mrf.mxu0
      %v2810 = vadd.f32 %v2701, %v2809
      %v2811 = vpop.f32.mrf.mxu0
      %v2812 = vadd.f32 %v2703, %v2811
      %2813 = vmatmul.bf16.gmra.mxu0 %v1200
      %v2814 = vpop.f32.mrf.mxu0
      %v2815 = vadd.f32 %v2706, %v2814
      %v2816 = vpop.f32.mrf.mxu0
      %v2817 = vadd.f32 %v2708, %v2816
      %2818 = vmatmul.bf16.gmra.mxu0 %v1217
      %v2819 = vpop.f32.mrf.mxu0
      %v2820 = vadd.f32 %v2711, %v2819
      %v2821 = vpop.f32.mrf.mxu0
      %v2822 = vadd.f32 %v2713, %v2821
      %2823 = vmatmul.bf16.gmra.mxu0 %v1219
      %v2824 = vpop.f32.mrf.mxu0
      %v2825 = vadd.f32 %v2716, %v2824
      %v2826 = vpop.f32.mrf.mxu0
      %v2827 = vadd.f32 %v2718, %v2826
      %2828 = vmatmul.bf16.gmra.mxu0 %v1221
      %v2829 = vpop.f32.mrf.mxu0
      %v2830 = vadd.f32 %v2721, %v2829
      %v2831 = vpop.f32.mrf.mxu0
      %v2832 = vadd.f32 %v2723, %v2831
      %2833 = vmatmul.bf16.gmra.mxu0 %v1223
      %v2834 = vpop.f32.mrf.mxu0
      %v2835 = vadd.f32 %v2726, %v2834
      %v2836 = vpop.f32.mrf.mxu0
      %v2837 = vadd.f32 %v2728, %v2836
      %2838 = vmatmul.bf16.gmra.mxu0 %v1225
      %v2839 = vpop.f32.mrf.mxu0
      %v2840 = vadd.f32 %v2731, %v2839
      %v2841 = vpop.f32.mrf.mxu0
      %v2842 = vadd.f32 %v2733, %v2841
      %2843 = vmatmul.bf16.gmra.mxu0 %v1242
      %v2844 = vpop.f32.mrf.mxu0
      %v2845 = vadd.f32 %v2736, %v2844
      %v2846 = vpop.f32.mrf.mxu0
      %v2847 = vadd.f32 %v2738, %v2846
      %2848 = vmatmul.bf16.gmra.mxu0 %v1244
      %v2849 = vpop.f32.mrf.mxu0
      %v2850 = vadd.f32 %v2741, %v2849
      %v2851 = vpop.f32.mrf.mxu0
      %v2852 = vadd.f32 %v2743, %v2851
      %2853 = vmatmul.bf16.gmra.mxu0 %v1246
      %v2854 = vpop.f32.mrf.mxu0
      %v2855 = vadd.f32 %v2746, %v2854
      %v2856 = vpop.f32.mrf.mxu0
      %v2857 = vadd.f32 %v2748, %v2856
      %2858 = vmatmul.bf16.gmra.mxu0 %v1248
      %v2859 = vpop.f32.mrf.mxu0
      %v2860 = vadd.f32 %v2751, %v2859
      %v2861 = vpop.f32.mrf.mxu0
      %v2862 = vadd.f32 %v2753, %v2861
      %2863 = vmatmul.bf16.gmra.mxu0 %v1250
      %v2864 = vpop.f32.mrf.mxu0
      %v2865 = vadd.f32 %v2756, %v2864
      %v2866 = vpop.f32.mrf.mxu0
      %v2867 = vadd.f32 %v2758, %v2866
      %2868 = vdwg.mxu0
      %2869 = vmatpush.bf16.msra.mxu0 %v2025
      %2870 = vmatpush.bf16.msra.mxu0 %v2024
      %2871 = vmatpush.bf16.msra.mxu0 %v2023
      %2872 = vmatpush.bf16.msra.mxu0 %v2022
      %2873 = vmatpush.bf16.msra.mxu0 %v2021
      %2874 = vmatpush.bf16.msra.mxu0 %v2020
      %2875 = vmatpush.bf16.msra.mxu0 %v2019
      %2876 = vmatpush.bf16.msra.mxu0 %v2018
      %2877 = vmatmul.bf16.gmra.mxu0 %v1275
      %v2878 = vpop.f32.mrf.mxu0
      %v2879 = vadd.f32 %v2770, %v2878
      %v2880 = vpop.f32.mrf.mxu0
      %v2881 = vadd.f32 %v2772, %v2880
      %2882 = vmatmul.bf16.gmra.mxu0 %v1279
      %v2883 = vpop.f32.mrf.mxu0
      %v2884 = vadd.f32 %v2775, %v2883
      %v2885 = vpop.f32.mrf.mxu0
      %v2886 = vadd.f32 %v2777, %v2885
      %2887 = vmatmul.bf16.gmra.mxu0 %v1283
      %v2888 = vpop.f32.mrf.mxu0
      %v2889 = vadd.f32 %v2780, %v2888
      %v2890 = vpop.f32.mrf.mxu0
      %v2891 = vadd.f32 %v2782, %v2890
      %2892 = vmatmul.bf16.gmra.mxu0 %v1292
      %v2893 = vpop.f32.mrf.mxu0
      %v2894 = vadd.f32 %v2785, %v2893
      %v2895 = vpop.f32.mrf.mxu0
      %v2896 = vadd.f32 %v2787, %v2895
      %2897 = vmatmul.bf16.gmra.mxu0 %v1301
      %v2898 = vpop.f32.mrf.mxu0
      %v2899 = vadd.f32 %v2790, %v2898
      %v2900 = vpop.f32.mrf.mxu0
      %v2901 = vadd.f32 %v2792, %v2900
      %2902 = vmatmul.bf16.gmra.mxu0 %v1321
      %v2903 = vpop.f32.mrf.mxu0
      %v2904 = vadd.f32 %v2795, %v2903
      %v2905 = vpop.f32.mrf.mxu0
      %v2906 = vadd.f32 %v2797, %v2905
      %2907 = vmatmul.bf16.gmra.mxu0 %v1325
      %v2908 = vpop.f32.mrf.mxu0
      %v2909 = vadd.f32 %v2800, %v2908
      %v2910 = vpop.f32.mrf.mxu0
      %v2911 = vadd.f32 %v2802, %v2910
      %2912 = vmatmul.bf16.gmra.mxu0 %v1329
      %v2913 = vpop.f32.mrf.mxu0
      %v2914 = vadd.f32 %v2805, %v2913
      %v2915 = vpop.f32.mrf.mxu0
      %v2916 = vadd.f32 %v2807, %v2915
      %2917 = vmatmul.bf16.gmra.mxu0 %v1338
      %v2918 = vpop.f32.mrf.mxu0
      %v2919 = vadd.f32 %v2810, %v2918
      %v2920 = vpop.f32.mrf.mxu0
      %v2921 = vadd.f32 %v2812, %v2920
      %2922 = vmatmul.bf16.gmra.mxu0 %v1347
      %v2923 = vpop.f32.mrf.mxu0
      %v2924 = vadd.f32 %v2815, %v2923
      %v2925 = vpop.f32.mrf.mxu0
      %v2926 = vadd.f32 %v2817, %v2925
      %2927 = vmatmul.bf16.gmra.mxu0 %v1367
      %v2928 = vpop.f32.mrf.mxu0
      %v2929 = vadd.f32 %v2820, %v2928
      %v2930 = vpop.f32.mrf.mxu0
      %v2931 = vadd.f32 %v2822, %v2930
      %2932 = vmatmul.bf16.gmra.mxu0 %v1371
      %v2933 = vpop.f32.mrf.mxu0
      %v2934 = vadd.f32 %v2825, %v2933
      %v2935 = vpop.f32.mrf.mxu0
      %v2936 = vadd.f32 %v2827, %v2935
      %2937 = vmatmul.bf16.gmra.mxu0 %v1375
      %v2938 = vpop.f32.mrf.mxu0
      %v2939 = vadd.f32 %v2830, %v2938
      %v2940 = vpop.f32.mrf.mxu0
      %v2941 = vadd.f32 %v2832, %v2940
      %2942 = vmatmul.bf16.gmra.mxu0 %v1384
      %v2943 = vpop.f32.mrf.mxu0
      %v2944 = vadd.f32 %v2835, %v2943
      %v2945 = vpop.f32.mrf.mxu0
      %v2946 = vadd.f32 %v2837, %v2945
      %2947 = vmatmul.bf16.gmra.mxu0 %v1393
      %v2948 = vpop.f32.mrf.mxu0
      %v2949 = vadd.f32 %v2840, %v2948
      %v2950 = vpop.f32.mrf.mxu0
      %v2951 = vadd.f32 %v2842, %v2950
      %2952 = vmatmul.bf16.gmra.mxu0 %v1413
      %v2953 = vpop.f32.mrf.mxu0
      %v2954 = vadd.f32 %v2845, %v2953
      %v2955 = vpop.f32.mrf.mxu0
      %v2956 = vadd.f32 %v2847, %v2955
      %2957 = vmatmul.bf16.gmra.mxu0 %v1417
      %v2958 = vpop.f32.mrf.mxu0
      %v2959 = vadd.f32 %v2850, %v2958
      %v2960 = vpop.f32.mrf.mxu0
      %v2961 = vadd.f32 %v2852, %v2960
      %2962 = vmatmul.bf16.gmra.mxu0 %v1421
      %v2963 = vpop.f32.mrf.mxu0
      %v2964 = vadd.f32 %v2855, %v2963
      %v2965 = vpop.f32.mrf.mxu0
      %v2966 = vadd.f32 %v2857, %v2965
      %2967 = vmatmul.bf16.gmra.mxu0 %v1430
      %v2968 = vpop.f32.mrf.mxu0
      %v2969 = vadd.f32 %v2860, %v2968
      %v2970 = vpop.f32.mrf.mxu0
      %v2971 = vadd.f32 %v2862, %v2970
      %2972 = vmatmul.bf16.gmra.mxu0 %v1439
      %v2973 = vpop.f32.mrf.mxu0
      %v2974 = vadd.f32 %v2865, %v2973
      %v2975 = vpop.f32.mrf.mxu0
      %v2976 = vadd.f32 %v2867, %v2975
      %2977 = vdwg.mxu0
      %2978 = vmatpush.bf16.msra.mxu0 %v2033
      %2979 = vmatpush.bf16.msra.mxu0 %v2032
      %2980 = vmatpush.bf16.msra.mxu0 %v2031
      %2981 = vmatpush.bf16.msra.mxu0 %v2030
      %2982 = vmatpush.bf16.msra.mxu0 %v2029
      %2983 = vmatpush.bf16.msra.mxu0 %v2028
      %2984 = vmatpush.bf16.msra.mxu0 %v2027
      %2985 = vmatpush.bf16.msra.mxu0 %v2026
      %2986 = vmatmul.bf16.gmra.mxu0 %v1455
      %v2987 = vpop.f32.mrf.mxu0
      %v2988 = vadd.f32 %v2879, %v2987
      %v2989 = vpop.f32.mrf.mxu0
      %v2990 = vadd.f32 %v2881, %v2989
      %2991 = vmatmul.bf16.gmra.mxu0 %v1457
      %v2992 = vpop.f32.mrf.mxu0
      %v2993 = vadd.f32 %v2884, %v2992
      %v2994 = vpop.f32.mrf.mxu0
      %v2995 = vadd.f32 %v2886, %v2994
      %2996 = vmatmul.bf16.gmra.mxu0 %v1459
      %v2997 = vpop.f32.mrf.mxu0
      %v2998 = vadd.f32 %v2889, %v2997
      %v2999 = vpop.f32.mrf.mxu0
      %v3000 = vadd.f32 %v2891, %v2999
      %3001 = vmatmul.bf16.gmra.mxu0 %v1461
      %v3002 = vpop.f32.mrf.mxu0
      %v3003 = vadd.f32 %v2894, %v3002
      %v3004 = vpop.f32.mrf.mxu0
      %v3005 = vadd.f32 %v2896, %v3004
      %3006 = vmatmul.bf16.gmra.mxu0 %v1463
      %v3007 = vpop.f32.mrf.mxu0
      %v3008 = vadd.f32 %v2899, %v3007
      %v3009 = vpop.f32.mrf.mxu0
      %v3010 = vadd.f32 %v2901, %v3009
      %3011 = vmatmul.bf16.gmra.mxu0 %v1474
      %v3012 = vpop.f32.mrf.mxu0
      %v3013 = vadd.f32 %v2904, %v3012
      %v3014 = vpop.f32.mrf.mxu0
      %v3015 = vadd.f32 %v2906, %v3014
      %3016 = vmatmul.bf16.gmra.mxu0 %v1476
      %v3017 = vpop.f32.mrf.mxu0
      %v3018 = vadd.f32 %v2909, %v3017
      %v3019 = vpop.f32.mrf.mxu0
      %v3020 = vadd.f32 %v2911, %v3019
      %3021 = vmatmul.bf16.gmra.mxu0 %v1478
      %v3022 = vpop.f32.mrf.mxu0
      %v3023 = vadd.f32 %v2914, %v3022
      %v3024 = vpop.f32.mrf.mxu0
      %v3025 = vadd.f32 %v2916, %v3024
      %3026 = vmatmul.bf16.gmra.mxu0 %v1480
      %v3027 = vpop.f32.mrf.mxu0
      %v3028 = vadd.f32 %v2919, %v3027
      %v3029 = vpop.f32.mrf.mxu0
      %v3030 = vadd.f32 %v2921, %v3029
      %3031 = vmatmul.bf16.gmra.mxu0 %v1482
      %v3032 = vpop.f32.mrf.mxu0
      %v3033 = vadd.f32 %v2924, %v3032
      %v3034 = vpop.f32.mrf.mxu0
      %v3035 = vadd.f32 %v2926, %v3034
      %3036 = vmatmul.bf16.gmra.mxu0 %v1493
      %v3037 = vpop.f32.mrf.mxu0
      %v3038 = vadd.f32 %v2929, %v3037
      %v3039 = vpop.f32.mrf.mxu0
      %v3040 = vadd.f32 %v2931, %v3039
      %3041 = vmatmul.bf16.gmra.mxu0 %v1495
      %v3042 = vpop.f32.mrf.mxu0
      %v3043 = vadd.f32 %v2934, %v3042
      %v3044 = vpop.f32.mrf.mxu0
      %v3045 = vadd.f32 %v2936, %v3044
      %3046 = vmatmul.bf16.gmra.mxu0 %v1497
      %v3047 = vpop.f32.mrf.mxu0
      %v3048 = vadd.f32 %v2939, %v3047
      %v3049 = vpop.f32.mrf.mxu0
      %v3050 = vadd.f32 %v2941, %v3049
      %3051 = vmatmul.bf16.gmra.mxu0 %v1499
      %v3052 = vpop.f32.mrf.mxu0
      %v3053 = vadd.f32 %v2944, %v3052
      %v3054 = vpop.f32.mrf.mxu0
      %v3055 = vadd.f32 %v2946, %v3054
      %3056 = vmatmul.bf16.gmra.mxu0 %v1501
      %v3057 = vpop.f32.mrf.mxu0
      %v3058 = vadd.f32 %v2949, %v3057
      %v3059 = vpop.f32.mrf.mxu0
      %v3060 = vadd.f32 %v2951, %v3059
      %3061 = vmatmul.bf16.gmra.mxu0 %v1512
      %v3062 = vpop.f32.mrf.mxu0
      %v3063 = vadd.f32 %v2954, %v3062
      %v3064 = vpop.f32.mrf.mxu0
      %v3065 = vadd.f32 %v2956, %v3064
      %3066 = vmatmul.bf16.gmra.mxu0 %v1514
      %v3067 = vpop.f32.mrf.mxu0
      %v3068 = vadd.f32 %v2959, %v3067
      %v3069 = vpop.f32.mrf.mxu0
      %v3070 = vadd.f32 %v2961, %v3069
      %3071 = vmatmul.bf16.gmra.mxu0 %v1516
      %v3072 = vpop.f32.mrf.mxu0
      %v3073 = vadd.f32 %v2964, %v3072
      %v3074 = vpop.f32.mrf.mxu0
      %v3075 = vadd.f32 %v2966, %v3074
      %3076 = vmatmul.bf16.gmra.mxu0 %v1518
      %v3077 = vpop.f32.mrf.mxu0
      %v3078 = vadd.f32 %v2969, %v3077
      %v3079 = vpop.f32.mrf.mxu0
      %v3080 = vadd.f32 %v2971, %v3079
      %3081 = vmatmul.bf16.gmra.mxu0 %v1520
      %v3082 = vpop.f32.mrf.mxu0
      %v3083 = vadd.f32 %v2974, %v3082
      %v3084 = vpop.f32.mrf.mxu0
      %v3085 = vadd.f32 %v2976, %v3084
      %3086 = vdwg.mxu0
      %v3087 = vmax.f32 %v2988, 0.0
      %v3088 = vmax.f32 %v2990, 0.0
      %v3089 = vmax.f32 %v2993, 0.0
      %v3090 = vmax.f32 %v2995, 0.0
      %v3091 = vmax.f32 %v2998, 0.0
      %v3092 = vmax.f32 %v3000, 0.0
      %v3093 = vmax.f32 %v3003, 0.0
      %v3094 = vmax.f32 %v3005, 0.0
      %v3095 = vmax.f32 %v3008, 0.0
      %v3096 = vmax.f32 %v3010, 0.0
      %v3097 = vmax.f32 %v3013, 0.0
      %v3098 = vmax.f32 %v3015, 0.0
      %v3099 = vmax.f32 %v3018, 0.0
      %v3100 = vmax.f32 %v3020, 0.0
      %v3101 = vmax.f32 %v3023, 0.0
      %v3102 = vmax.f32 %v3025, 0.0
      %v3103 = vmax.f32 %v3028, 0.0
      %v3104 = vmax.f32 %v3030, 0.0
      %v3105 = vmax.f32 %v3033, 0.0
      %v3106 = vmax.f32 %v3035, 0.0
      %v3107 = vmax.f32 %v3038, 0.0
      %v3108 = vmax.f32 %v3040, 0.0
      %v3109 = vmax.f32 %v3043, 0.0
      %v3110 = vmax.f32 %v3045, 0.0
      %v3111 = vmax.f32 %v3048, 0.0
      %v3112 = vmax.f32 %v3050, 0.0
      %v3113 = vmax.f32 %v3053, 0.0
      %v3114 = vmax.f32 %v3055, 0.0
      %v3115 = vmax.f32 %v3058, 0.0
      %v3116 = vmax.f32 %v3060, 0.0
      %v3117 = vmax.f32 %v3063, 0.0
      %v3118 = vmax.f32 %v3065, 0.0
      %v3119 = vmax.f32 %v3068, 0.0
      %v3120 = vmax.f32 %v3070, 0.0
      %v3121 = vmax.f32 %v3073, 0.0
      %v3122 = vmax.f32 %v3075, 0.0
      %v3123 = vmax.f32 %v3078, 0.0
      %v3124 = vmax.f32 %v3080, 0.0
      %v3125 = vmax.f32 %v3083, 0.0
      %v3126 = vmax.f32 %v3085, 0.0
      %vm3129 = vcmask 1045504
      %v3130 = vrot.slane %v3088, 2
      %v3131 = vrot.slane %v3089, 2
      %v3132 = vsel %vm3129, %v3130, %v3131
      %vm3135 = vcmask 1043456
      %v3136 = vrot.slane %v3089, 4
      %v3137 = vrot.slane %v3090, 4
      %v3138 = vsel %vm3135, %v3136, %v3137
      %vm3141 = vcmask 1041408
      %v3142 = vrot.slane %v3090, 6
      %v3143 = vrot.slane %v3091, 6
      %v3144 = vsel %vm3141, %v3142, %v3143
      %v3148 = vrot.slane %v3093, 2
      %v3149 = vrot.slane %v3094, 2
      %v3150 = vsel %vm3129, %v3148, %v3149
      %v3153 = vrot.slane %v3094, 4
      %v3154 = vrot.slane %v3095, 4
      %v3155 = vsel %vm3135, %v3153, %v3154
      %v3158 = vrot.slane %v3095, 6
      %v3159 = vrot.slane %v3096, 6
      %v3160 = vsel %vm3141, %v3158, %v3159
      %v3164 = vrot.slane %v3098, 2
      %v3165 = vrot.slane %v3099, 2
      %v3166 = vsel %vm3129, %v3164, %v3165
      %v3169 = vrot.slane %v3099, 4
      %v3170 = vrot.slane %v3100, 4
      %v3171 = vsel %vm3135, %v3169, %v3170
      %v3174 = vrot.slane %v3100, 6
      %v3175 = vrot.slane %v3101, 6
      %v3176 = vsel %vm3141, %v3174, %v3175
      %v3180 = vrot.slane %v3103, 2
      %v3181 = vrot.slane %v3104, 2
      %v3182 = vsel %vm3129, %v3180, %v3181
      %v3185 = vrot.slane %v3104, 4
      %v3186 = vrot.slane %v3105, 4
      %v3187 = vsel %vm3135, %v3185, %v3186
      %v3190 = vrot.slane %v3105, 6
      %v3191 = vrot.slane %v3106, 6
      %v3192 = vsel %vm3141, %v3190, %v3191
      %v3196 = vrot.slane %v3108, 2
      %v3197 = vrot.slane %v3109, 2
      %v3198 = vsel %vm3129, %v3196, %v3197
      %v3201 = vrot.slane %v3109, 4
      %v3202 = vrot.slane %v3110, 4
      %v3203 = vsel %vm3135, %v3201, %v3202
      %v3206 = vrot.slane %v3110, 6
      %v3207 = vrot.slane %v3111, 6
      %v3208 = vsel %vm3141, %v3206, %v3207
      %v3212 = vrot.slane %v3113, 2
      %v3213 = vrot.slane %v3114, 2
      %v3214 = vsel %vm3129, %v3212, %v3213
      %v3217 = vrot.slane %v3114, 4
      %v3218 = vrot.slane %v3115, 4
      %v3219 = vsel %vm3135, %v3217, %v3218
      %v3222 = vrot.slane %v3115, 6
      %v3223 = vrot.slane %v3116, 6
      %v3224 = vsel %vm3141, %v3222, %v3223
      %v3228 = vrot.slane %v3118, 2
      %v3229 = vrot.slane %v3119, 2
      %v3230 = vsel %vm3129, %v3228, %v3229
      %v3233 = vrot.slane %v3119, 4
      %v3234 = vrot.slane %v3120, 4
      %v3235 = vsel %vm3135, %v3233, %v3234
      %v3238 = vrot.slane %v3120, 6
      %v3239 = vrot.slane %v3121, 6
      %v3240 = vsel %vm3141, %v3238, %v3239
      %v3244 = vrot.slane %v3123, 2
      %v3245 = vrot.slane %v3124, 2
      %v3246 = vsel %vm3129, %v3244, %v3245
      %v3249 = vrot.slane %v3124, 4
      %v3250 = vrot.slane %v3125, 4
      %v3251 = vsel %vm3135, %v3249, %v3250
      %v3254 = vrot.slane %v3125, 6
      %v3255 = vrot.slane %v3126, 6
      %v3256 = vsel %vm3141, %v3254, %v3255
      %v3258 = vpack.c.bf16 %v3132, %v3087
      %v3259 = vpack.c.bf16 %v3144, %v3138
      %v3260 = vpack.c.bf16 %v3150, %v3092
      %v3261 = vpack.c.bf16 %v3160, %v3155
      %v3262 = vpack.c.bf16 %v3166, %v3097
      %v3263 = vpack.c.bf16 %v3176, %v3171
      %v3264 = vpack.c.bf16 %v3182, %v3102
      %v3265 = vpack.c.bf16 %v3192, %v3187
      %v3266 = vpack.c.bf16 %v3198, %v3107
      %v3267 = vpack.c.bf16 %v3208, %v3203
      %v3268 = vpack.c.bf16 %v3214, %v3112
      %v3269 = vpack.c.bf16 %v3224, %v3219
      %v3270 = vpack.c.bf16 %v3230, %v3117
      %v3271 = vpack.c.bf16 %v3240, %v3235
      %v3272 = vpack.c.bf16 %v3246, %v3122
      %v3273 = vpack.c.bf16 %v3256, %v3251
      %v3274 = vld [vmem:[%s3] sm:$0xf]
      %v3275 = vld [vmem:[%s3 + $0x4] sm:$0xf]
      %v3276 = vld [vmem:[%s3 + $0x8] sm:$0xf]
      %v3277 = vld [vmem:[%s3 + $0xc] sm:$0xf]
      %v3278 = vld [vmem:[%s3 + $0x10] sm:$0xf]
      %v3279 = vld [vmem:[%s3 + $0x14] sm:$0xf]
      %v3280 = vld [vmem:[%s3 + $0x18] sm:$0xf]
      %v3281 = vld [vmem:[%s3 + $0x1c] sm:$0xf]
      %v3282 = vld [vmem:[%s3 + $0x20] sm:$0xf]
      %v3283 = vld [vmem:[%s3 + $0x24] sm:$0xf]
      %v3284 = vld [vmem:[%s3 + $0x28] sm:$0xf]
      %v3285 = vld [vmem:[%s3 + $0x2c] sm:$0xf]
      %v3286 = vld [vmem:[%s3 + $0x30] sm:$0xf]
      %v3287 = vld [vmem:[%s3 + $0x34] sm:$0xf]
      %v3288 = vld [vmem:[%s3 + $0x38] sm:$0xf]
      %v3289 = vld [vmem:[%s3 + $0x3c] sm:$0xf]
      %v3290 = vld [vmem:[%s4] sm:$0x1]
      %v3292 = vperm.slane %v3290, 0
      %v3310 = vunpack.c.l.b16 %v3274
      %v3311 = vunpack.c.l.b16 %v3275
      %v3312 = vunpack.c.l.b16 %v3276
      %v3313 = vunpack.c.l.b16 %v3277
      %v3314 = vunpack.c.l.b16 %v3278
      %v3315 = vunpack.c.l.b16 %v3279
      %v3316 = vunpack.c.l.b16 %v3280
      %v3317 = vunpack.c.l.b16 %v3281
      %v3318 = vunpack.c.l.b16 %v3282
      %v3319 = vunpack.c.l.b16 %v3283
      %v3320 = vunpack.c.l.b16 %v3284
      %v3321 = vunpack.c.l.b16 %v3285
      %v3322 = vunpack.c.l.b16 %v3286
      %v3323 = vunpack.c.l.b16 %v3287
      %v3324 = vunpack.c.l.b16 %v3288
      %v3325 = vunpack.c.l.b16 %v3289
      %v3326 = vpack.c.b16 %v3311, %v3310
      %v3327 = vpack.c.b16 %v3313, %v3312
      %v3328 = vpack.c.b16 %v3315, %v3314
      %v3329 = vpack.c.b16 %v3317, %v3316
      %v3330 = vpack.c.b16 %v3319, %v3318
      %v3331 = vpack.c.b16 %v3321, %v3320
      %v3332 = vpack.c.b16 %v3323, %v3322
      %v3333 = vpack.c.b16 %v3325, %v3324
      %3342 = vmatpush.bf16.msra.mxu0 %v3333
      %3343 = vmatpush.bf16.msra.mxu0 %v3332
      %3344 = vmatpush.bf16.msra.mxu0 %v3331
      %3345 = vmatpush.bf16.msra.mxu0 %v3330
      %3346 = vmatpush.bf16.msra.mxu0 %v3329
      %3347 = vmatpush.bf16.msra.mxu0 %v3328
      %3348 = vmatpush.bf16.msra.mxu0 %v3327
      %3349 = vmatpush.bf16.msra.mxu0 %v3326
      %3350 = vmatmul.bf16.gmra.mxu0 %v3258
      %v3351 = vpop.f32.mrf.mxu0
      %v3352 = vadd.f32 %v3292, %v3351
      %v3353 = vpop.f32.mrf.mxu0
      %v3354 = vadd.f32 %v3292, %v3353
      %3355 = vmatmul.bf16.gmra.mxu0 %v3259
      %v3356 = vpop.f32.mrf.mxu0
      %v3357 = vadd.f32 %v3292, %v3356
      %v3358 = vpop.f32.mrf.mxu0
      %v3359 = vadd.f32 %v3292, %v3358
      %3360 = vmatmul.bf16.gmra.mxu0 %v3260
      %v3361 = vpop.f32.mrf.mxu0
      %v3362 = vadd.f32 %v3292, %v3361
      %v3363 = vpop.f32.mrf.mxu0
      %v3364 = vadd.f32 %v3292, %v3363
      %3365 = vmatmul.bf16.gmra.mxu0 %v3261
      %v3366 = vpop.f32.mrf.mxu0
      %v3367 = vadd.f32 %v3292, %v3366
      %v3368 = vpop.f32.mrf.mxu0
      %v3369 = vadd.f32 %v3292, %v3368
      %3370 = vmatmul.bf16.gmra.mxu0 %v3262
      %v3371 = vpop.f32.mrf.mxu0
      %v3372 = vadd.f32 %v3292, %v3371
      %v3373 = vpop.f32.mrf.mxu0
      %v3374 = vadd.f32 %v3292, %v3373
      %3375 = vmatmul.bf16.gmra.mxu0 %v3263
      %v3376 = vpop.f32.mrf.mxu0
      %v3377 = vadd.f32 %v3292, %v3376
      %v3378 = vpop.f32.mrf.mxu0
      %v3379 = vadd.f32 %v3292, %v3378
      %3380 = vmatmul.bf16.gmra.mxu0 %v3264
      %v3381 = vpop.f32.mrf.mxu0
      %v3382 = vadd.f32 %v3292, %v3381
      %v3383 = vpop.f32.mrf.mxu0
      %v3384 = vadd.f32 %v3292, %v3383
      %3385 = vmatmul.bf16.gmra.mxu0 %v3265
      %v3386 = vpop.f32.mrf.mxu0
      %v3387 = vadd.f32 %v3292, %v3386
      %v3388 = vpop.f32.mrf.mxu0
      %v3389 = vadd.f32 %v3292, %v3388
      %3390 = vmatmul.bf16.gmra.mxu0 %v3266
      %v3391 = vpop.f32.mrf.mxu0
      %v3392 = vadd.f32 %v3292, %v3391
      %v3393 = vpop.f32.mrf.mxu0
      %v3394 = vadd.f32 %v3292, %v3393
      %3395 = vmatmul.bf16.gmra.mxu0 %v3267
      %v3396 = vpop.f32.mrf.mxu0
      %v3397 = vadd.f32 %v3292, %v3396
      %v3398 = vpop.f32.mrf.mxu0
      %v3399 = vadd.f32 %v3292, %v3398
      %3400 = vmatmul.bf16.gmra.mxu0 %v3268
      %v3401 = vpop.f32.mrf.mxu0
      %v3402 = vadd.f32 %v3292, %v3401
      %v3403 = vpop.f32.mrf.mxu0
      %v3404 = vadd.f32 %v3292, %v3403
      %3405 = vmatmul.bf16.gmra.mxu0 %v3269
      %v3406 = vpop.f32.mrf.mxu0
      %v3407 = vadd.f32 %v3292, %v3406
      %v3408 = vpop.f32.mrf.mxu0
      %v3409 = vadd.f32 %v3292, %v3408
      %3410 = vmatmul.bf16.gmra.mxu0 %v3270
      %v3411 = vpop.f32.mrf.mxu0
      %v3412 = vadd.f32 %v3292, %v3411
      %v3413 = vpop.f32.mrf.mxu0
      %v3414 = vadd.f32 %v3292, %v3413
      %3415 = vmatmul.bf16.gmra.mxu0 %v3271
      %v3416 = vpop.f32.mrf.mxu0
      %v3417 = vadd.f32 %v3292, %v3416
      %v3418 = vpop.f32.mrf.mxu0
      %v3419 = vadd.f32 %v3292, %v3418
      %3420 = vmatmul.bf16.gmra.mxu0 %v3272
      %v3421 = vpop.f32.mrf.mxu0
      %v3422 = vadd.f32 %v3292, %v3421
      %v3423 = vpop.f32.mrf.mxu0
      %v3424 = vadd.f32 %v3292, %v3423
      %3425 = vmatmul.bf16.gmra.mxu0 %v3273
      %v3426 = vpop.f32.mrf.mxu0
      %v3427 = vadd.f32 %v3292, %v3426
      %v3428 = vpop.f32.mrf.mxu0
      %v3429 = vadd.f32 %v3292, %v3428
      %3430 = vdwg.mxu0
      %3431 = vst [vmem:[%s231] sm:$0xff] %v3352
      %3432 = vst [vmem:[%s231 + $0x8] sm:$0xff] %v3354
      %3433 = vst [vmem:[%s231 + $0x10] sm:$0xff] %v3357
      %3434 = vst [vmem:[%s231 + $0x18] sm:$0xff] %v3359
      %3435 = vst [vmem:[%s231 + $0x20] sm:$0xff] %v3362
      %3436 = vst [vmem:[%s231 + $0x28] sm:$0xff] %v3364
      %3437 = vst [vmem:[%s231 + $0x30] sm:$0xff] %v3367
      %3438 = vst [vmem:[%s231 + $0x38] sm:$0xff] %v3369
      %s3439 = scalar_lea.vmem %s231, 64
      %3440 = vst [vmem:[%s3439] sm:$0xff] %v3372
      %3441 = vst [vmem:[%s3439 + $0x8] sm:$0xff] %v3374
      %3442 = vst [vmem:[%s3439 + $0x10] sm:$0xff] %v3377
      %3443 = vst [vmem:[%s3439 + $0x18] sm:$0xff] %v3379
      %3444 = vst [vmem:[%s3439 + $0x20] sm:$0xff] %v3382
      %3445 = vst [vmem:[%s3439 + $0x28] sm:$0xff] %v3384
      %3446 = vst [vmem:[%s3439 + $0x30] sm:$0xff] %v3387
      %3447 = vst [vmem:[%s3439 + $0x38] sm:$0xff] %v3389
      %s3448 = scalar_lea.vmem %s231, 128
      %3449 = vst [vmem:[%s3448] sm:$0xff] %v3392
      %3450 = vst [vmem:[%s3448 + $0x8] sm:$0xff] %v3394
      %3451 = vst [vmem:[%s3448 + $0x10] sm:$0xff] %v3397
      %3452 = vst [vmem:[%s3448 + $0x18] sm:$0xff] %v3399
      %3453 = vst [vmem:[%s3448 + $0x20] sm:$0xff] %v3402
      %3454 = vst [vmem:[%s3448 + $0x28] sm:$0xff] %v3404
      %3455 = vst [vmem:[%s3448 + $0x30] sm:$0xff] %v3407
      %3456 = vst [vmem:[%s3448 + $0x38] sm:$0xff] %v3409
      %s3457 = scalar_lea.vmem %s231, 192
      %3458 = vst [vmem:[%s3457] sm:$0xff] %v3412
      %3459 = vst [vmem:[%s3457 + $0x8] sm:$0xff] %v3414
      %3460 = vst [vmem:[%s3457 + $0x10] sm:$0xff] %v3417
      %3461 = vst [vmem:[%s3457 + $0x18] sm:$0xff] %v3419
      %3462 = vst [vmem:[%s3457 + $0x20] sm:$0xff] %v3422
      %3463 = vst [vmem:[%s3457 + $0x28] sm:$0xff] %v3424
      %3464 = vst [vmem:[%s3457 + $0x30] sm:$0xff] %v3427
      %3465 = vst [vmem:[%s3457 + $0x38] sm:$0xff] %v3429
      %s3466 = smul.u32 4, %s16
      %p3467 = scmp.lt.s32.totalorder %s3466, 7
      %s3468 = scalar_select %p3467, %s3466, 7
      %s3469 = smul.addr %s3468, 8
      %s3470 = smul.addr %s3469, 8
      %s3471 = scalar_lea.vmem %s5, %s3470
      // Predicated region
      $region41: #{classification_head.1} parent=39 // pred_check
        %p3472 = pneg %p144
      $region42: #{classification_head.1} parent=39 // pred_check_branch
        %3474 = sbr.rel (%p3472) target = $region44
      $region43: #{classification_head.1} parent=39 // pred_region
        %s3475 = smul.u32 4, %s16
      $region44: #{classification_head.1} parent=39 // pred_fallthru
        _
    $region40: #{classification_head.1} parent=5 // pred_fallthru
      _
    %p3476 = scmp.le.s32.totalorder 2, %s11
    // Predicated region
    $region45: #{classification_head.1} parent=5 // pred_check
      %p3477 = pneg %p3476
    $region46: #{classification_head.1} parent=5 // pred_check_branch
      %3479 = sbr.rel (%p3477) target = $region48
    $region47: #{classification_head.1} parent=5 // pred_region
      %s3480 = ssub.s32 %s11, 2
      // Predicated region
      $region49: #{classification_head.1} parent=47 // pred_check
        %p3481 = pneg %p150
      $region50: #{classification_head.1} parent=47 // pred_check_branch
        %3483 = sbr.rel (%p3481) target = $region52
      $region51: #{classification_head.1} parent=47 // pred_region
        %s3484 = smul.u32 4, %s17
        %p3485 = scmp.lt.s32.totalorder %s3484, 7
        %s3486 = scalar_select %p3485, %s3484, 7
        %s3487 = smul.addr %s3486, 8
        %s3488 = smul.addr %s3487, 8
        %s3489 = scalar_lea.vmem %s5, %s3488
      $region52: #{classification_head.1} parent=47 // pred_fallthru
        _
    $region48: #{classification_head.1} parent=5 // pred_fallthru
      _
  $region6: #{classification_head.1} parent=0 // loop_footer
    %s15 = sadd.s32 1, %s11
  $region7: #{classification_head.1} parent=0 // loop_footer_branch
    %10 = sbr.rel target = $region3
  $region8: #{classification_head.1} parent=0 // loop_exit
    _

</llo_original>
